<compile_context>
chip_gen: v7x
topology: tpu7x:2x2x1
jax: 0.10.0
libtpu: 0.0.40
codegen_flags: <defaults>
</compile_context>

<pallas_src>
import functools

import jax
import jax.numpy as jnp
from jax.experimental import pallas as pl
from jax.experimental.pallas import tpu as pltpu


# ----------------------------------------------------------------------------
# Tiling helpers
# ----------------------------------------------------------------------------
def _round_up(v, m):
    return ((v + m - 1) // m) * m


def _tiles(n):
    """(Npad, dst_tile TM, src_tile TK).

    Lane dim is always a multiple of 128.  For large graphs use 512x1024 adjacency tiles
    (512*1024 int8 = 0.5 MiB per buffer, far under every generation's scoped VMEM budget).
    TM is capped at Npad/2 so there are always >= 2 dst tiles for v7x's two TensorCores."""
    npad = _round_up(n, 128)
    if npad <= 1024:
        tk = npad                      # single src tile; block == full (padded) dim
        tm = min(512, npad // 2)       # >= 2 dst tiles (megacore / v7x)
    else:
        tk = 1024
        npad = _round_up(n, tk)
        tm = 512
    return npad, tm, tk


# ----------------------------------------------------------------------------
# Pallas kernels
# ----------------------------------------------------------------------------
def _gat_project_kernel(x_ref, wcat_ref, walT_ref, z_ref, elT_ref, er_ref, *, hf):
    """Per node-row tile: one MXU pass for z (all heads) + er (folded a_r), and el^T directly."""
    x = x_ref[...]                                                       # (TP, Din) bf16
    zr = jnp.dot(x, wcat_ref[...], preferred_element_type=jnp.float32)   # (TP, HF + H)
    z_ref[...] = zr[:, :hf].astype(jnp.bfloat16)                         # (TP, HF)
    er_ref[...] = zr[:, hf:]                                             # (TP, H)
    # (H, TP) = walT (H, Din) contracted with x (TP, Din) on Din == (x @ wa_l)^T, produced
    # directly on the MXU so no lane-sparse (N, 1) transpose is ever needed downstream.
    elT_ref[...] = jax.lax.dot_general(
        walT_ref[...], x, (((1,), (1,)), ((), ())),
        preferred_element_type=jnp.float32)                              # (H, TP)


def _gat_attn_kernel(cnt_ref, er_ref, elT_ref, adj_ref, z_ref, b_ref, o_ref,
                     m_ref, l_ref, acc_ref, *,
                     num_heads, out_feats, epilogue, src_tile, z_resident):
    """Flash-style masked edge-softmax + aggregation over src tiles, epilogue fused at the end.

    cnt_ref (SMEM, scalar-prefetched): per-(dst-tile, src-tile) edge counts -> empty adjacency
    tiles skip all VPU/EUP/MXU work."""
    i = pl.program_id(0)
    j = pl.program_id(1)
    H, F = num_heads, out_feats
    NEG = jnp.float32(-1e30)

    @pl.when(j == 0)
    def _():
        m_ref[...] = jnp.full(m_ref.shape, NEG, dtype=m_ref.dtype)
        l_ref[...] = jnp.zeros_like(l_ref)
        acc_ref[...] = jnp.zeros_like(acc_ref)

    @pl.when(cnt_ref[i, j] > 0)        # block-sparse: skip tiles with zero edges
    def _():
        # Mask work hoisted out of the per-head loop (adj is 0/1 int8).
        mask_f = (adj_ref[...] != 0).astype(jnp.float32)          # (TM, TK) 0/1
        neg_bias = (mask_f - 1.0) * jnp.float32(1e30)             # 0 on edges, -1e30 off-graph
        if z_resident:
            off = pl.multiple_of(j * src_tile, src_tile)
            z_src = z_ref[pl.ds(off, src_tile), :]                # (TK, H*F) bf16, VMEM resident
        else:
            z_src = z_ref[...]                                    # streamed (TK, H*F)
        er = er_ref[...]                                          # (TM, H)
        elT = elT_ref[...]                                        # (H, TK)

        # TODO(synk): for num_heads >= 4 switch this static unroll to lax.fori_loop over pl.ds
        # head slices to bound live (TM, TK) temporaries / vreg pressure.
        for h in range(H):
            e = er[:, h:h + 1] + elT[h:h + 1, :]                  # (TM, 1)+(1, TK) -> (TM, TK)
            e = jnp.maximum(e, 0.2 * e)                           # leaky_relu, slope 0.2
            s = e + neg_bias

            m_old = m_ref[:, h:h + 1]
            m_new = jnp.maximum(m_old, jnp.max(s, axis=-1, keepdims=True))
            p = jnp.exp(s - m_new) * mask_f                       # exact zeros off-graph
            corr = jnp.exp(m_old - m_new)                         # (TM, 1)

            l_ref[:, h:h + 1] = corr * l_ref[:, h:h + 1] + jnp.sum(p, axis=-1, keepdims=True)
            acc_ref[:, h * F:(h + 1) * F] = (
                corr * acc_ref[:, h * F:(h + 1) * F]
                + jnp.dot(p.astype(jnp.bfloat16), z_src[:, h * F:(h + 1) * F],
                          preferred_element_type=jnp.float32))
            m_ref[:, h:h + 1] = m_new

    @pl.when(j == pl.num_programs(1) - 1)
    def _():
        bias = b_ref[...]
        heads = []
        for h in range(H):
            # self-loops assumed present (denominator > 0); guard keeps padded rows finite
            inv = 1.0 / jnp.maximum(l_ref[:, h:h + 1], 1e-20)
            heads.append(acc_ref[:, h * F:(h + 1) * F] * inv + bias[:, h * F:(h + 1) * F])
        if epilogue == "log_softmax":                 # last layer: mean over heads + log_softmax
            x = heads[0]
            for h in range(1, H):
                x = x + heads[h]
            x = x * jnp.float32(1.0 / H)
            mx = jnp.max(x, axis=-1, keepdims=True)
            sx = x - mx
            out = sx - jnp.log(jnp.sum(jnp.exp(sx), axis=-1, keepdims=True))
        else:                                         # hidden layers: flatten(1) + relu fused
            out = heads[0] if H == 1 else jnp.concatenate(heads, axis=-1)
            out = jnp.maximum(out, 0.0)
        o_ref[...] = out.astype(o_ref.dtype)


# ----------------------------------------------------------------------------
# JAX wrappers around pallas_call
# ----------------------------------------------------------------------------
def gat_conv(xp, layer, adjp, counts, tm, tk, epilogue):
    """One DGL-style GATConv over a (padded) dense int8 adjacency adj[dst, src].
    xp: (Npad, Din) bf16.  Returns (Npad, H*F) bf16 (relu fused) or (Npad, F) f32 (mean+logsoftmax)."""
    npad, din = xp.shape
    H, F = layer["heads"], layer["out_feats"]
    HF = H * F

    Wr = layer["W"].reshape(din, H, F)
    wa_r = jnp.einsum("dhf,hf->dh", Wr, layer["attn_r"])                               # (Din, H)
    wcat = jnp.concatenate([layer["W"], wa_r], axis=1).astype(jnp.bfloat16)            # (Din, HF+H)
    wa_lT = jnp.einsum("dhf,hf->hd", Wr, layer["attn_l"]).astype(jnp.bfloat16)         # (H, Din)
    bias = layer["bias"].reshape(1, HF).astype(jnp.float32)

    # ---- projection ---------------------------------------------------------
    tp = tk  # row tile; multiple of 128 or == Npad by construction of _tiles
    proj_bytes = 2 * (tp * din * 2 + din * (HF + H) * 2 + H * din * 2
                      + tp * HF * 2 + H * tp * 4 + tp * H * 4)
    z, elT, er = pl.pallas_call(
        functools.partial(_gat_project_kernel, hf=HF),
        out_shape=(jax.ShapeDtypeStruct((npad, HF), jnp.bfloat16),
                   jax.ShapeDtypeStruct((H, npad), jnp.float32),
                   jax.ShapeDtypeStruct((npad, H), jnp.float32)),
        grid=(npad // tp,),
        in_specs=[pl.BlockSpec((tp, din), lambda i: (i, 0)),       # x row tile
                  pl.BlockSpec((din, HF + H), lambda i: (0, 0)),   # [W | W@a_r] (resident)
                  pl.BlockSpec((H, din), lambda i: (0, 0))],       # (W@a_l)^T  (resident)
        out_specs=(pl.BlockSpec((tp, HF), lambda i: (i, 0)),
                   pl.BlockSpec((H, tp), lambda i: (0, i)),
                   pl.BlockSpec((tp, H), lambda i: (i, 0))),
        compiler_params=pltpu.CompilerParams(
            dimension_semantics=("parallel",),
            vmem_limit_bytes=int(min(max(2 * proj_bytes + (4 << 20), 32 << 20), 48 << 20))),
    )(xp, wcat, wa_lT)

    # ---- attention / aggregation -------------------------------------------
    ow = F if epilogue == "log_softmax" else HF
    out_dtype = jnp.float32 if epilogue == "log_softmax" else jnp.bfloat16
    out_bytes = 4 if epilogue == "log_softmax" else 2

    # z stays fully VMEM-resident across the grid when it fits comfortably (incl. double buffer);
    # otherwise fall back to streaming a (TK, HF) src tile per step.
    z_resident = (tk < npad) and (2 * npad * HF * 2 <= (12 << 20))
    z_rows = npad if z_resident else tk
    attn_bytes = (2 * tm * H * 4            # er tile
                  + 2 * H * tk * 4          # elT tile
                  + 2 * tm * tk * 1         # adj tile (int8)
                  + 2 * z_rows * HF * 2     # z (resident or streamed)
                  + 2 * HF * 4              # bias
                  + 2 * tm * ow * out_bytes # output tile
                  + 2 * tm * H * 4 + tm * HF * 4)  # m, l, acc scratch
    vmem_limit = int(min(max(2 * attn_bytes + (4 << 20), 32 << 20), 48 << 20))

    if z_resident:
        z_spec = pl.BlockSpec((npad, HF), lambda i, j, c: (0, 0))
    else:
        z_spec = pl.BlockSpec((tk, HF), lambda i, j, c: (j, 0))

    kernel = functools.partial(_gat_attn_kernel, num_heads=H, out_feats=F,
                               epilogue=epilogue, src_tile=tk, z_resident=z_resident)
    # TODO(synk): full block-sparse gather (compacted per-dst-tile src-tile lists in the adj
    # index_map) would also skip the DMA of empty tiles; here only compute is skipped.
    return pl.pallas_call(
        kernel,
        out_shape=jax.ShapeDtypeStruct((npad, ow), out_dtype),
        grid_spec=pltpu.PrefetchScalarGridSpec(
            num_scalar_prefetch=1,                               # per-tile edge counts -> SMEM
            grid=(npad // tm, npad // tk),
            in_specs=[pl.BlockSpec((tm, H), lambda i, j, c: (i, 0)),    # er   (dst tile)
                      pl.BlockSpec((H, tk), lambda i, j, c: (0, j)),    # el^T (src tile)
                      pl.BlockSpec((tm, tk), lambda i, j, c: (i, j)),   # adj tile [dst, src] int8
                      z_spec,                                           # z (resident or src tile)
                      pl.BlockSpec((1, HF), lambda i, j, c: (0, 0))],   # bias (resident)
            out_specs=pl.BlockSpec((tm, ow), lambda i, j, c: (i, 0)),
            scratch_shapes=[pltpu.VMEM((tm, H), jnp.float32),    # running max  m
                            pltpu.VMEM((tm, H), jnp.float32),    # running sum  l
                            pltpu.VMEM((tm, HF), jnp.float32)]), # running numerator
        compiler_params=pltpu.CompilerParams(
            dimension_semantics=("parallel", "arbitrary"),
            vmem_limit_bytes=vmem_limit),
    )(counts, er, elT, adjp, z, bias)


def gat_forward(params, adj, features):
    """Inference-mode forward (dropout = identity).  adj[dst, src] dense 0/1 with self-loops."""
    n = features.shape[0]
    npad, tm, tk = _tiles(n)
    pad_n = npad - n
    adjp = jnp.pad((adj != 0).astype(jnp.int8), ((0, pad_n), (0, pad_n)))
    ndt, nst = npad // tm, npad // tk
    # per-(dst-tile, src-tile) edge counts, shared by every layer (scalar-prefetched)
    counts = jnp.sum((adjp != 0).reshape(ndt, tm, nst, tk), axis=(1, 3)).astype(jnp.int32)
    h = jnp.pad(features.astype(jnp.bfloat16), ((0, pad_n), (0, 0)))
    n_layers = len(params)
    for li, layer in enumerate(params):
        epi = "log_softmax" if li == n_layers - 1 else "relu"
        h = gat_conv(h, layer, adjp, counts, tm, tk, epilogue=epi)
        # TODO(synk): F.dropout(p=0.5) between hidden layers skipped — module in eval mode.
    # TODO(synk): for very large sparse graphs, replace the dense adjacency stream with a CSR
    # neighbor-list + scalar-prefetch gather so HBM traffic scales with edges, not N^2.
    return h[:n]


# ----------------------------------------------------------------------------
# Pure-JAX reference (dense DGL GATConv semantics) for correctness checking
# ----------------------------------------------------------------------------
def gat_reference(params, adj, features):
    mask = (adj != 0)
    h = features
    n_layers = len(params)
    for li, layer in enumerate(params):
        H, F = layer["heads"], layer["out_feats"]
        n = h.shape[0]
        z = (h @ layer["W"]).reshape(n, H, F)
        el = jnp.einsum("nhf,hf->nh", z, layer["attn_l"])
        er = jnp.einsum("nhf,hf->nh", z, layer["attn_r"])
        e = er[:, None, :] + el[None, :, :]                    # e[dst, src, head]
        e = jnp.where(e > 0, e, 0.2 * e)
        s = jnp.where(mask[:, :, None], e, -1e30)
        a = jnp.where(mask[:, :, None], jax.nn.softmax(s, axis=1), 0.0)
        out = jnp.einsum("dsh,shf->dhf", a, z) + layer["bias"][None]
        if li == n_layers - 1:
            h = jax.nn.log_softmax(out.mean(axis=1), axis=-1)
        else:
            h = jax.nn.relu(out.reshape(n, H * F))
    return h


# ----------------------------------------------------------------------------
# Parameters (deterministic synthetic, matching the module's shapes)
# ----------------------------------------------------------------------------
def init_gat_params(key, in_size, hid_size, out_size, heads, num_layers):
    layer_dims = [(in_size, hid_size, heads)]
    for _ in range(num_layers - 2):
        layer_dims.append((hid_size * heads, hid_size, heads))
    layer_dims.append((hid_size * heads, out_size, 1))

    params = []
    for (din, dout, h) in layer_dims:
        key, k1, k2, k3, k4 = jax.random.split(key, 5)
        params.append(dict(
            W=0.1 * jax.random.normal(k1, (din, h * dout), jnp.float32),
            attn_l=0.1 * jax.random.normal(k2, (h, dout), jnp.float32),
            attn_r=0.1 * jax.random.normal(k3, (h, dout), jnp.float32),
            bias=0.1 * jax.random.normal(k4, (h, dout), jnp.float32),
            heads=h,
            out_feats=dout,
        ))
    return params


def _ring_graph(n):
    """Deterministic graph: ring + self-loops, dense adjacency adj[dst, src]."""
    idx = jnp.arange(n)
    adj = jnp.zeros((n, n), jnp.float32)
    adj = adj.at[idx, idx].set(1.0)
    adj = adj.at[idx, (idx + 1) % n].set(1.0)
    adj = adj.at[idx, (idx - 1) % n].set(1.0)
    return adj


# ----------------------------------------------------------------------------
# Demo
# ----------------------------------------------------------------------------
if __name__ == "__main__":
    in_size, hid_size, out_size, heads, num_layers = 16, 8, 4, 2, 3

    key = jax.random.PRNGKey(0)
    kf1, kf2, kp = jax.random.split(key, 3)
    params = init_gat_params(kp, in_size, hid_size, out_size, heads, num_layers)

    fwd = jax.jit(functools.partial(gat_forward, params))
    ref = jax.jit(functools.partial(gat_reference, params))

    # Small graph: exercises the single-src-tile / streamed-z path.
    N1 = 32
    adj1 = _ring_graph(N1)
    x1 = jax.random.normal(kf1, (N1, in_size), jnp.float32)
    out1 = fwd(adj1, x1)
    jax.block_until_ready(out1)
    assert out1.shape == (N1, out_size)
    assert bool(jnp.all(jnp.isfinite(out1)))
    assert jnp.allclose(jnp.sum(jnp.exp(out1), axis=1), 1.0, atol=1e-4)
    assert jnp.allclose(out1, ref(adj1, x1), atol=5e-2)

    # Medium graph: exercises TM=512/TK=1024 tiling, VMEM-resident z and block-sparse tile skip.
    N2 = 1100
    adj2 = _ring_graph(N2)
    x2 = jax.random.normal(kf2, (N2, in_size), jnp.float32)
    out2 = fwd(adj2, x2)
    jax.block_until_ready(out2)
    assert out2.shape == (N2, out_size)
    assert bool(jnp.all(jnp.isfinite(out2)))
    assert jnp.allclose(jnp.sum(jnp.exp(out2), axis=1), 1.0, atol=1e-4)
    assert jnp.allclose(out2, ref(adj2, x2), atol=5e-2)

    print("KERNEL_OK")
</pallas_src>

<mosaic_0001>
module attributes {stable_mosaic.version = 11 : i64} {
  func.func @_gat_project_kernel(%arg0: i32, %arg1: memref<128x16xbf16, #tpu.memory_space<vmem>>, %arg2: memref<16x18xbf16, #tpu.memory_space<vmem>>, %arg3: memref<2x16xbf16, #tpu.memory_space<vmem>>, %arg4: memref<128x16xbf16, #tpu.memory_space<vmem>>, %arg5: memref<2x128xf32, #tpu.memory_space<vmem>>, %arg6: memref<128x2xf32, #tpu.memory_space<vmem>>) attributes {dimension_semantics = [#tpu.dimension_semantics<parallel>], iteration_bounds = array<i64: 1>, scalar_prefetch = 0 : i64, scratch_operands = 0 : i64, tpu.core_type = #tpu.core_type<tc>, window_params = [{transform_indices = @transform_0, window_bounds = array<i64: 128, 16>}, {pipeline_mode = #tpu.pipeline_mode<synchronous>, transform_indices = @transform_1, window_bounds = array<i64: 16, 18>}, {pipeline_mode = #tpu.pipeline_mode<synchronous>, transform_indices = @transform_2, window_bounds = array<i64: 2, 16>}, {transform_indices = @transform_3, window_bounds = array<i64: 128, 16>}, {transform_indices = @transform_4, window_bounds = array<i64: 2, 128>}, {transform_indices = @transform_5, window_bounds = array<i64: 128, 2>}]} {
    %c0 = arith.constant 0 : index
    %c0_0 = arith.constant 0 : index
    %0 = vector.load %arg1[%c0, %c0_0] : memref<128x16xbf16, #tpu.memory_space<vmem>>, vector<128x16xbf16>
    %c0_1 = arith.constant 0 : index
    %c0_2 = arith.constant 0 : index
    %1 = vector.load %arg2[%c0_1, %c0_2] : memref<16x18xbf16, #tpu.memory_space<vmem>>, vector<16x18xbf16>
    %cst = arith.constant dense<0.000000e+00> : vector<128x18xf32>
    %2 = tpu.matmul %0, %1, %cst {dimension_numbers = #tpu.dot_dimension_numbers<[1], [0], [0], [1], [0, 0, 1, 1], [], []>} : vector<128x16xbf16>, vector<16x18xbf16>, vector<128x18xf32> -> vector<128x18xf32>
    %3 = vector.extract_strided_slice %2 {offsets = [0, 0], sizes = [128, 16], strides = [1, 1]} : vector<128x18xf32> to vector<128x16xf32>
    %4 = arith.truncf %3 : vector<128x16xf32> to vector<128x16xbf16>
    %c0_3 = arith.constant 0 : index
    %c0_4 = arith.constant 0 : index
    %5 = vector.load %arg4[%c0_3, %c0_4] : memref<128x16xbf16, #tpu.memory_space<vmem>>, vector<128x16xbf16>
    tpu.vector_store %arg4[%c0_3, %c0_4], %4 {strides = array<i32>} : memref<128x16xbf16, #tpu.memory_space<vmem>>, vector<128x16xbf16>,
    %6 = vector.extract_strided_slice %2 {offsets = [0, 16], sizes = [128, 2], strides = [1, 1]} : vector<128x18xf32> to vector<128x2xf32>
    %c0_5 = arith.constant 0 : index
    %c0_6 = arith.constant 0 : index
    %7 = vector.load %arg6[%c0_5, %c0_6] : memref<128x2xf32, #tpu.memory_space<vmem>>, vector<128x2xf32>
    tpu.vector_store %arg6[%c0_5, %c0_6], %6 {strides = array<i32>} : memref<128x2xf32, #tpu.memory_space<vmem>>, vector<128x2xf32>,
    %c0_7 = arith.constant 0 : index
    %c0_8 = arith.constant 0 : index
    %8 = vector.load %arg3[%c0_7, %c0_8] : memref<2x16xbf16, #tpu.memory_space<vmem>>, vector<2x16xbf16>
    %cst_9 = arith.constant dense<0.000000e+00> : vector<2x128xf32>
    %9 = tpu.matmul %8, %0, %cst_9 {dimension_numbers = #tpu.dot_dimension_numbers<[1], [1], [0], [0], [0, 0, 1, 0], [], []>} : vector<2x16xbf16>, vector<128x16xbf16>, vector<2x128xf32> -> vector<2x128xf32>
    %c0_10 = arith.constant 0 : index
    %c0_11 = arith.constant 0 : index
    %10 = vector.load %arg5[%c0_10, %c0_11] : memref<2x128xf32, #tpu.memory_space<vmem>>, vector<2x128xf32>
    tpu.vector_store %arg5[%c0_10, %c0_11], %9 {strides = array<i32>} : memref<2x128xf32, #tpu.memory_space<vmem>>, vector<2x128xf32>,
    return
  }
  func.func @transform_0(%arg0: i32) -> (i32, i32) {
    %c0_i32 = arith.constant 0 : i32
    %c0_i32_0 = arith.constant 0 : i32
    return %arg0, %c0_i32 : i32, i32
  }
  func.func @transform_1(%arg0: i32) -> (i32, i32) {
    %c0_i32 = arith.constant 0 : i32
    %c0_i32_0 = arith.constant 0 : i32
    %c0_i32_1 = arith.constant 0 : i32
    return %c0_i32, %c0_i32_0 : i32, i32
  }
  func.func @transform_2(%arg0: i32) -> (i32, i32) {
    %c0_i32 = arith.constant 0 : i32
    %c0_i32_0 = arith.constant 0 : i32
    %c0_i32_1 = arith.constant 0 : i32
    return %c0_i32, %c0_i32_0 : i32, i32
  }
  func.func @transform_3(%arg0: i32) -> (i32, i32) {
    %c0_i32 = arith.constant 0 : i32
    %c0_i32_0 = arith.constant 0 : i32
    return %arg0, %c0_i32 : i32, i32
  }
  func.func @transform_4(%arg0: i32) -> (i32, i32) {
    %c0_i32 = arith.constant 0 : i32
    %c0_i32_0 = arith.constant 0 : i32
    return %c0_i32, %arg0 : i32, i32
  }
  func.func @transform_5(%arg0: i32) -> (i32, i32) {
    %c0_i32 = arith.constant 0 : i32
    %c0_i32_0 = arith.constant 0 : i32
    return %arg0, %c0_i32 : i32, i32
  }
}

module attributes {stable_mosaic.version = 11 : i64} {
  func.func @_gat_attn_kernel(%arg0: i32, %arg1: i32, %arg2: memref<2x1xi32, #tpu.memory_space<smem>>, %arg3: memref<64x2xf32, #tpu.memory_space<vmem>>, %arg4: memref<2x128xf32, #tpu.memory_space<vmem>>, %arg5: memref<64x128xi8, #tpu.memory_space<vmem>>, %arg6: memref<128x16xbf16, #tpu.memory_space<vmem>>, %arg7: memref<1x16xf32, #tpu.memory_space<vmem>>, %arg8: memref<64x16xbf16, #tpu.memory_space<vmem>>, %arg9: memref<64x2xf32, #tpu.memory_space<vmem>>, %arg10: memref<64x2xf32, #tpu.memory_space<vmem>>, %arg11: memref<64x16xf32, #tpu.memory_space<vmem>>) attributes {dimension_semantics = [#tpu.dimension_semantics<parallel>, #tpu.dimension_semantics<arbitrary>], iteration_bounds = array<i64: 2, 1>, scalar_prefetch = 1 : i64, scratch_operands = 3 : i64, tpu.core_type = #tpu.core_type<tc>, window_params = [{transform_indices = @transform_0, window_bounds = array<i64: 64, 2>}, {transform_indices = @transform_1, window_bounds = array<i64: 2, 128>}, {transform_indices = @transform_2, window_bounds = array<i64: 64, 128>}, {transform_indices = @transform_3, window_bounds = array<i64: 128, 16>}, {pipeline_mode = #tpu.pipeline_mode<synchronous>, transform_indices = @transform_4, window_bounds = array<i64: 1, 16>}, {transform_indices = @transform_5, window_bounds = array<i64: 64, 16>}]} {
    %c0_i32 = arith.constant 0 : i32
    %0 = arith.cmpi eq, %arg1, %c0_i32 : i32
    %1 = arith.extui %0 : i1 to i32
    %cst = arith.constant -1.000000e+30 : f32
    %c0_i32_0 = arith.constant 0 : i32
    %2 = arith.cmpi ne, %1, %c0_i32_0 : i32
    scf.if %2 {
      %12 = vector.broadcast %cst : f32 to vector<64x2xf32>
      %c0 = arith.constant 0 : index
      %c0_5 = arith.constant 0 : index
      %13 = vector.load %arg9[%c0, %c0_5] : memref<64x2xf32, #tpu.memory_space<vmem>>, vector<64x2xf32>
      tpu.vector_store %arg9[%c0, %c0_5], %12 {strides = array<i32>} : memref<64x2xf32, #tpu.memory_space<vmem>>, vector<64x2xf32>,
      %cst_6 = arith.constant 0.000000e+00 : f32
      %14 = vector.broadcast %cst_6 : f32 to vector<64x2xf32>
      %c0_7 = arith.constant 0 : index
      %c0_8 = arith.constant 0 : index
      %15 = vector.load %arg10[%c0_7, %c0_8] : memref<64x2xf32, #tpu.memory_space<vmem>>, vector<64x2xf32>
      tpu.vector_store %arg10[%c0_7, %c0_8], %14 {strides = array<i32>} : memref<64x2xf32, #tpu.memory_space<vmem>>, vector<64x2xf32>,
      %cst_9 = arith.constant 0.000000e+00 : f32
      %16 = vector.broadcast %cst_9 : f32 to vector<64x16xf32>
      %c0_10 = arith.constant 0 : index
      %c0_11 = arith.constant 0 : index
      %17 = vector.load %arg11[%c0_10, %c0_11] : memref<64x16xf32, #tpu.memory_space<vmem>>, vector<64x16xf32>
      tpu.vector_store %arg11[%c0_10, %c0_11], %16 {strides = array<i32>} : memref<64x16xf32, #tpu.memory_space<vmem>>, vector<64x16xf32>,
    } else {
    }
    %3 = arith.index_cast %arg0 : i32 to index
    %4 = arith.index_cast %arg1 : i32 to index
    %5 = memref.load %arg2[%3, %4] : memref<2x1xi32, #tpu.memory_space<smem>>
    %c0_i32_1 = arith.constant 0 : i32
    %6 = arith.cmpi sgt, %5, %c0_i32_1 : i32
    %7 = arith.extui %6 : i1 to i32
    %c0_i32_2 = arith.constant 0 : i32
    %8 = arith.cmpi ne, %7, %c0_i32_2 : i32
    scf.if %8 {
      %c0 = arith.constant 0 : index
      %c0_5 = arith.constant 0 : index
      %12 = vector.load %arg5[%c0, %c0_5] : memref<64x128xi8, #tpu.memory_space<vmem>>, vector<64x128xi8>
      %c0_i8 = arith.constant 0 : i8
      %13 = vector.broadcast %c0_i8 : i8 to vector<64x128xi8>
      %14 = arith.cmpi ne, %12, %13 : vector<64x128xi8>
      %15 = arith.extui %14 : vector<64x128xi1> to vector<64x128xi32>
      %16 = arith.sitofp %15 : vector<64x128xi32> to vector<64x128xf32>
      %cst_6 = arith.constant 1.000000e+00 : f32
      %17 = vector.broadcast %cst_6 : f32 to vector<64x128xf32>
      %18 = arith.subf %16, %17 : vector<64x128xf32>
      %cst_7 = arith.constant 1.000000e+30 : f32
      %19 = vector.broadcast %cst_7 : f32 to vector<64x128xf32>
      %20 = arith.mulf %18, %19 : vector<64x128xf32>
      %c0_8 = arith.constant 0 : index
      %c0_9 = arith.constant 0 : index
      %21 = vector.load %arg6[%c0_8, %c0_9] : memref<128x16xbf16, #tpu.memory_space<vmem>>, vector<128x16xbf16>
      %c0_10 = arith.constant 0 : index
      %c0_11 = arith.constant 0 : index
      %22 = vector.load %arg3[%c0_10, %c0_11] : memref<64x2xf32, #tpu.memory_space<vmem>>, vector<64x2xf32>
      %c0_12 = arith.constant 0 : index
      %c0_13 = arith.constant 0 : index
      %23 = vector.load %arg4[%c0_12, %c0_13] : memref<2x128xf32, #tpu.memory_space<vmem>>, vector<2x128xf32>
      %24 = vector.extract_strided_slice %22 {offsets = [0, 0], sizes = [64, 1], strides = [1, 1]} : vector<64x2xf32> to vector<64x1xf32>
      %25 = vector.extract_strided_slice %23 {offsets = [0, 0], sizes = [1, 128], strides = [1, 1]} : vector<2x128xf32> to vector<1x128xf32>
      %26 = vector.broadcast %24 : vector<64x1xf32> to vector<64x128xf32>
      %27 = vector.broadcast %25 : vector<1x128xf32> to vector<64x128xf32>
      %28 = arith.addf %26, %27 : vector<64x128xf32>
      %cst_14 = arith.constant 2.000000e-01 : f32
      %29 = vector.broadcast %cst_14 : f32 to vector<64x128xf32>
      %30 = arith.mulf %29, %28 : vector<64x128xf32>
      %31 = arith.maximumf %28, %30 : vector<64x128xf32>
      %32 = arith.addf %31, %20 : vector<64x128xf32>
      %c0_15 = arith.constant 0 : index
      %c0_16 = arith.constant 0 : index
      %33 = vector.load %arg9[%c0_15, %c0_16] : memref<64x2xf32, #tpu.memory_space<vmem>>, vector<64x1xf32>
      %cst_17 = arith.constant dense<0xFF800000> : vector<64xf32>
      %34 = vector.multi_reduction <maximumf>, %32, %cst_17 [1] : vector<64x128xf32> to vector<64xf32>
      %35 = vector.shape_cast %34 : vector<64xf32> to vector<64x1xf32>
      %36 = arith.maximumf %33, %35 : vector<64x1xf32>
      %37 = vector.broadcast %36 : vector<64x1xf32> to vector<64x128xf32>
      %38 = arith.subf %32, %37 : vector<64x128xf32>
      %39 = math.exp %38 : vector<64x128xf32>
      %40 = arith.mulf %39, %16 : vector<64x128xf32>
      %41 = arith.subf %33, %36 : vector<64x1xf32>
      %42 = math.exp %41 : vector<64x1xf32>
      %c0_18 = arith.constant 0 : index
      %c0_19 = arith.constant 0 : index
      %43 = vector.load %arg10[%c0_18, %c0_19] : memref<64x2xf32, #tpu.memory_space<vmem>>, vector<64x1xf32>
      %44 = arith.mulf %42, %43 : vector<64x1xf32>
      %cst_20 = arith.constant dense<0.000000e+00> : vector<64xf32>
      %45 = vector.multi_reduction <add>, %40, %cst_20 [1] : vector<64x128xf32> to vector<64xf32>
      %46 = vector.shape_cast %45 : vector<64xf32> to vector<64x1xf32>
      %47 = arith.addf %44, %46 : vector<64x1xf32>
      %c0_21 = arith.constant 0 : index
      %c0_22 = arith.constant 0 : index
      %48 = vector.load %arg10[%c0_21, %c0_22] : memref<64x2xf32, #tpu.memory_space<vmem>>, vector<64x1xf32>
      tpu.vector_store %arg10[%c0_21, %c0_22], %47 {strides = array<i32>} : memref<64x2xf32, #tpu.memory_space<vmem>>, vector<64x1xf32>,
      %c0_23 = arith.constant 0 : index
      %c0_24 = arith.constant 0 : index
      %49 = vector.load %arg11[%c0_23, %c0_24] : memref<64x16xf32, #tpu.memory_space<vmem>>, vector<64x8xf32>
      %50 = vector.broadcast %42 : vector<64x1xf32> to vector<64x8xf32>
      %51 = arith.mulf %50, %49 : vector<64x8xf32>
      %52 = arith.truncf %40 : vector<64x128xf32> to vector<64x128xbf16>
      %53 = vector.extract_strided_slice %21 {offsets = [0, 0], sizes = [128, 8], strides = [1, 1]} : vector<128x16xbf16> to vector<128x8xbf16>
      %cst_25 = arith.constant dense<0.000000e+00> : vector<64x8xf32>
      %54 = tpu.matmul %52, %53, %cst_25 {dimension_numbers = #tpu.dot_dimension_numbers<[1], [0], [0], [1], [0, 0, 1, 1], [], []>} : vector<64x128xbf16>, vector<128x8xbf16>, vector<64x8xf32> -> vector<64x8xf32>
      %55 = arith.addf %51, %54 : vector<64x8xf32>
      %c0_26 = arith.constant 0 : index
      %c0_27 = arith.constant 0 : index
      %56 = vector.load %arg11[%c0_26, %c0_27] : memref<64x16xf32, #tpu.memory_space<vmem>>, vector<64x8xf32>
      tpu.vector_store %arg11[%c0_26, %c0_27], %55 {strides = array<i32>} : memref<64x16xf32, #tpu.memory_space<vmem>>, vector<64x8xf32>,
      %c0_28 = arith.constant 0 : index
      %c0_29 = arith.constant 0 : index
      %57 = vector.load %arg9[%c0_28, %c0_29] : memref<64x2xf32, #tpu.memory_space<vmem>>, vector<64x1xf32>
      tpu.vector_store %arg9[%c0_28, %c0_29], %36 {strides = array<i32>} : memref<64x2xf32, #tpu.memory_space<vmem>>, vector<64x1xf32>,
      %58 = vector.extract_strided_slice %22 {offsets = [0, 1], sizes = [64, 1], strides = [1, 1]} : vector<64x2xf32> to vector<64x1xf32>
      %59 = vector.extract_strided_slice %23 {offsets = [1, 0], sizes = [1, 128], strides = [1, 1]} : vector<2x128xf32> to vector<1x128xf32>
      %60 = vector.broadcast %58 : vector<64x1xf32> to vector<64x128xf32>
      %61 = vector.broadcast %59 : vector<1x128xf32> to vector<64x128xf32>
      %62 = arith.addf %60, %61 : vector<64x128xf32>
      %cst_30 = arith.constant 2.000000e-01 : f32
      %63 = vector.broadcast %cst_30 : f32 to vector<64x128xf32>
      %64 = arith.mulf %63, %62 : vector<64x128xf32>
      %65 = arith.maximumf %62, %64 : vector<64x128xf32>
      %66 = arith.addf %65, %20 : vector<64x128xf32>
      %c0_31 = arith.constant 0 : index
      %c1 = arith.constant 1 : index
      %67 = vector.load %arg9[%c0_31, %c1] : memref<64x2xf32, #tpu.memory_space<vmem>>, vector<64x1xf32>
      %cst_32 = arith.constant dense<0xFF800000> : vector<64xf32>
      %68 = vector.multi_reduction <maximumf>, %66, %cst_32 [1] : vector<64x128xf32> to vector<64xf32>
      %69 = vector.shape_cast %68 : vector<64xf32> to vector<64x1xf32>
      %70 = arith.maximumf %67, %69 : vector<64x1xf32>
      %71 = vector.broadcast %70 : vector<64x1xf32> to vector<64x128xf32>
      %72 = arith.subf %66, %71 : vector<64x128xf32>
      %73 = math.exp %72 : vector<64x128xf32>
      %74 = arith.mulf %73, %16 : vector<64x128xf32>
      %75 = arith.subf %67, %70 : vector<64x1xf32>
      %76 = math.exp %75 : vector<64x1xf32>
      %c0_33 = arith.constant 0 : index
      %c1_34 = arith.constant 1 : index
      %77 = vector.load %arg10[%c0_33, %c1_34] : memref<64x2xf32, #tpu.memory_space<vmem>>, vector<64x1xf32>
      %78 = arith.mulf %76, %77 : vector<64x1xf32>
      %cst_35 = arith.constant dense<0.000000e+00> : vector<64xf32>
      %79 = vector.multi_reduction <add>, %74, %cst_35 [1] : vector<64x128xf32> to vector<64xf32>
      %80 = vector.shape_cast %79 : vector<64xf32> to vector<64x1xf32>
      %81 = arith.addf %78, %80 : vector<64x1xf32>
      %c0_36 = arith.constant 0 : index
      %c1_37 = arith.constant 1 : index
      %82 = vector.load %arg10[%c0_36, %c1_37] : memref<64x2xf32, #tpu.memory_space<vmem>>, vector<64x1xf32>
      tpu.vector_store %arg10[%c0_36, %c1_37], %81 {strides = array<i32>} : memref<64x2xf32, #tpu.memory_space<vmem>>, vector<64x1xf32>,
      %c0_38 = arith.constant 0 : index
      %c8 = arith.constant 8 : index
      %83 = vector.load %arg11[%c0_38, %c8] : memref<64x16xf32, #tpu.memory_space<vmem>>, vector<64x8xf32>
      %84 = vector.broadcast %76 : vector<64x1xf32> to vector<64x8xf32>
      %85 = arith.mulf %84, %83 : vector<64x8xf32>
      %86 = arith.truncf %74 : vector<64x128xf32> to vector<64x128xbf16>
      %87 = vector.extract_strided_slice %21 {offsets = [0, 8], sizes = [128, 8], strides = [1, 1]} : vector<128x16xbf16> to vector<128x8xbf16>
      %cst_39 = arith.constant dense<0.000000e+00> : vector<64x8xf32>
      %88 = tpu.matmul %86, %87, %cst_39 {dimension_numbers = #tpu.dot_dimension_numbers<[1], [0], [0], [1], [0, 0, 1, 1], [], []>} : vector<64x128xbf16>, vector<128x8xbf16>, vector<64x8xf32> -> vector<64x8xf32>
      %89 = arith.addf %85, %88 : vector<64x8xf32>
      %c0_40 = arith.constant 0 : index
      %c8_41 = arith.constant 8 : index
      %90 = vector.load %arg11[%c0_40, %c8_41] : memref<64x16xf32, #tpu.memory_space<vmem>>, vector<64x8xf32>
      tpu.vector_store %arg11[%c0_40, %c8_41], %89 {strides = array<i32>} : memref<64x16xf32, #tpu.memory_space<vmem>>, vector<64x8xf32>,
      %c0_42 = arith.constant 0 : index
      %c1_43 = arith.constant 1 : index
      %91 = vector.load %arg9[%c0_42, %c1_43] : memref<64x2xf32, #tpu.memory_space<vmem>>, vector<64x1xf32>
      tpu.vector_store %arg9[%c0_42, %c1_43], %70 {strides = array<i32>} : memref<64x2xf32, #tpu.memory_space<vmem>>, vector<64x1xf32>,
    } else {
    }
    %c0_i32_3 = arith.constant 0 : i32
    %9 = arith.cmpi eq, %arg1, %c0_i32_3 : i32
    %10 = arith.extui %9 : i1 to i32
    %c0_i32_4 = arith.constant 0 : i32
    %11 = arith.cmpi ne, %10, %c0_i32_4 : i32
    scf.if %11 {
      %c0 = arith.constant 0 : index
      %c0_5 = arith.constant 0 : index
      %12 = vector.load %arg7[%c0, %c0_5] : memref<1x16xf32, #tpu.memory_space<vmem>>, vector<1x16xf32>
      %c0_6 = arith.constant 0 : index
      %c0_7 = arith.constant 0 : index
      %13 = vector.load %arg10[%c0_6, %c0_7] : memref<64x2xf32, #tpu.memory_space<vmem>>, vector<64x1xf32>
      %cst_8 = arith.constant 9.99999968E-21 : f32
      %14 = vector.broadcast %cst_8 : f32 to vector<64x1xf32>
      %15 = arith.maximumf %13, %14 : vector<64x1xf32>
      %cst_9 = arith.constant 1.000000e+00 : f32
      %16 = vector.broadcast %cst_9 : f32 to vector<64x1xf32>
      %17 = arith.divf %16, %15 : vector<64x1xf32>
      %c0_10 = arith.constant 0 : index
      %c0_11 = arith.constant 0 : index
      %18 = vector.load %arg11[%c0_10, %c0_11] : memref<64x16xf32, #tpu.memory_space<vmem>>, vector<64x8xf32>
      %19 = vector.broadcast %17 : vector<64x1xf32> to vector<64x8xf32>
      %20 = arith.mulf %18, %19 : vector<64x8xf32>
      %21 = vector.extract_strided_slice %12 {offsets = [0, 0], sizes = [1, 8], strides = [1, 1]} : vector<1x16xf32> to vector<1x8xf32>
      %22 = vector.broadcast %21 : vector<1x8xf32> to vector<64x8xf32>
      %23 = arith.addf %20, %22 : vector<64x8xf32>
      %c0_12 = arith.constant 0 : index
      %c1 = arith.constant 1 : index
      %24 = vector.load %arg10[%c0_12, %c1] : memref<64x2xf32, #tpu.memory_space<vmem>>, vector<64x1xf32>
      %cst_13 = arith.constant 9.99999968E-21 : f32
      %25 = vector.broadcast %cst_13 : f32 to vector<64x1xf32>
      %26 = arith.maximumf %24, %25 : vector<64x1xf32>
      %cst_14 = arith.constant 1.000000e+00 : f32
      %27 = vector.broadcast %cst_14 : f32 to vector<64x1xf32>
      %28 = arith.divf %27, %26 : vector<64x1xf32>
      %c0_15 = arith.constant 0 : index
      %c8 = arith.constant 8 : index
      %29 = vector.load %arg11[%c0_15, %c8] : memref<64x16xf32, #tpu.memory_space<vmem>>, vector<64x8xf32>
      %30 = vector.broadcast %28 : vector<64x1xf32> to vector<64x8xf32>
      %31 = arith.mulf %29, %30 : vector<64x8xf32>
      %32 = vector.extract_strided_slice %12 {offsets = [0, 8], sizes = [1, 8], strides = [1, 1]} : vector<1x16xf32> to vector<1x8xf32>
      %33 = vector.broadcast %32 : vector<1x8xf32> to vector<64x8xf32>
      %34 = arith.addf %31, %33 : vector<64x8xf32>
      %35 = tpu.concatenate %23, %34 in 1 : vector<64x8xf32>, vector<64x8xf32> -> vector<64x16xf32>
      %cst_16 = arith.constant 0.000000e+00 : f32
      %36 = vector.broadcast %cst_16 : f32 to vector<64x16xf32>
      %37 = arith.maximumf %35, %36 : vector<64x16xf32>
      %38 = arith.truncf %37 : vector<64x16xf32> to vector<64x16xbf16>
      %c0_17 = arith.constant 0 : index
      %c0_18 = arith.constant 0 : index
      %39 = vector.load %arg8[%c0_17, %c0_18] : memref<64x16xbf16, #tpu.memory_space<vmem>>, vector<64x16xbf16>
      tpu.vector_store %arg8[%c0_17, %c0_18], %38 {strides = array<i32>} : memref<64x16xbf16, #tpu.memory_space<vmem>>, vector<64x16xbf16>,
    } else {
    }
    return
  }
  func.func @transform_0(%arg0: i32, %arg1: i32, %arg2: memref<2x1xi32, #tpu.memory_space<smem>>) -> (i32, i32) {
    %c0_i32 = arith.constant 0 : i32
    %c0_i32_0 = arith.constant 0 : i32
    return %arg0, %c0_i32 : i32, i32
  }
  func.func @transform_1(%arg0: i32, %arg1: i32, %arg2: memref<2x1xi32, #tpu.memory_space<smem>>) -> (i32, i32) {
    %c0_i32 = arith.constant 0 : i32
    %c0_i32_0 = arith.constant 0 : i32
    return %c0_i32, %arg1 : i32, i32
  }
  func.func @transform_2(%arg0: i32, %arg1: i32, %arg2: memref<2x1xi32, #tpu.memory_space<smem>>) -> (i32, i32) {
    %c0_i32 = arith.constant 0 : i32
    return %arg0, %arg1 : i32, i32
  }
  func.func @transform_3(%arg0: i32, %arg1: i32, %arg2: memref<2x1xi32, #tpu.memory_space<smem>>) -> (i32, i32) {
    %c0_i32 = arith.constant 0 : i32
    %c0_i32_0 = arith.constant 0 : i32
    return %arg1, %c0_i32 : i32, i32
  }
  func.func @transform_4(%arg0: i32, %arg1: i32, %arg2: memref<2x1xi32, #tpu.memory_space<smem>>) -> (i32, i32) {
    %c0_i32 = arith.constant 0 : i32
    %c0_i32_0 = arith.constant 0 : i32
    %c0_i32_1 = arith.constant 0 : i32
    return %c0_i32, %c0_i32_0 : i32, i32
  }
  func.func @transform_5(%arg0: i32, %arg1: i32, %arg2: memref<2x1xi32, #tpu.memory_space<smem>>) -> (i32, i32) {
    %c0_i32 = arith.constant 0 : i32
    %c0_i32_0 = arith.constant 0 : i32
    return %arg0, %c0_i32 : i32, i32
  }
}

module attributes {stable_mosaic.version = 11 : i64} {
  func.func @_gat_project_kernel(%arg0: i32, %arg1: memref<128x16xbf16, #tpu.memory_space<vmem>>, %arg2: memref<16x5xbf16, #tpu.memory_space<vmem>>, %arg3: memref<1x16xbf16, #tpu.memory_space<vmem>>, %arg4: memref<128x4xbf16, #tpu.memory_space<vmem>>, %arg5: memref<1x128xf32, #tpu.memory_space<vmem>>, %arg6: memref<128x1xf32, #tpu.memory_space<vmem>>) attributes {dimension_semantics = [#tpu.dimension_semantics<parallel>], iteration_bounds = array<i64: 1>, scalar_prefetch = 0 : i64, scratch_operands = 0 : i64, tpu.core_type = #tpu.core_type<tc>, window_params = [{transform_indices = @transform_0, window_bounds = array<i64: 128, 16>}, {pipeline_mode = #tpu.pipeline_mode<synchronous>, transform_indices = @transform_1, window_bounds = array<i64: 16, 5>}, {pipeline_mode = #tpu.pipeline_mode<synchronous>, transform_indices = @transform_2, window_bounds = array<i64: 1, 16>}, {transform_indices = @transform_3, window_bounds = array<i64: 128, 4>}, {transform_indices = @transform_4, window_bounds = array<i64: 1, 128>}, {transform_indices = @transform_5, window_bounds = array<i64: 128, 1>}]} {
    %c0 = arith.constant 0 : index
    %c0_0 = arith.constant 0 : index
    %0 = vector.load %arg1[%c0, %c0_0] : memref<128x16xbf16, #tpu.memory_space<vmem>>, vector<128x16xbf16>
    %c0_1 = arith.constant 0 : index
    %c0_2 = arith.constant 0 : index
    %1 = vector.load %arg2[%c0_1, %c0_2] : memref<16x5xbf16, #tpu.memory_space<vmem>>, vector<16x5xbf16>
    %cst = arith.constant dense<0.000000e+00> : vector<128x5xf32>
    %2 = tpu.matmul %0, %1, %cst {dimension_numbers = #tpu.dot_dimension_numbers<[1], [0], [0], [1], [0, 0, 1, 1], [], []>} : vector<128x16xbf16>, vector<16x5xbf16>, vector<128x5xf32> -> vector<128x5xf32>
    %3 = vector.extract_strided_slice %2 {offsets = [0, 0], sizes = [128, 4], strides = [1, 1]} : vector<128x5xf32> to vector<128x4xf32>
    %4 = arith.truncf %3 : vector<128x4xf32> to vector<128x4xbf16>
    %c0_3 = arith.constant 0 : index
    %c0_4 = arith.constant 0 : index
    %5 = vector.load %arg4[%c0_3, %c0_4] : memref<128x4xbf16, #tpu.memory_space<vmem>>, vector<128x4xbf16>
    tpu.vector_store %arg4[%c0_3, %c0_4], %4 {strides = array<i32>} : memref<128x4xbf16, #tpu.memory_space<vmem>>, vector<128x4xbf16>,
    %6 = vector.extract_strided_slice %2 {offsets = [0, 4], sizes = [128, 1], strides = [1, 1]} : vector<128x5xf32> to vector<128x1xf32>
    %c0_5 = arith.constant 0 : index
    %c0_6 = arith.constant 0 : index
    %7 = vector.load %arg6[%c0_5, %c0_6] : memref<128x1xf32, #tpu.memory_space<vmem>>, vector<128x1xf32>
    tpu.vector_store %arg6[%c0_5, %c0_6], %6 {strides = array<i32>} : memref<128x1xf32, #tpu.memory_space<vmem>>, vector<128x1xf32>,
    %c0_7 = arith.constant 0 : index
    %c0_8 = arith.constant 0 : index
    %8 = vector.load %arg3[%c0_7, %c0_8] : memref<1x16xbf16, #tpu.memory_space<vmem>>, vector<1x16xbf16>
    %cst_9 = arith.constant dense<0.000000e+00> : vector<1x128xf32>
    %9 = tpu.matmul %8, %0, %cst_9 {dimension_numbers = #tpu.dot_dimension_numbers<[1], [1], [0], [0], [0, 0, 1, 0], [], []>} : vector<1x16xbf16>, vector<128x16xbf16>, vector<1x128xf32> -> vector<1x128xf32>
    %c0_10 = arith.constant 0 : index
    %c0_11 = arith.constant 0 : index
    %10 = vector.load %arg5[%c0_10, %c0_11] : memref<1x128xf32, #tpu.memory_space<vmem>>, vector<1x128xf32>
    tpu.vector_store %arg5[%c0_10, %c0_11], %9 {strides = array<i32>} : memref<1x128xf32, #tpu.memory_space<vmem>>, vector<1x128xf32>,
    return
  }
  func.func @transform_0(%arg0: i32) -> (i32, i32) {
    %c0_i32 = arith.constant 0 : i32
    %c0_i32_0 = arith.constant 0 : i32
    return %arg0, %c0_i32 : i32, i32
  }
  func.func @transform_1(%arg0: i32) -> (i32, i32) {
    %c0_i32 = arith.constant 0 : i32
    %c0_i32_0 = arith.constant 0 : i32
    %c0_i32_1 = arith.constant 0 : i32
    return %c0_i32, %c0_i32_0 : i32, i32
  }
  func.func @transform_2(%arg0: i32) -> (i32, i32) {
    %c0_i32 = arith.constant 0 : i32
    %c0_i32_0 = arith.constant 0 : i32
    %c0_i32_1 = arith.constant 0 : i32
    return %c0_i32, %c0_i32_0 : i32, i32
  }
  func.func @transform_3(%arg0: i32) -> (i32, i32) {
    %c0_i32 = arith.constant 0 : i32
    %c0_i32_0 = arith.constant 0 : i32
    return %arg0, %c0_i32 : i32, i32
  }
  func.func @transform_4(%arg0: i32) -> (i32, i32) {
    %c0_i32 = arith.constant 0 : i32
    %c0_i32_0 = arith.constant 0 : i32
    return %c0_i32, %arg0 : i32, i32
  }
  func.func @transform_5(%arg0: i32) -> (i32, i32) {
    %c0_i32 = arith.constant 0 : i32
    %c0_i32_0 = arith.constant 0 : i32
    return %arg0, %c0_i32 : i32, i32
  }
}

module attributes {stable_mosaic.version = 11 : i64} {
  func.func @_gat_attn_kernel(%arg0: i32, %arg1: i32, %arg2: memref<2x1xi32, #tpu.memory_space<smem>>, %arg3: memref<64x1xf32, #tpu.memory_space<vmem>>, %arg4: memref<1x128xf32, #tpu.memory_space<vmem>>, %arg5: memref<64x128xi8, #tpu.memory_space<vmem>>, %arg6: memref<128x4xbf16, #tpu.memory_space<vmem>>, %arg7: memref<1x4xf32, #tpu.memory_space<vmem>>, %arg8: memref<64x4xf32, #tpu.memory_space<vmem>>, %arg9: memref<64x1xf32, #tpu.memory_space<vmem>>, %arg10: memref<64x1xf32, #tpu.memory_space<vmem>>, %arg11: memref<64x4xf32, #tpu.memory_space<vmem>>) attributes {dimension_semantics = [#tpu.dimension_semantics<parallel>, #tpu.dimension_semantics<arbitrary>], iteration_bounds = array<i64: 2, 1>, scalar_prefetch = 1 : i64, scratch_operands = 3 : i64, tpu.core_type = #tpu.core_type<tc>, window_params = [{transform_indices = @transform_0, window_bounds = array<i64: 64, 1>}, {transform_indices = @transform_1, window_bounds = array<i64: 1, 128>}, {transform_indices = @transform_2, window_bounds = array<i64: 64, 128>}, {transform_indices = @transform_3, window_bounds = array<i64: 128, 4>}, {pipeline_mode = #tpu.pipeline_mode<synchronous>, transform_indices = @transform_4, window_bounds = array<i64: 1, 4>}, {transform_indices = @transform_5, window_bounds = array<i64: 64, 4>}]} {
    %c0_i32 = arith.constant 0 : i32
    %0 = arith.cmpi eq, %arg1, %c0_i32 : i32
    %1 = arith.extui %0 : i1 to i32
    %cst = arith.constant -1.000000e+30 : f32
    %c0_i32_0 = arith.constant 0 : i32
    %2 = arith.cmpi ne, %1, %c0_i32_0 : i32
    scf.if %2 {
      %12 = vector.broadcast %cst : f32 to vector<64x1xf32>
      %c0 = arith.constant 0 : index
      %c0_5 = arith.constant 0 : index
      %13 = vector.load %arg9[%c0, %c0_5] : memref<64x1xf32, #tpu.memory_space<vmem>>, vector<64x1xf32>
      tpu.vector_store %arg9[%c0, %c0_5], %12 {strides = array<i32>} : memref<64x1xf32, #tpu.memory_space<vmem>>, vector<64x1xf32>,
      %cst_6 = arith.constant 0.000000e+00 : f32
      %14 = vector.broadcast %cst_6 : f32 to vector<64x1xf32>
      %c0_7 = arith.constant 0 : index
      %c0_8 = arith.constant 0 : index
      %15 = vector.load %arg10[%c0_7, %c0_8] : memref<64x1xf32, #tpu.memory_space<vmem>>, vector<64x1xf32>
      tpu.vector_store %arg10[%c0_7, %c0_8], %14 {strides = array<i32>} : memref<64x1xf32, #tpu.memory_space<vmem>>, vector<64x1xf32>,
      %cst_9 = arith.constant 0.000000e+00 : f32
      %16 = vector.broadcast %cst_9 : f32 to vector<64x4xf32>
      %c0_10 = arith.constant 0 : index
      %c0_11 = arith.constant 0 : index
      %17 = vector.load %arg11[%c0_10, %c0_11] : memref<64x4xf32, #tpu.memory_space<vmem>>, vector<64x4xf32>
      tpu.vector_store %arg11[%c0_10, %c0_11], %16 {strides = array<i32>} : memref<64x4xf32, #tpu.memory_space<vmem>>, vector<64x4xf32>,
    } else {
    }
    %3 = arith.index_cast %arg0 : i32 to index
    %4 = arith.index_cast %arg1 : i32 to index
    %5 = memref.load %arg2[%3, %4] : memref<2x1xi32, #tpu.memory_space<smem>>
    %c0_i32_1 = arith.constant 0 : i32
    %6 = arith.cmpi sgt, %5, %c0_i32_1 : i32
    %7 = arith.extui %6 : i1 to i32
    %c0_i32_2 = arith.constant 0 : i32
    %8 = arith.cmpi ne, %7, %c0_i32_2 : i32
    scf.if %8 {
      %c0 = arith.constant 0 : index
      %c0_5 = arith.constant 0 : index
      %12 = vector.load %arg5[%c0, %c0_5] : memref<64x128xi8, #tpu.memory_space<vmem>>, vector<64x128xi8>
      %c0_i8 = arith.constant 0 : i8
      %13 = vector.broadcast %c0_i8 : i8 to vector<64x128xi8>
      %14 = arith.cmpi ne, %12, %13 : vector<64x128xi8>
      %15 = arith.extui %14 : vector<64x128xi1> to vector<64x128xi32>
      %16 = arith.sitofp %15 : vector<64x128xi32> to vector<64x128xf32>
      %cst_6 = arith.constant 1.000000e+00 : f32
      %17 = vector.broadcast %cst_6 : f32 to vector<64x128xf32>
      %18 = arith.subf %16, %17 : vector<64x128xf32>
      %cst_7 = arith.constant 1.000000e+30 : f32
      %19 = vector.broadcast %cst_7 : f32 to vector<64x128xf32>
      %20 = arith.mulf %18, %19 : vector<64x128xf32>
      %c0_8 = arith.constant 0 : index
      %c0_9 = arith.constant 0 : index
      %21 = vector.load %arg6[%c0_8, %c0_9] : memref<128x4xbf16, #tpu.memory_space<vmem>>, vector<128x4xbf16>
      %c0_10 = arith.constant 0 : index
      %c0_11 = arith.constant 0 : index
      %22 = vector.load %arg3[%c0_10, %c0_11] : memref<64x1xf32, #tpu.memory_space<vmem>>, vector<64x1xf32>
      %c0_12 = arith.constant 0 : index
      %c0_13 = arith.constant 0 : index
      %23 = vector.load %arg4[%c0_12, %c0_13] : memref<1x128xf32, #tpu.memory_space<vmem>>, vector<1x128xf32>
      %24 = vector.broadcast %22 : vector<64x1xf32> to vector<64x128xf32>
      %25 = vector.broadcast %23 : vector<1x128xf32> to vector<64x128xf32>
      %26 = arith.addf %24, %25 : vector<64x128xf32>
      %cst_14 = arith.constant 2.000000e-01 : f32
      %27 = vector.broadcast %cst_14 : f32 to vector<64x128xf32>
      %28 = arith.mulf %27, %26 : vector<64x128xf32>
      %29 = arith.maximumf %26, %28 : vector<64x128xf32>
      %30 = arith.addf %29, %20 : vector<64x128xf32>
      %c0_15 = arith.constant 0 : index
      %c0_16 = arith.constant 0 : index
      %31 = vector.load %arg9[%c0_15, %c0_16] : memref<64x1xf32, #tpu.memory_space<vmem>>, vector<64x1xf32>
      %cst_17 = arith.constant dense<0xFF800000> : vector<64xf32>
      %32 = vector.multi_reduction <maximumf>, %30, %cst_17 [1] : vector<64x128xf32> to vector<64xf32>
      %33 = vector.shape_cast %32 : vector<64xf32> to vector<64x1xf32>
      %34 = arith.maximumf %31, %33 : vector<64x1xf32>
      %35 = vector.broadcast %34 : vector<64x1xf32> to vector<64x128xf32>
      %36 = arith.subf %30, %35 : vector<64x128xf32>
      %37 = math.exp %36 : vector<64x128xf32>
      %38 = arith.mulf %37, %16 : vector<64x128xf32>
      %39 = arith.subf %31, %34 : vector<64x1xf32>
      %40 = math.exp %39 : vector<64x1xf32>
      %c0_18 = arith.constant 0 : index
      %c0_19 = arith.constant 0 : index
      %41 = vector.load %arg10[%c0_18, %c0_19] : memref<64x1xf32, #tpu.memory_space<vmem>>, vector<64x1xf32>
      %42 = arith.mulf %40, %41 : vector<64x1xf32>
      %cst_20 = arith.constant dense<0.000000e+00> : vector<64xf32>
      %43 = vector.multi_reduction <add>, %38, %cst_20 [1] : vector<64x128xf32> to vector<64xf32>
      %44 = vector.shape_cast %43 : vector<64xf32> to vector<64x1xf32>
      %45 = arith.addf %42, %44 : vector<64x1xf32>
      %c0_21 = arith.constant 0 : index
      %c0_22 = arith.constant 0 : index
      %46 = vector.load %arg10[%c0_21, %c0_22] : memref<64x1xf32, #tpu.memory_space<vmem>>, vector<64x1xf32>
      tpu.vector_store %arg10[%c0_21, %c0_22], %45 {strides = array<i32>} : memref<64x1xf32, #tpu.memory_space<vmem>>, vector<64x1xf32>,
      %c0_23 = arith.constant 0 : index
      %c0_24 = arith.constant 0 : index
      %47 = vector.load %arg11[%c0_23, %c0_24] : memref<64x4xf32, #tpu.memory_space<vmem>>, vector<64x4xf32>
      %48 = vector.broadcast %40 : vector<64x1xf32> to vector<64x4xf32>
      %49 = arith.mulf %48, %47 : vector<64x4xf32>
      %50 = arith.truncf %38 : vector<64x128xf32> to vector<64x128xbf16>
      %cst_25 = arith.constant dense<0.000000e+00> : vector<64x4xf32>
      %51 = tpu.matmul %50, %21, %cst_25 {dimension_numbers = #tpu.dot_dimension_numbers<[1], [0], [0], [1], [0, 0, 1, 1], [], []>} : vector<64x128xbf16>, vector<128x4xbf16>, vector<64x4xf32> -> vector<64x4xf32>
      %52 = arith.addf %49, %51 : vector<64x4xf32>
      %c0_26 = arith.constant 0 : index
      %c0_27 = arith.constant 0 : index
      %53 = vector.load %arg11[%c0_26, %c0_27] : memref<64x4xf32, #tpu.memory_space<vmem>>, vector<64x4xf32>
      tpu.vector_store %arg11[%c0_26, %c0_27], %52 {strides = array<i32>} : memref<64x4xf32, #tpu.memory_space<vmem>>, vector<64x4xf32>,
      %c0_28 = arith.constant 0 : index
      %c0_29 = arith.constant 0 : index
      %54 = vector.load %arg9[%c0_28, %c0_29] : memref<64x1xf32, #tpu.memory_space<vmem>>, vector<64x1xf32>
      tpu.vector_store %arg9[%c0_28, %c0_29], %34 {strides = array<i32>} : memref<64x1xf32, #tpu.memory_space<vmem>>, vector<64x1xf32>,
    } else {
    }
    %c0_i32_3 = arith.constant 0 : i32
    %9 = arith.cmpi eq, %arg1, %c0_i32_3 : i32
    %10 = arith.extui %9 : i1 to i32
    %c0_i32_4 = arith.constant 0 : i32
    %11 = arith.cmpi ne, %10, %c0_i32_4 : i32
    scf.if %11 {
      %c0 = arith.constant 0 : index
      %c0_5 = arith.constant 0 : index
      %12 = vector.load %arg7[%c0, %c0_5] : memref<1x4xf32, #tpu.memory_space<vmem>>, vector<1x4xf32>
      %c0_6 = arith.constant 0 : index
      %c0_7 = arith.constant 0 : index
      %13 = vector.load %arg10[%c0_6, %c0_7] : memref<64x1xf32, #tpu.memory_space<vmem>>, vector<64x1xf32>
      %cst_8 = arith.constant 9.99999968E-21 : f32
      %14 = vector.broadcast %cst_8 : f32 to vector<64x1xf32>
      %15 = arith.maximumf %13, %14 : vector<64x1xf32>
      %cst_9 = arith.constant 1.000000e+00 : f32
      %16 = vector.broadcast %cst_9 : f32 to vector<64x1xf32>
      %17 = arith.divf %16, %15 : vector<64x1xf32>
      %c0_10 = arith.constant 0 : index
      %c0_11 = arith.constant 0 : index
      %18 = vector.load %arg11[%c0_10, %c0_11] : memref<64x4xf32, #tpu.memory_space<vmem>>, vector<64x4xf32>
      %19 = vector.broadcast %17 : vector<64x1xf32> to vector<64x4xf32>
      %20 = arith.mulf %18, %19 : vector<64x4xf32>
      %21 = vector.broadcast %12 : vector<1x4xf32> to vector<64x4xf32>
      %22 = arith.addf %20, %21 : vector<64x4xf32>
      %cst_12 = arith.constant 1.000000e+00 : f32
      %23 = vector.broadcast %cst_12 : f32 to vector<64x4xf32>
      %24 = arith.mulf %22, %23 : vector<64x4xf32>
      %cst_13 = arith.constant dense<0xFF800000> : vector<64xf32>
      %25 = vector.multi_reduction <maximumf>, %24, %cst_13 [1] : vector<64x4xf32> to vector<64xf32>
      %26 = vector.shape_cast %25 : vector<64xf32> to vector<64x1xf32>
      %27 = vector.broadcast %26 : vector<64x1xf32> to vector<64x4xf32>
      %28 = arith.subf %24, %27 : vector<64x4xf32>
      %29 = math.exp %28 : vector<64x4xf32>
      %cst_14 = arith.constant dense<0.000000e+00> : vector<64xf32>
      %30 = vector.multi_reduction <add>, %29, %cst_14 [1] : vector<64x4xf32> to vector<64xf32>
      %31 = vector.shape_cast %30 : vector<64xf32> to vector<64x1xf32>
      %32 = math.log %31 : vector<64x1xf32>
      %33 = vector.broadcast %32 : vector<64x1xf32> to vector<64x4xf32>
      %34 = arith.subf %28, %33 : vector<64x4xf32>
      %c0_15 = arith.constant 0 : index
      %c0_16 = arith.constant 0 : index
      %35 = vector.load %arg8[%c0_15, %c0_16] : memref<64x4xf32, #tpu.memory_space<vmem>>, vector<64x4xf32>
      tpu.vector_store %arg8[%c0_15, %c0_16], %34 {strides = array<i32>} : memref<64x4xf32, #tpu.memory_space<vmem>>, vector<64x4xf32>,
    } else {
    }
    return
  }
  func.func @transform_0(%arg0: i32, %arg1: i32, %arg2: memref<2x1xi32, #tpu.memory_space<smem>>) -> (i32, i32) {
    %c0_i32 = arith.constant 0 : i32
    %c0_i32_0 = arith.constant 0 : i32
    return %arg0, %c0_i32 : i32, i32
  }
  func.func @transform_1(%arg0: i32, %arg1: i32, %arg2: memref<2x1xi32, #tpu.memory_space<smem>>) -> (i32, i32) {
    %c0_i32 = arith.constant 0 : i32
    %c0_i32_0 = arith.constant 0 : i32
    return %c0_i32, %arg1 : i32, i32
  }
  func.func @transform_2(%arg0: i32, %arg1: i32, %arg2: memref<2x1xi32, #tpu.memory_space<smem>>) -> (i32, i32) {
    %c0_i32 = arith.constant 0 : i32
    return %arg0, %arg1 : i32, i32
  }
  func.func @transform_3(%arg0: i32, %arg1: i32, %arg2: memref<2x1xi32, #tpu.memory_space<smem>>) -> (i32, i32) {
    %c0_i32 = arith.constant 0 : i32
    %c0_i32_0 = arith.constant 0 : i32
    return %arg1, %c0_i32 : i32, i32
  }
  func.func @transform_4(%arg0: i32, %arg1: i32, %arg2: memref<2x1xi32, #tpu.memory_space<smem>>) -> (i32, i32) {
    %c0_i32 = arith.constant 0 : i32
    %c0_i32_0 = arith.constant 0 : i32
    %c0_i32_1 = arith.constant 0 : i32
    return %c0_i32, %c0_i32_0 : i32, i32
  }
  func.func @transform_5(%arg0: i32, %arg1: i32, %arg2: memref<2x1xi32, #tpu.memory_space<smem>>) -> (i32, i32) {
    %c0_i32 = arith.constant 0 : i32
    %c0_i32_0 = arith.constant 0 : i32
    return %arg0, %c0_i32 : i32, i32
  }
}

</mosaic_0001>

<llo_original>
// kernel: gat_forward.10
$region0: #{gat_forward.10}
  #allocation0 [shape = 'u32[]', space=smem, size = 0x4, offset = 0x4, fixed_abs, tag = 'smem constant byte address 0x4 - core index']
  #allocation1 [shape = 'u32[144,128]{1,0:T(1,128)}', space=vmem, size = 0x12000, scoped, tag = 'internal scratch']
  %s0 = inlined_call_operand.vmem [shape: bf16[128,16], index: 0, kind: input, shape index: {}]
  %s1 = inlined_call_operand.vmem [shape: bf16[16,5], index: 1, kind: input, shape index: {}]
  %s2 = inlined_call_operand.vmem [shape: bf16[1,16], index: 2, kind: input, shape index: {}]
  %s3 = inlined_call_operand.vmem [shape: bf16[128,4], index: 3, kind: output, shape index: {0}]
  %s4 = inlined_call_operand.vmem [shape: f32[1,128], index: 4, kind: output, shape index: {1}]
  %s5 = inlined_call_operand.vmem [shape: f32[128,1], index: 5, kind: output, shape index: {2}]
  %6 = xla_tuple %s3, %s4, %s5
  %s7 = sld [smem:[#allocation0]]
  $region38: #{gat_forward.10} parent=0
    _
  %s9 = ssub.s32 1, %s7
  %s10 = scalar_select 0, %s9, %s7
  // Predicated region
  $region2: #{gat_forward.10} parent=0 // pred_check
    _
  $region3: #{gat_forward.10} parent=0 // pred_check_branch
    %12 = sbr.rel (0) target = $region5
  $region4: #{gat_forward.10} parent=0 // pred_region
    _
  $region5: #{gat_forward.10} parent=0 // pred_fallthru
    _
  // Predicated region
  $region6: #{gat_forward.10} parent=0 // pred_check
    _
  $region7: #{gat_forward.10} parent=0 // pred_check_branch
    %14 = sbr.rel (0) target = $region9
  $region8: #{gat_forward.10} parent=0 // pred_region
    _
  $region9: #{gat_forward.10} parent=0 // pred_fallthru
    _
  // Predicated region
  $region10: #{gat_forward.10} parent=0 // pred_check
    _
  $region11: #{gat_forward.10} parent=0 // pred_check_branch
    %16 = sbr.rel (0) target = $region13
  $region12: #{gat_forward.10} parent=0 // pred_region
    _
  $region13: #{gat_forward.10} parent=0 // pred_fallthru
    _
  %v18 = vld [vmem:[%s0] sm:$0xf]
  %v19 = vld [vmem:[%s0 + $0x4] sm:$0xf]
  %v20 = vld [vmem:[%s0 + $0x8] sm:$0xf]
  %v21 = vld [vmem:[%s0 + $0xc] sm:$0xf]
  %v22 = vld [vmem:[%s0 + $0x10] sm:$0xf]
  %v23 = vld [vmem:[%s0 + $0x14] sm:$0xf]
  %v24 = vld [vmem:[%s0 + $0x18] sm:$0xf]
  %v25 = vld [vmem:[%s0 + $0x1c] sm:$0xf]
  %v26 = vld [vmem:[%s0 + $0x20] sm:$0xf]
  %v27 = vld [vmem:[%s0 + $0x24] sm:$0xf]
  %v28 = vld [vmem:[%s0 + $0x28] sm:$0xf]
  %v29 = vld [vmem:[%s0 + $0x2c] sm:$0xf]
  %v30 = vld [vmem:[%s0 + $0x30] sm:$0xf]
  %v31 = vld [vmem:[%s0 + $0x34] sm:$0xf]
  %v32 = vld [vmem:[%s0 + $0x38] sm:$0xf]
  %v33 = vld [vmem:[%s0 + $0x3c] sm:$0xf]
  %v34 = vld [vmem:[%s1] sm:$0xf]
  %v35 = vld [vmem:[%s1 + $0x4] sm:$0xf]
  %v52 = vunpack.c.l.b16 %v18
  %v53 = vunpack.c.l.b16 %v19
  %v54 = vunpack.c.l.b16 %v20
  %v55 = vunpack.c.l.b16 %v21
  %v56 = vunpack.c.l.b16 %v22
  %v57 = vunpack.c.l.b16 %v23
  %v58 = vunpack.c.l.b16 %v24
  %v59 = vunpack.c.l.b16 %v25
  %v60 = vunpack.c.l.b16 %v26
  %v61 = vunpack.c.l.b16 %v27
  %v62 = vunpack.c.l.b16 %v28
  %v63 = vunpack.c.l.b16 %v29
  %v64 = vunpack.c.l.b16 %v30
  %v65 = vunpack.c.l.b16 %v31
  %v66 = vunpack.c.l.b16 %v32
  %v67 = vunpack.c.l.b16 %v33
  %v68 = vpack.c.b16 %v53, %v52
  %v69 = vpack.c.b16 %v55, %v54
  %v70 = vpack.c.b16 %v57, %v56
  %v71 = vpack.c.b16 %v59, %v58
  %v72 = vpack.c.b16 %v61, %v60
  %v73 = vpack.c.b16 %v63, %v62
  %v74 = vpack.c.b16 %v65, %v64
  %v75 = vpack.c.b16 %v67, %v66
  %v78 = vunpack.c.l.b16 %v34
  %v79 = vunpack.c.l.b16 %v35
  %v80 = vpack.c.b16 %v79, %v78
  %vm82 = vcmask 130048
  %v84 = vsel %vm82, %v68, 0
  %v87 = vsel %vm82, %v69, 0
  %v90 = vsel %vm82, %v70, 0
  %v93 = vsel %vm82, %v71, 0
  %v96 = vsel %vm82, %v72, 0
  %v99 = vsel %vm82, %v73, 0
  %v102 = vsel %vm82, %v74, 0
  %v105 = vsel %vm82, %v75, 0
  %107 = vmatprep.subr.bf16.mxu0 0
  %108 = vmatpush1.bf16.msra.mxu0 %v80
  %109 = vmatprep.subr.bf16.mxu0 0
  %110 = vmatpush1.bf16.msra.mxu0 0
  %111 = vmatprep.subr.bf16.mxu0 0
  %112 = vmatpush1.bf16.msra.mxu0 0
  %113 = vmatprep.subr.bf16.mxu0 0
  %114 = vmatpush1.bf16.msra.mxu0 0
  %115 = vmatprep.subr.bf16.mxu0 0
  %116 = vmatpush1.bf16.msra.mxu0 0
  %117 = vmatprep.subr.bf16.mxu0 0
  %118 = vmatpush1.bf16.msra.mxu0 0
  %119 = vmatprep.subr.bf16.mxu0 0
  %120 = vmatpush1.bf16.msra.mxu0 0
  %121 = vmatprep.subr.bf16.mxu0 0
  %122 = vmatpush1.bf16.msra.mxu0 0
  %123 = vmatprep.subr.bf16.mxu0 0
  %124 = vmatpush1.bf16.msra.mxu0 0
  %125 = vmatprep.subr.bf16.mxu0 0
  %126 = vmatpush1.bf16.msra.mxu0 0
  %127 = vmatprep.subr.bf16.mxu0 0
  %128 = vmatpush1.bf16.msra.mxu0 0
  %129 = vmatprep.subr.bf16.mxu0 0
  %130 = vmatpush1.bf16.msra.mxu0 0
  %131 = vmatprep.subr.bf16.mxu0 0
  %132 = vmatpush1.bf16.msra.mxu0 0
  %133 = vmatprep.subr.bf16.mxu0 0
  %134 = vmatpush1.bf16.msra.mxu0 0
  %135 = vmatprep.subr.bf16.mxu0 0
  %136 = vmatpush1.bf16.msra.mxu0 0
  %137 = vmatprep.subr.bf16.mxu0 0
  %138 = vmatpush1.bf16.msra.mxu0 0
  %139 = vmatprep.mubr.bf16.mxu0 0
  %140 = vmatmul.mubr.bf16.gmra.mrb[0].mxu0 %v84
  %v141 = vpop.f32.mrb[0].mxu0
  %v142 = vadd.f32 0.0, %v141
  %v143 = vpop.f32.mrb[0].mxu0
  %v144 = vpop.f32.mrb[0].mxu0
  %v145 = vadd.f32 0.0, %v144
  %v146 = vpop.f32.mrb[0].mxu0
  %147 = vmatprep.mubr.bf16.mxu0 0
  %148 = vmatmul.mubr.bf16.gmra.mrb[0].mxu0 %v87
  %v149 = vpop.f32.mrb[0].mxu0
  %v150 = vadd.f32 0.0, %v149
  %v151 = vpop.f32.mrb[0].mxu0
  %v152 = vpop.f32.mrb[0].mxu0
  %v153 = vadd.f32 0.0, %v152
  %v154 = vpop.f32.mrb[0].mxu0
  %155 = vmatprep.mubr.bf16.mxu0 0
  %156 = vmatmul.mubr.bf16.gmra.mrb[0].mxu0 %v90
  %v157 = vpop.f32.mrb[0].mxu0
  %v158 = vadd.f32 0.0, %v157
  %v159 = vpop.f32.mrb[0].mxu0
  %v160 = vpop.f32.mrb[0].mxu0
  %v161 = vadd.f32 0.0, %v160
  %v162 = vpop.f32.mrb[0].mxu0
  %163 = vmatprep.mubr.bf16.mxu0 0
  %164 = vmatmul.mubr.bf16.gmra.mrb[0].mxu0 %v93
  %v165 = vpop.f32.mrb[0].mxu0
  %v166 = vadd.f32 0.0, %v165
  %v167 = vpop.f32.mrb[0].mxu0
  %v168 = vpop.f32.mrb[0].mxu0
  %v169 = vadd.f32 0.0, %v168
  %v170 = vpop.f32.mrb[0].mxu0
  %171 = vmatprep.mubr.bf16.mxu0 0
  %172 = vmatmul.mubr.bf16.gmra.mrb[0].mxu0 %v96
  %v173 = vpop.f32.mrb[0].mxu0
  %v174 = vadd.f32 0.0, %v173
  %v175 = vpop.f32.mrb[0].mxu0
  %v176 = vpop.f32.mrb[0].mxu0
  %v177 = vadd.f32 0.0, %v176
  %v178 = vpop.f32.mrb[0].mxu0
  %179 = vmatprep.mubr.bf16.mxu0 0
  %180 = vmatmul.mubr.bf16.gmra.mrb[0].mxu0 %v99
  %v181 = vpop.f32.mrb[0].mxu0
  %v182 = vadd.f32 0.0, %v181
  %v183 = vpop.f32.mrb[0].mxu0
  %v184 = vpop.f32.mrb[0].mxu0
  %v185 = vadd.f32 0.0, %v184
  %v186 = vpop.f32.mrb[0].mxu0
  %187 = vmatprep.mubr.bf16.mxu0 0
  %188 = vmatmul.mubr.bf16.gmra.mrb[0].mxu0 %v102
  %v189 = vpop.f32.mrb[0].mxu0
  %v190 = vadd.f32 0.0, %v189
  %v191 = vpop.f32.mrb[0].mxu0
  %v192 = vpop.f32.mrb[0].mxu0
  %v193 = vadd.f32 0.0, %v192
  %v194 = vpop.f32.mrb[0].mxu0
  %195 = vmatprep.mubr.bf16.mxu0 0
  %196 = vmatmul.mubr.bf16.gmra.mrb[0].mxu0 %v105
  %v197 = vpop.f32.mrb[0].mxu0
  %v198 = vadd.f32 0.0, %v197
  %v199 = vpop.f32.mrb[0].mxu0
  %v200 = vpop.f32.mrb[0].mxu0
  %v201 = vadd.f32 0.0, %v200
  %v202 = vpop.f32.mrb[0].mxu0
  %203 = vdwg.mxu0
  %v204 = vpack.c.bf16 %v145, %v142
  %v205 = vpack.c.bf16 %v153, %v150
  %v206 = vpack.c.bf16 %v161, %v158
  %v207 = vpack.c.bf16 %v169, %v166
  %v208 = vpack.c.bf16 %v177, %v174
  %v209 = vpack.c.bf16 %v185, %v182
  %v210 = vpack.c.bf16 %v193, %v190
  %v211 = vpack.c.bf16 %v201, %v198
  %v220 = vunpack.c.l.b16 %v204
  %v221 = vunpack.c.h.b16 %v204
  %v222 = vunpack.c.l.b16 %v205
  %v223 = vunpack.c.h.b16 %v205
  %v224 = vunpack.c.l.b16 %v206
  %v225 = vunpack.c.h.b16 %v206
  %v226 = vunpack.c.l.b16 %v207
  %v227 = vunpack.c.h.b16 %v207
  %v228 = vunpack.c.l.b16 %v208
  %v229 = vunpack.c.h.b16 %v208
  %v230 = vunpack.c.l.b16 %v209
  %v231 = vunpack.c.h.b16 %v209
  %v232 = vunpack.c.l.b16 %v210
  %v233 = vunpack.c.h.b16 %v210
  %v234 = vunpack.c.l.b16 %v211
  %v235 = vunpack.c.h.b16 %v211
  %v236 = vpack.c.b16 %v220, %v220
  %v237 = vpack.c.b16 %v221, %v221
  %v238 = vpack.c.b16 %v222, %v222
  %v239 = vpack.c.b16 %v223, %v223
  %v240 = vpack.c.b16 %v224, %v224
  %v241 = vpack.c.b16 %v225, %v225
  %v242 = vpack.c.b16 %v226, %v226
  %v243 = vpack.c.b16 %v227, %v227
  %v244 = vpack.c.b16 %v228, %v228
  %v245 = vpack.c.b16 %v229, %v229
  %v246 = vpack.c.b16 %v230, %v230
  %v247 = vpack.c.b16 %v231, %v231
  %v248 = vpack.c.b16 %v232, %v232
  %v249 = vpack.c.b16 %v233, %v233
  %v250 = vpack.c.b16 %v234, %v234
  %v251 = vpack.c.b16 %v235, %v235
  %vm268 = vcmask 27648
  %269 = vst.msk [vmem:[%s3] sm:$0xf] %vm268, %v236
  %270 = vst.msk [vmem:[%s3 + $0x4] sm:$0xf] %vm268, %v237
  %271 = vst.msk [vmem:[%s3 + $0x8] sm:$0xf] %vm268, %v238
  %272 = vst.msk [vmem:[%s3 + $0xc] sm:$0xf] %vm268, %v239
  %273 = vst.msk [vmem:[%s3 + $0x10] sm:$0xf] %vm268, %v240
  %274 = vst.msk [vmem:[%s3 + $0x14] sm:$0xf] %vm268, %v241
  %275 = vst.msk [vmem:[%s3 + $0x18] sm:$0xf] %vm268, %v242
  %276 = vst.msk [vmem:[%s3 + $0x1c] sm:$0xf] %vm268, %v243
  %277 = vst.msk [vmem:[%s3 + $0x20] sm:$0xf] %vm268, %v244
  %278 = vst.msk [vmem:[%s3 + $0x24] sm:$0xf] %vm268, %v245
  %279 = vst.msk [vmem:[%s3 + $0x28] sm:$0xf] %vm268, %v246
  %280 = vst.msk [vmem:[%s3 + $0x2c] sm:$0xf] %vm268, %v247
  %281 = vst.msk [vmem:[%s3 + $0x30] sm:$0xf] %vm268, %v248
  %282 = vst.msk [vmem:[%s3 + $0x34] sm:$0xf] %vm268, %v249
  %283 = vst.msk [vmem:[%s3 + $0x38] sm:$0xf] %vm268, %v250
  %284 = vst.msk [vmem:[%s3 + $0x3c] sm:$0xf] %vm268, %v251
  %301 = vrot.lane.b32.xlu0 %v142, 124
  %v302 = vpop.permute.xlu0 %301
  %303 = vrot.lane.b32.xlu0 %v145, 124
  %v304 = vpop.permute.xlu0 %303
  %305 = vrot.lane.b32.xlu0 %v150, 124
  %v306 = vpop.permute.xlu0 %305
  %307 = vrot.lane.b32.xlu0 %v153, 124
  %v308 = vpop.permute.xlu0 %307
  %309 = vrot.lane.b32.xlu0 %v158, 124
  %v310 = vpop.permute.xlu0 %309
  %311 = vrot.lane.b32.xlu0 %v161, 124
  %v312 = vpop.permute.xlu0 %311
  %313 = vrot.lane.b32.xlu0 %v166, 124
  %v314 = vpop.permute.xlu0 %313
  %315 = vrot.lane.b32.xlu0 %v169, 124
  %v316 = vpop.permute.xlu0 %315
  %317 = vrot.lane.b32.xlu0 %v174, 124
  %v318 = vpop.permute.xlu0 %317
  %319 = vrot.lane.b32.xlu0 %v177, 124
  %v320 = vpop.permute.xlu0 %319
  %321 = vrot.lane.b32.xlu0 %v182, 124
  %v322 = vpop.permute.xlu0 %321
  %323 = vrot.lane.b32.xlu0 %v185, 124
  %v324 = vpop.permute.xlu0 %323
  %325 = vrot.lane.b32.xlu0 %v190, 124
  %v326 = vpop.permute.xlu0 %325
  %327 = vrot.lane.b32.xlu0 %v193, 124
  %v328 = vpop.permute.xlu0 %327
  %329 = vrot.lane.b32.xlu0 %v198, 124
  %v330 = vpop.permute.xlu0 %329
  %331 = vrot.lane.b32.xlu0 %v201, 124
  %v332 = vpop.permute.xlu0 %331
  %vm349 = vcmask 7168
  %350 = vst.msk [vmem:[%s5] sm:$0xff] %vm349, %v302
  %351 = vst.msk [vmem:[%s5 + $0x8] sm:$0xff] %vm349, %v304
  %352 = vst.msk [vmem:[%s5 + $0x10] sm:$0xff] %vm349, %v306
  %353 = vst.msk [vmem:[%s5 + $0x18] sm:$0xff] %vm349, %v308
  %354 = vst.msk [vmem:[%s5 + $0x20] sm:$0xff] %vm349, %v310
  %355 = vst.msk [vmem:[%s5 + $0x28] sm:$0xff] %vm349, %v312
  %356 = vst.msk [vmem:[%s5 + $0x30] sm:$0xff] %vm349, %v314
  %357 = vst.msk [vmem:[%s5 + $0x38] sm:$0xff] %vm349, %v316
  %358 = vst.msk [vmem:[%s5 + $0x40] sm:$0xff] %vm349, %v318
  %359 = vst.msk [vmem:[%s5 + $0x48] sm:$0xff] %vm349, %v320
  %360 = vst.msk [vmem:[%s5 + $0x50] sm:$0xff] %vm349, %v322
  %361 = vst.msk [vmem:[%s5 + $0x58] sm:$0xff] %vm349, %v324
  %362 = vst.msk [vmem:[%s5 + $0x60] sm:$0xff] %vm349, %v326
  %363 = vst.msk [vmem:[%s5 + $0x68] sm:$0xff] %vm349, %v328
  %364 = vst.msk [vmem:[%s5 + $0x70] sm:$0xff] %vm349, %v330
  %365 = vst.msk [vmem:[%s5 + $0x78] sm:$0xff] %vm349, %v332
  %v366 = vld [vmem:[%s2] sm:$0x1]
  %v368 = vsel %vm82, %v366, 0
  %370 = vmatprep.subr.bf16.mxu0 0
  %371 = vmatpush1.bf16.xpose.msra.mxu0 %v84
  %372 = vmatprep.subr.bf16.mxu0 0
  %373 = vmatpush1.bf16.xpose.msra.mxu0 %v87
  %374 = vmatprep.subr.bf16.mxu0 0
  %375 = vmatpush1.bf16.xpose.msra.mxu0 %v90
  %376 = vmatprep.subr.bf16.mxu0 0
  %377 = vmatpush1.bf16.xpose.msra.mxu0 %v93
  %378 = vmatprep.subr.bf16.mxu0 0
  %379 = vmatpush1.bf16.xpose.msra.mxu0 %v96
  %380 = vmatprep.subr.bf16.mxu0 0
  %381 = vmatpush1.bf16.xpose.msra.mxu0 %v99
  %382 = vmatprep.subr.bf16.mxu0 0
  %383 = vmatpush1.bf16.xpose.msra.mxu0 %v102
  %384 = vmatprep.subr.bf16.mxu0 0
  %385 = vmatpush1.bf16.xpose.msra.mxu0 %v105
  %386 = vmatprep.subr.bf16.mxu0 0
  %387 = vmatpush1.bf16.xpose.msra.mxu0 0
  %388 = vmatprep.subr.bf16.mxu0 0
  %389 = vmatpush1.bf16.xpose.msra.mxu0 0
  %390 = vmatprep.subr.bf16.mxu0 0
  %391 = vmatpush1.bf16.xpose.msra.mxu0 0
  %392 = vmatprep.subr.bf16.mxu0 0
  %393 = vmatpush1.bf16.xpose.msra.mxu0 0
  %394 = vmatprep.subr.bf16.mxu0 0
  %395 = vmatpush1.bf16.xpose.msra.mxu0 0
  %396 = vmatprep.subr.bf16.mxu0 0
  %397 = vmatpush1.bf16.xpose.msra.mxu0 0
  %398 = vmatprep.subr.bf16.mxu0 0
  %399 = vmatpush1.bf16.xpose.msra.mxu0 0
  %400 = vmatprep.subr.bf16.mxu0 0
  %401 = vmatpush1.bf16.xpose.msra.mxu0 0
  %402 = vmatprep.mubr.bf16.mxu0 0
  %403 = vmatmul.mubr.bf16.gmra.mrb[0].mxu0 %v368
  %v404 = vpop.f32.mrb[0].mxu0
  %v405 = vadd.f32 0.0, %v404
  %v406 = vpop.f32.mrb[0].mxu0
  %v407 = vpop.f32.mrb[0].mxu0
  %v408 = vpop.f32.mrb[0].mxu0
  %409 = vdwg.mxu0
  %410 = vst [vmem:[%s4] sm:$0x1] %v405
  // Predicated region
  $region14: #{gat_forward.10} parent=0 // pred_check
    _
  $region15: #{gat_forward.10} parent=0 // pred_check_branch
    %412 = sbr.rel (0) target = $region17
  $region16: #{gat_forward.10} parent=0 // pred_region
    _
  $region17: #{gat_forward.10} parent=0 // pred_fallthru
    _
  // Predicated region
  $region18: #{gat_forward.10} parent=0 // pred_check
    _
  $region19: #{gat_forward.10} parent=0 // pred_check_branch
    %414 = sbr.rel (0) target = $region21
  $region20: #{gat_forward.10} parent=0 // pred_region
    _
  $region21: #{gat_forward.10} parent=0 // pred_fallthru
    _
  // Predicated region
  $region22: #{gat_forward.10} parent=0 // pred_check
    _
  $region23: #{gat_forward.10} parent=0 // pred_check_branch
    %416 = sbr.rel (0) target = $region25
  $region24: #{gat_forward.10} parent=0 // pred_region
    _
  $region25: #{gat_forward.10} parent=0 // pred_fallthru
    _
  // Predicated region
  $region26: #{gat_forward.10} parent=0 // pred_check
    _
  $region27: #{gat_forward.10} parent=0 // pred_check_branch
    %418 = sbr.rel (0) target = $region29
  $region28: #{gat_forward.10} parent=0 // pred_region
    _
  $region29: #{gat_forward.10} parent=0 // pred_fallthru
    _
  // Predicated region
  $region30: #{gat_forward.10} parent=0 // pred_check
    _
  $region31: #{gat_forward.10} parent=0 // pred_check_branch
    %420 = sbr.rel (0) target = $region33
  $region32: #{gat_forward.10} parent=0 // pred_region
    _
  $region33: #{gat_forward.10} parent=0 // pred_fallthru
    _
  // Predicated region
  $region34: #{gat_forward.10} parent=0 // pred_check
    _
  $region35: #{gat_forward.10} parent=0 // pred_check_branch
    %422 = sbr.rel (0) target = $region37
  $region36: #{gat_forward.10} parent=0 // pred_region
    _
  $region37: #{gat_forward.10} parent=0 // pred_fallthru
    _

// kernel: gat_forward.6
$region0: #{gat_forward.6}
  #allocation0 [shape = 'u32[]', space=smem, size = 0x4, offset = 0x4, fixed_abs, tag = 'smem constant byte address 0x4 - core index']
  #allocation1 [shape = 'u32[144,128]{1,0:T(1,128)}', space=vmem, size = 0x12000, scoped, tag = 'internal scratch']
  %s0 = inlined_call_operand.vmem [shape: bf16[128,16], index: 0, kind: input, shape index: {}]
  %s1 = inlined_call_operand.vmem [shape: bf16[16,18], index: 1, kind: input, shape index: {}]
  %s2 = inlined_call_operand.vmem [shape: bf16[2,16], index: 2, kind: input, shape index: {}]
  %s3 = inlined_call_operand.vmem [shape: bf16[128,16], index: 3, kind: output, shape index: {0}]
  %s4 = inlined_call_operand.vmem [shape: f32[2,128], index: 4, kind: output, shape index: {1}]
  %s5 = inlined_call_operand.vmem [shape: f32[128,2], index: 5, kind: output, shape index: {2}]
  %6 = xla_tuple %s3, %s4, %s5
  %s7 = sld [smem:[#allocation0]]
  $region38: #{gat_forward.6} parent=0
    _
  %s9 = ssub.s32 1, %s7
  %s10 = scalar_select 0, %s9, %s7
  // Predicated region
  $region2: #{gat_forward.6} parent=0 // pred_check
    _
  $region3: #{gat_forward.6} parent=0 // pred_check_branch
    %12 = sbr.rel (0) target = $region5
  $region4: #{gat_forward.6} parent=0 // pred_region
    _
  $region5: #{gat_forward.6} parent=0 // pred_fallthru
    _
  // Predicated region
  $region6: #{gat_forward.6} parent=0 // pred_check
    _
  $region7: #{gat_forward.6} parent=0 // pred_check_branch
    %14 = sbr.rel (0) target = $region9
  $region8: #{gat_forward.6} parent=0 // pred_region
    _
  $region9: #{gat_forward.6} parent=0 // pred_fallthru
    _
  // Predicated region
  $region10: #{gat_forward.6} parent=0 // pred_check
    _
  $region11: #{gat_forward.6} parent=0 // pred_check_branch
    %16 = sbr.rel (0) target = $region13
  $region12: #{gat_forward.6} parent=0 // pred_region
    _
  $region13: #{gat_forward.6} parent=0 // pred_fallthru
    _
  %v18 = vld [vmem:[%s0] sm:$0xf]
  %v19 = vld [vmem:[%s0 + $0x4] sm:$0xf]
  %v20 = vld [vmem:[%s0 + $0x8] sm:$0xf]
  %v21 = vld [vmem:[%s0 + $0xc] sm:$0xf]
  %v22 = vld [vmem:[%s0 + $0x10] sm:$0xf]
  %v23 = vld [vmem:[%s0 + $0x14] sm:$0xf]
  %v24 = vld [vmem:[%s0 + $0x18] sm:$0xf]
  %v25 = vld [vmem:[%s0 + $0x1c] sm:$0xf]
  %v26 = vld [vmem:[%s0 + $0x20] sm:$0xf]
  %v27 = vld [vmem:[%s0 + $0x24] sm:$0xf]
  %v28 = vld [vmem:[%s0 + $0x28] sm:$0xf]
  %v29 = vld [vmem:[%s0 + $0x2c] sm:$0xf]
  %v30 = vld [vmem:[%s0 + $0x30] sm:$0xf]
  %v31 = vld [vmem:[%s0 + $0x34] sm:$0xf]
  %v32 = vld [vmem:[%s0 + $0x38] sm:$0xf]
  %v33 = vld [vmem:[%s0 + $0x3c] sm:$0xf]
  %v34 = vld [vmem:[%s1] sm:$0xf]
  %v35 = vld [vmem:[%s1 + $0x4] sm:$0xf]
  %v52 = vunpack.c.l.b16 %v18
  %v53 = vunpack.c.l.b16 %v19
  %v54 = vunpack.c.l.b16 %v20
  %v55 = vunpack.c.l.b16 %v21
  %v56 = vunpack.c.l.b16 %v22
  %v57 = vunpack.c.l.b16 %v23
  %v58 = vunpack.c.l.b16 %v24
  %v59 = vunpack.c.l.b16 %v25
  %v60 = vunpack.c.l.b16 %v26
  %v61 = vunpack.c.l.b16 %v27
  %v62 = vunpack.c.l.b16 %v28
  %v63 = vunpack.c.l.b16 %v29
  %v64 = vunpack.c.l.b16 %v30
  %v65 = vunpack.c.l.b16 %v31
  %v66 = vunpack.c.l.b16 %v32
  %v67 = vunpack.c.l.b16 %v33
  %v68 = vpack.c.b16 %v53, %v52
  %v69 = vpack.c.b16 %v55, %v54
  %v70 = vpack.c.b16 %v57, %v56
  %v71 = vpack.c.b16 %v59, %v58
  %v72 = vpack.c.b16 %v61, %v60
  %v73 = vpack.c.b16 %v63, %v62
  %v74 = vpack.c.b16 %v65, %v64
  %v75 = vpack.c.b16 %v67, %v66
  %v78 = vunpack.c.l.b16 %v34
  %v79 = vunpack.c.l.b16 %v35
  %v80 = vpack.c.b16 %v79, %v78
  %vm82 = vcmask 130048
  %v84 = vsel %vm82, %v68, 0
  %v87 = vsel %vm82, %v69, 0
  %v90 = vsel %vm82, %v70, 0
  %v93 = vsel %vm82, %v71, 0
  %v96 = vsel %vm82, %v72, 0
  %v99 = vsel %vm82, %v73, 0
  %v102 = vsel %vm82, %v74, 0
  %v105 = vsel %vm82, %v75, 0
  %107 = vmatprep.subr.bf16.mxu0 0
  %108 = vmatpush1.bf16.msra.mxu0 %v80
  %109 = vmatprep.subr.bf16.mxu0 0
  %110 = vmatpush1.bf16.msra.mxu0 0
  %111 = vmatprep.subr.bf16.mxu0 0
  %112 = vmatpush1.bf16.msra.mxu0 0
  %113 = vmatprep.subr.bf16.mxu0 0
  %114 = vmatpush1.bf16.msra.mxu0 0
  %115 = vmatprep.subr.bf16.mxu0 0
  %116 = vmatpush1.bf16.msra.mxu0 0
  %117 = vmatprep.subr.bf16.mxu0 0
  %118 = vmatpush1.bf16.msra.mxu0 0
  %119 = vmatprep.subr.bf16.mxu0 0
  %120 = vmatpush1.bf16.msra.mxu0 0
  %121 = vmatprep.subr.bf16.mxu0 0
  %122 = vmatpush1.bf16.msra.mxu0 0
  %123 = vmatprep.subr.bf16.mxu0 0
  %124 = vmatpush1.bf16.msra.mxu0 0
  %125 = vmatprep.subr.bf16.mxu0 0
  %126 = vmatpush1.bf16.msra.mxu0 0
  %127 = vmatprep.subr.bf16.mxu0 0
  %128 = vmatpush1.bf16.msra.mxu0 0
  %129 = vmatprep.subr.bf16.mxu0 0
  %130 = vmatpush1.bf16.msra.mxu0 0
  %131 = vmatprep.subr.bf16.mxu0 0
  %132 = vmatpush1.bf16.msra.mxu0 0
  %133 = vmatprep.subr.bf16.mxu0 0
  %134 = vmatpush1.bf16.msra.mxu0 0
  %135 = vmatprep.subr.bf16.mxu0 0
  %136 = vmatpush1.bf16.msra.mxu0 0
  %137 = vmatprep.subr.bf16.mxu0 0
  %138 = vmatpush1.bf16.msra.mxu0 0
  %139 = vmatprep.mubr.bf16.mxu0 0
  %140 = vmatmul.mubr.bf16.gmra.mrb[0].mxu0 %v84
  %v141 = vpop.f32.mrb[0].mxu0
  %v142 = vadd.f32 0.0, %v141
  %v143 = vpop.f32.mrb[0].mxu0
  %v144 = vpop.f32.mrb[0].mxu0
  %v145 = vadd.f32 0.0, %v144
  %v146 = vpop.f32.mrb[0].mxu0
  %147 = vmatprep.mubr.bf16.mxu0 0
  %148 = vmatmul.mubr.bf16.gmra.mrb[0].mxu0 %v87
  %v149 = vpop.f32.mrb[0].mxu0
  %v150 = vadd.f32 0.0, %v149
  %v151 = vpop.f32.mrb[0].mxu0
  %v152 = vpop.f32.mrb[0].mxu0
  %v153 = vadd.f32 0.0, %v152
  %v154 = vpop.f32.mrb[0].mxu0
  %155 = vmatprep.mubr.bf16.mxu0 0
  %156 = vmatmul.mubr.bf16.gmra.mrb[0].mxu0 %v90
  %v157 = vpop.f32.mrb[0].mxu0
  %v158 = vadd.f32 0.0, %v157
  %v159 = vpop.f32.mrb[0].mxu0
  %v160 = vpop.f32.mrb[0].mxu0
  %v161 = vadd.f32 0.0, %v160
  %v162 = vpop.f32.mrb[0].mxu0
  %163 = vmatprep.mubr.bf16.mxu0 0
  %164 = vmatmul.mubr.bf16.gmra.mrb[0].mxu0 %v93
  %v165 = vpop.f32.mrb[0].mxu0
  %v166 = vadd.f32 0.0, %v165
  %v167 = vpop.f32.mrb[0].mxu0
  %v168 = vpop.f32.mrb[0].mxu0
  %v169 = vadd.f32 0.0, %v168
  %v170 = vpop.f32.mrb[0].mxu0
  %171 = vmatprep.mubr.bf16.mxu0 0
  %172 = vmatmul.mubr.bf16.gmra.mrb[0].mxu0 %v96
  %v173 = vpop.f32.mrb[0].mxu0
  %v174 = vadd.f32 0.0, %v173
  %v175 = vpop.f32.mrb[0].mxu0
  %v176 = vpop.f32.mrb[0].mxu0
  %v177 = vadd.f32 0.0, %v176
  %v178 = vpop.f32.mrb[0].mxu0
  %179 = vmatprep.mubr.bf16.mxu0 0
  %180 = vmatmul.mubr.bf16.gmra.mrb[0].mxu0 %v99
  %v181 = vpop.f32.mrb[0].mxu0
  %v182 = vadd.f32 0.0, %v181
  %v183 = vpop.f32.mrb[0].mxu0
  %v184 = vpop.f32.mrb[0].mxu0
  %v185 = vadd.f32 0.0, %v184
  %v186 = vpop.f32.mrb[0].mxu0
  %187 = vmatprep.mubr.bf16.mxu0 0
  %188 = vmatmul.mubr.bf16.gmra.mrb[0].mxu0 %v102
  %v189 = vpop.f32.mrb[0].mxu0
  %v190 = vadd.f32 0.0, %v189
  %v191 = vpop.f32.mrb[0].mxu0
  %v192 = vpop.f32.mrb[0].mxu0
  %v193 = vadd.f32 0.0, %v192
  %v194 = vpop.f32.mrb[0].mxu0
  %195 = vmatprep.mubr.bf16.mxu0 0
  %196 = vmatmul.mubr.bf16.gmra.mrb[0].mxu0 %v105
  %v197 = vpop.f32.mrb[0].mxu0
  %v198 = vadd.f32 0.0, %v197
  %v199 = vpop.f32.mrb[0].mxu0
  %v200 = vpop.f32.mrb[0].mxu0
  %v201 = vadd.f32 0.0, %v200
  %v202 = vpop.f32.mrb[0].mxu0
  %203 = vdwg.mxu0
  %v204 = vpack.c.bf16 %v145, %v142
  %v205 = vpack.c.bf16 %v153, %v150
  %v206 = vpack.c.bf16 %v161, %v158
  %v207 = vpack.c.bf16 %v169, %v166
  %v208 = vpack.c.bf16 %v177, %v174
  %v209 = vpack.c.bf16 %v185, %v182
  %v210 = vpack.c.bf16 %v193, %v190
  %v211 = vpack.c.bf16 %v201, %v198
  %v220 = vunpack.c.l.b16 %v204
  %v221 = vunpack.c.h.b16 %v204
  %v222 = vunpack.c.l.b16 %v205
  %v223 = vunpack.c.h.b16 %v205
  %v224 = vunpack.c.l.b16 %v206
  %v225 = vunpack.c.h.b16 %v206
  %v226 = vunpack.c.l.b16 %v207
  %v227 = vunpack.c.h.b16 %v207
  %v228 = vunpack.c.l.b16 %v208
  %v229 = vunpack.c.h.b16 %v208
  %v230 = vunpack.c.l.b16 %v209
  %v231 = vunpack.c.h.b16 %v209
  %v232 = vunpack.c.l.b16 %v210
  %v233 = vunpack.c.h.b16 %v210
  %v234 = vunpack.c.l.b16 %v211
  %v235 = vunpack.c.h.b16 %v211
  %v236 = vpack.c.b16 %v220, %v220
  %v237 = vpack.c.b16 %v221, %v221
  %v238 = vpack.c.b16 %v222, %v222
  %v239 = vpack.c.b16 %v223, %v223
  %v240 = vpack.c.b16 %v224, %v224
  %v241 = vpack.c.b16 %v225, %v225
  %v242 = vpack.c.b16 %v226, %v226
  %v243 = vpack.c.b16 %v227, %v227
  %v244 = vpack.c.b16 %v228, %v228
  %v245 = vpack.c.b16 %v229, %v229
  %v246 = vpack.c.b16 %v230, %v230
  %v247 = vpack.c.b16 %v231, %v231
  %v248 = vpack.c.b16 %v232, %v232
  %v249 = vpack.c.b16 %v233, %v233
  %v250 = vpack.c.b16 %v234, %v234
  %v251 = vpack.c.b16 %v235, %v235
  %vm268 = vcmask 125952
  %269 = vst.msk [vmem:[%s3] sm:$0xf] %vm268, %v236
  %270 = vst.msk [vmem:[%s3 + $0x4] sm:$0xf] %vm268, %v237
  %271 = vst.msk [vmem:[%s3 + $0x8] sm:$0xf] %vm268, %v238
  %272 = vst.msk [vmem:[%s3 + $0xc] sm:$0xf] %vm268, %v239
  %273 = vst.msk [vmem:[%s3 + $0x10] sm:$0xf] %vm268, %v240
  %274 = vst.msk [vmem:[%s3 + $0x14] sm:$0xf] %vm268, %v241
  %275 = vst.msk [vmem:[%s3 + $0x18] sm:$0xf] %vm268, %v242
  %276 = vst.msk [vmem:[%s3 + $0x1c] sm:$0xf] %vm268, %v243
  %277 = vst.msk [vmem:[%s3 + $0x20] sm:$0xf] %vm268, %v244
  %278 = vst.msk [vmem:[%s3 + $0x24] sm:$0xf] %vm268, %v245
  %279 = vst.msk [vmem:[%s3 + $0x28] sm:$0xf] %vm268, %v246
  %280 = vst.msk [vmem:[%s3 + $0x2c] sm:$0xf] %vm268, %v247
  %281 = vst.msk [vmem:[%s3 + $0x30] sm:$0xf] %vm268, %v248
  %282 = vst.msk [vmem:[%s3 + $0x34] sm:$0xf] %vm268, %v249
  %283 = vst.msk [vmem:[%s3 + $0x38] sm:$0xf] %vm268, %v250
  %284 = vst.msk [vmem:[%s3 + $0x3c] sm:$0xf] %vm268, %v251
  %301 = vrot.lane.b32.xlu0 %v142, 112
  %v302 = vpop.permute.xlu0 %301
  %303 = vrot.lane.b32.xlu0 %v145, 112
  %v304 = vpop.permute.xlu0 %303
  %305 = vrot.lane.b32.xlu0 %v150, 112
  %v306 = vpop.permute.xlu0 %305
  %307 = vrot.lane.b32.xlu0 %v153, 112
  %v308 = vpop.permute.xlu0 %307
  %309 = vrot.lane.b32.xlu0 %v158, 112
  %v310 = vpop.permute.xlu0 %309
  %311 = vrot.lane.b32.xlu0 %v161, 112
  %v312 = vpop.permute.xlu0 %311
  %313 = vrot.lane.b32.xlu0 %v166, 112
  %v314 = vpop.permute.xlu0 %313
  %315 = vrot.lane.b32.xlu0 %v169, 112
  %v316 = vpop.permute.xlu0 %315
  %317 = vrot.lane.b32.xlu0 %v174, 112
  %v318 = vpop.permute.xlu0 %317
  %319 = vrot.lane.b32.xlu0 %v177, 112
  %v320 = vpop.permute.xlu0 %319
  %321 = vrot.lane.b32.xlu0 %v182, 112
  %v322 = vpop.permute.xlu0 %321
  %323 = vrot.lane.b32.xlu0 %v185, 112
  %v324 = vpop.permute.xlu0 %323
  %325 = vrot.lane.b32.xlu0 %v190, 112
  %v326 = vpop.permute.xlu0 %325
  %327 = vrot.lane.b32.xlu0 %v193, 112
  %v328 = vpop.permute.xlu0 %327
  %329 = vrot.lane.b32.xlu0 %v198, 112
  %v330 = vpop.permute.xlu0 %329
  %331 = vrot.lane.b32.xlu0 %v201, 112
  %v332 = vpop.permute.xlu0 %331
  %vm349 = vcmask 15360
  %350 = vst.msk [vmem:[%s5] sm:$0xff] %vm349, %v302
  %351 = vst.msk [vmem:[%s5 + $0x8] sm:$0xff] %vm349, %v304
  %352 = vst.msk [vmem:[%s5 + $0x10] sm:$0xff] %vm349, %v306
  %353 = vst.msk [vmem:[%s5 + $0x18] sm:$0xff] %vm349, %v308
  %354 = vst.msk [vmem:[%s5 + $0x20] sm:$0xff] %vm349, %v310
  %355 = vst.msk [vmem:[%s5 + $0x28] sm:$0xff] %vm349, %v312
  %356 = vst.msk [vmem:[%s5 + $0x30] sm:$0xff] %vm349, %v314
  %357 = vst.msk [vmem:[%s5 + $0x38] sm:$0xff] %vm349, %v316
  %358 = vst.msk [vmem:[%s5 + $0x40] sm:$0xff] %vm349, %v318
  %359 = vst.msk [vmem:[%s5 + $0x48] sm:$0xff] %vm349, %v320
  %360 = vst.msk [vmem:[%s5 + $0x50] sm:$0xff] %vm349, %v322
  %361 = vst.msk [vmem:[%s5 + $0x58] sm:$0xff] %vm349, %v324
  %362 = vst.msk [vmem:[%s5 + $0x60] sm:$0xff] %vm349, %v326
  %363 = vst.msk [vmem:[%s5 + $0x68] sm:$0xff] %vm349, %v328
  %364 = vst.msk [vmem:[%s5 + $0x70] sm:$0xff] %vm349, %v330
  %365 = vst.msk [vmem:[%s5 + $0x78] sm:$0xff] %vm349, %v332
  %v366 = vld [vmem:[%s2] sm:$0x1]
  %v368 = vsel %vm82, %v366, 0
  %370 = vmatprep.subr.bf16.mxu0 0
  %371 = vmatpush1.bf16.xpose.msra.mxu0 %v84
  %372 = vmatprep.subr.bf16.mxu0 0
  %373 = vmatpush1.bf16.xpose.msra.mxu0 %v87
  %374 = vmatprep.subr.bf16.mxu0 0
  %375 = vmatpush1.bf16.xpose.msra.mxu0 %v90
  %376 = vmatprep.subr.bf16.mxu0 0
  %377 = vmatpush1.bf16.xpose.msra.mxu0 %v93
  %378 = vmatprep.subr.bf16.mxu0 0
  %379 = vmatpush1.bf16.xpose.msra.mxu0 %v96
  %380 = vmatprep.subr.bf16.mxu0 0
  %381 = vmatpush1.bf16.xpose.msra.mxu0 %v99
  %382 = vmatprep.subr.bf16.mxu0 0
  %383 = vmatpush1.bf16.xpose.msra.mxu0 %v102
  %384 = vmatprep.subr.bf16.mxu0 0
  %385 = vmatpush1.bf16.xpose.msra.mxu0 %v105
  %386 = vmatprep.subr.bf16.mxu0 0
  %387 = vmatpush1.bf16.xpose.msra.mxu0 0
  %388 = vmatprep.subr.bf16.mxu0 0
  %389 = vmatpush1.bf16.xpose.msra.mxu0 0
  %390 = vmatprep.subr.bf16.mxu0 0
  %391 = vmatpush1.bf16.xpose.msra.mxu0 0
  %392 = vmatprep.subr.bf16.mxu0 0
  %393 = vmatpush1.bf16.xpose.msra.mxu0 0
  %394 = vmatprep.subr.bf16.mxu0 0
  %395 = vmatpush1.bf16.xpose.msra.mxu0 0
  %396 = vmatprep.subr.bf16.mxu0 0
  %397 = vmatpush1.bf16.xpose.msra.mxu0 0
  %398 = vmatprep.subr.bf16.mxu0 0
  %399 = vmatpush1.bf16.xpose.msra.mxu0 0
  %400 = vmatprep.subr.bf16.mxu0 0
  %401 = vmatpush1.bf16.xpose.msra.mxu0 0
  %402 = vmatprep.mubr.bf16.mxu0 0
  %403 = vmatmul.mubr.bf16.gmra.mrb[0].mxu0 %v368
  %v404 = vpop.f32.mrb[0].mxu0
  %v405 = vadd.f32 0.0, %v404
  %v406 = vpop.f32.mrb[0].mxu0
  %v407 = vpop.f32.mrb[0].mxu0
  %v408 = vpop.f32.mrb[0].mxu0
  %409 = vdwg.mxu0
  %410 = vst [vmem:[%s4] sm:$0x3] %v405
  // Predicated region
  $region14: #{gat_forward.6} parent=0 // pred_check
    _
  $region15: #{gat_forward.6} parent=0 // pred_check_branch
    %412 = sbr.rel (0) target = $region17
  $region16: #{gat_forward.6} parent=0 // pred_region
    _
  $region17: #{gat_forward.6} parent=0 // pred_fallthru
    _
  // Predicated region
  $region18: #{gat_forward.6} parent=0 // pred_check
    _
  $region19: #{gat_forward.6} parent=0 // pred_check_branch
    %414 = sbr.rel (0) target = $region21
  $region20: #{gat_forward.6} parent=0 // pred_region
    _
  $region21: #{gat_forward.6} parent=0 // pred_fallthru
    _
  // Predicated region
  $region22: #{gat_forward.6} parent=0 // pred_check
    _
  $region23: #{gat_forward.6} parent=0 // pred_check_branch
    %416 = sbr.rel (0) target = $region25
  $region24: #{gat_forward.6} parent=0 // pred_region
    _
  $region25: #{gat_forward.6} parent=0 // pred_fallthru
    _
  // Predicated region
  $region26: #{gat_forward.6} parent=0 // pred_check
    _
  $region27: #{gat_forward.6} parent=0 // pred_check_branch
    %418 = sbr.rel (0) target = $region29
  $region28: #{gat_forward.6} parent=0 // pred_region
    _
  $region29: #{gat_forward.6} parent=0 // pred_fallthru
    _
  // Predicated region
  $region30: #{gat_forward.6} parent=0 // pred_check
    _
  $region31: #{gat_forward.6} parent=0 // pred_check_branch
    %420 = sbr.rel (0) target = $region33
  $region32: #{gat_forward.6} parent=0 // pred_region
    _
  $region33: #{gat_forward.6} parent=0 // pred_fallthru
    _
  // Predicated region
  $region34: #{gat_forward.6} parent=0 // pred_check
    _
  $region35: #{gat_forward.6} parent=0 // pred_check_branch
    %422 = sbr.rel (0) target = $region37
  $region36: #{gat_forward.6} parent=0 // pred_region
    _
  $region37: #{gat_forward.6} parent=0 // pred_fallthru
    _

// kernel: gat_forward.7
$region0: #{gat_forward.7}
  #allocation0 [shape = 'u32[]', space=smem, size = 0x4, offset = 0x4, fixed_abs, tag = 'smem constant byte address 0x4 - core index']
  #allocation1 [shape = 'u32[144,128]{1,0:T(1,128)}', space=vmem, size = 0x12000, scoped, tag = 'internal scratch']
  #allocation2 [shape = 'f32[64,2]{1,0:T(8,128)}', space=vmem, size = 0x8000, scoped, tag = 'scratch operand']
  #allocation3 [shape = 'f32[64,2]{1,0:T(8,128)}', space=vmem, size = 0x8000, scoped, tag = 'scratch operand']
  #allocation4 [shape = 'f32[64,16]{1,0:T(8,128)}', space=vmem, size = 0x8000, scoped, tag = 'scratch operand']
  #allocation5 [shape = 's32[1]{0}', space=sflag, size = 0x4, scoped, tag = 'scoped memory for gat_forward.7']
  #allocation6 [shape = 'u8[1024]{0}', space=smem, size = 0x400, scoped, tag = 'prefetched SMEM operand 0']
  %s0 = inlined_call_operand.vmem [shape: s32[2,1], index: 0, kind: input, shape index: {}]
  %s1 = inlined_call_operand.vmem [shape: f32[128,2], index: 1, kind: input, shape index: {}]
  %s2 = inlined_call_operand.vmem [shape: f32[2,128], index: 2, kind: input, shape index: {}]
  %s3 = inlined_call_operand.vmem [shape: s8[128,128], index: 3, kind: input, shape index: {}]
  %s4 = inlined_call_operand.vmem [shape: bf16[128,16], index: 4, kind: input, shape index: {}]
  %s5 = inlined_call_operand.vmem [shape: f32[1,16], index: 5, kind: input, shape index: {}]
  %s6 = inlined_call_operand.vmem [shape: bf16[128,16], index: 6, kind: output, shape index: {}]
  %s7 = sld [smem:[#allocation0]]
  $region65: #{gat_forward.7} parent=0
    _
  %s9 = ssub.s32 1, %s7
  %s10 = scalar_select 0, %s9, %s7
  %s11 = sshll.u32 %s0, 4
  %s12 = int_to_ptr.vmem [resolvable:$true] %s11
  %14 = dma.vmem_to_smem %s12, 32, [#allocation6], [#allocation5]
  %15 = dma.done [#allocation5], 32
  %16 = sfence
  loop: start=0, step=1, limit=4
  $region2: #{gat_forward.7} parent=0 // loop_pre_header
    _
  $region3: #{gat_forward.7} parent=0 // loop_header
    %s18 = sphi 0, %s22
    %p19 = scmp.ge.s32.totalorder %s18, 4
    %s25 = sphi 0, %s37
    %s26 = sphi 0, %s33
    %s27 = sphi 0, %s25
    %s28 = sphi 0, %s26
    %s29 = sphi 0, %s27
    %s30 = sphi 0, %s28
    %s40 = sphi 0, %s42
    %s43 = sphi 0, %s40
    %s44 = sphi 0, %s43
    %s60 = sphi 0, %s44
    %s66 = sphi 0, %s68
    %s69 = sphi 0, %s66
    %s70 = sphi 0, %s69
    %s86 = sphi 0, %s70
    %s94 = sphi 0, %s96
    %s97 = sphi 0, %s94
    %s98 = sphi 0, %s97
    %s114 = sphi 0, %s98
    %s120 = sphi 0, %s122
    %s123 = sphi 0, %s120
    %s124 = sphi 0, %s123
    %s140 = sphi 0, %s124
    %s144 = sphi 0, %s144
    %s146 = sphi 0, %s144
    %s147 = sphi 0, %s146
    %s161 = sphi 0, %s147
    %s167 = sphi 0, %s169
    %s170 = sphi 0, %s167
    %s171 = sphi 0, %s170
    %s187 = sphi 0, %s171
  $region4: #{gat_forward.7} parent=0 // loop_header_branch
    %21 = sbr.rel (%p19) target = $region8
  $region5: #{gat_forward.7} parent=0 // loop_body
    %s23 = ssub.s32 %s18, 1
    %s24 = ssub.s32 %s18, 2
    %s31 = sadd.s32 1, %s26
    %p32 = scmp.ge.s32.totalorder %s31, 1
    %s33 = scalar_select %p32, 0, %s31
    %s34 = sadd.s32 1, %s25
    %s35 = scalar_select %p32, %s34, %s25
    %p36 = scmp.ge.s32.totalorder %s35, 2
    %s37 = scalar_select %p36, 0, %s35
    %s38 = ssub.s32 %s25, %s37
    %p39 = scmp.eq.s32.totalorder %s38, 0
    %s41 = sadd.s32 %s40, 1
    %s42 = scalar_select %p39, %s40, %s41
    %p45 = pneg %p39
    %p46 = scmp.eq.s32.totalorder %s18, 1
    %p47 = por %p45, %p46
    %p48 = scmp.ne.s32.totalorder %s40, %s43
    %p49 = scmp.eq.s32.totalorder %s18, 0
    %p50 = por %p48, %p49
    %p51 = scmp.ne.s32.totalorder %s40, %s43
    %p52 = scmp.eq.s32.totalorder %s23, 1
    %p53 = por %p51, %p52
    %p54 = scmp.ne.s32.totalorder %s43, %s44
    %p55 = scmp.eq.s32.totalorder %s23, 0
    %p56 = por %p54, %p55
    %p57 = scmp.ne.s32.totalorder %s43, %s44
    %p58 = scmp.eq.s32.totalorder %s24, 1
    %p59 = por %p57, %p58
    %p61 = scmp.ne.s32.totalorder %s44, %s60
    %p62 = scmp.eq.s32.totalorder %s24, 0
    %p63 = por %p61, %p62
    %s64 = ssub.s32 %s26, %s33
    %p65 = scmp.eq.s32.totalorder %s64, 0
    %s67 = sadd.s32 %s66, 1
    %s68 = scalar_select %p65, %s66, %s67
    %p71 = pneg %p65
    %p72 = scmp.eq.s32.totalorder %s18, 1
    %p73 = por %p71, %p72
    %p74 = scmp.ne.s32.totalorder %s66, %s69
    %p75 = scmp.eq.s32.totalorder %s18, 0
    %p76 = por %p74, %p75
    %p77 = scmp.ne.s32.totalorder %s66, %s69
    %p78 = scmp.eq.s32.totalorder %s23, 1
    %p79 = por %p77, %p78
    %p80 = scmp.ne.s32.totalorder %s69, %s70
    %p81 = scmp.eq.s32.totalorder %s23, 0
    %p82 = por %p80, %p81
    %p83 = scmp.ne.s32.totalorder %s69, %s70
    %p84 = scmp.eq.s32.totalorder %s24, 1
    %p85 = por %p83, %p84
    %p87 = scmp.ne.s32.totalorder %s70, %s86
    %p88 = scmp.eq.s32.totalorder %s24, 0
    %p89 = por %p87, %p88
    %s90 = ssub.s32 %s25, %s37
    %s91 = ssub.s32 %s26, %s33
    %s92 = sor.u32 %s90, %s91
    %p93 = scmp.eq.s32.totalorder %s92, 0
    %s95 = sadd.s32 %s94, 1
    %s96 = scalar_select %p93, %s94, %s95
    %p99 = pneg %p93
    %p100 = scmp.eq.s32.totalorder %s18, 1
    %p101 = por %p99, %p100
    %p102 = scmp.ne.s32.totalorder %s94, %s97
    %p103 = scmp.eq.s32.totalorder %s18, 0
    %p104 = por %p102, %p103
    %p105 = scmp.ne.s32.totalorder %s94, %s97
    %p106 = scmp.eq.s32.totalorder %s23, 1
    %p107 = por %p105, %p106
    %p108 = scmp.ne.s32.totalorder %s97, %s98
    %p109 = scmp.eq.s32.totalorder %s23, 0
    %p110 = por %p108, %p109
    %p111 = scmp.ne.s32.totalorder %s97, %s98
    %p112 = scmp.eq.s32.totalorder %s24, 1
    %p113 = por %p111, %p112
    %p115 = scmp.ne.s32.totalorder %s98, %s114
    %p116 = scmp.eq.s32.totalorder %s24, 0
    %p117 = por %p115, %p116
    %s118 = ssub.s32 %s26, %s33
    %p119 = scmp.eq.s32.totalorder %s118, 0
    %s121 = sadd.s32 %s120, 1
    %s122 = scalar_select %p119, %s120, %s121
    %p125 = pneg %p119
    %p126 = scmp.eq.s32.totalorder %s18, 1
    %p127 = por %p125, %p126
    %p128 = scmp.ne.s32.totalorder %s120, %s123
    %p129 = scmp.eq.s32.totalorder %s18, 0
    %p130 = por %p128, %p129
    %p131 = scmp.ne.s32.totalorder %s120, %s123
    %p132 = scmp.eq.s32.totalorder %s23, 1
    %p133 = por %p131, %p132
    %p134 = scmp.ne.s32.totalorder %s123, %s124
    %p135 = scmp.eq.s32.totalorder %s23, 0
    %p136 = por %p134, %p135
    %p137 = scmp.ne.s32.totalorder %s123, %s124
    %p138 = scmp.eq.s32.totalorder %s24, 1
    %p139 = por %p137, %p138
    %p141 = scmp.ne.s32.totalorder %s124, %s140
    %p142 = scmp.eq.s32.totalorder %s24, 0
    %p143 = por %p141, %p142
    %s145 = sadd.s32 %s144, 1
    %p148 = scmp.eq.s32.totalorder %s18, 1
    %p149 = scmp.ne.s32.totalorder %s144, %s146
    %p150 = scmp.eq.s32.totalorder %s18, 0
    %p151 = por %p149, %p150
    %p152 = scmp.ne.s32.totalorder %s144, %s146
    %p153 = scmp.eq.s32.totalorder %s23, 1
    %p154 = por %p152, %p153
    %p155 = scmp.ne.s32.totalorder %s146, %s147
    %p156 = scmp.eq.s32.totalorder %s23, 0
    %p157 = por %p155, %p156
    %p158 = scmp.ne.s32.totalorder %s146, %s147
    %p159 = scmp.eq.s32.totalorder %s24, 1
    %p160 = por %p158, %p159
    %p162 = scmp.ne.s32.totalorder %s147, %s161
    %p163 = scmp.eq.s32.totalorder %s24, 0
    %p164 = por %p162, %p163
    %s165 = ssub.s32 %s25, %s37
    %p166 = scmp.eq.s32.totalorder %s165, 0
    %s168 = sadd.s32 %s167, 1
    %s169 = scalar_select %p166, %s167, %s168
    %p172 = pneg %p166
    %p173 = scmp.eq.s32.totalorder %s18, 1
    %p174 = por %p172, %p173
    %p175 = scmp.ne.s32.totalorder %s167, %s170
    %p176 = scmp.eq.s32.totalorder %s18, 0
    %p177 = por %p175, %p176
    %p178 = scmp.ne.s32.totalorder %s167, %s170
    %p179 = scmp.eq.s32.totalorder %s23, 1
    %p180 = por %p178, %p179
    %p181 = scmp.ne.s32.totalorder %s170, %s171
    %p182 = scmp.eq.s32.totalorder %s23, 0
    %p183 = por %p181, %p182
    %p184 = scmp.ne.s32.totalorder %s170, %s171
    %p185 = scmp.eq.s32.totalorder %s24, 1
    %p186 = por %p184, %p185
    %p188 = scmp.ne.s32.totalorder %s171, %s187
    %p189 = scmp.eq.s32.totalorder %s24, 0
    %p190 = por %p188, %p189
    %p191 = scmp.le.s32.totalorder 1, %s18
    %p192 = scmp.lt.s32.totalorder %s18, 3
    %p193 = pnand %p191, %p192
    %p194 = pneg %p193
    // Predicated region
    $region9: #{gat_forward.7} parent=5 // pred_check
      _
    $region10: #{gat_forward.7} parent=5 // pred_check_branch
      %196 = sbr.rel (%p193) target = $region12
    $region11: #{gat_forward.7} parent=5 // pred_region
      %s197 = ssub.s32 %s18, 1
      // Predicated region
      $region13: #{gat_forward.7} parent=11 // pred_check
        %p198 = pneg %p82
      $region14: #{gat_forward.7} parent=11 // pred_check_branch
        %200 = sbr.rel (%p198) target = $region16
      $region15: #{gat_forward.7} parent=11 // pred_region
        %p201 = scmp.lt.s32.totalorder %s28, 0
        %s202 = scalar_select %p201, %s28, 0
        %s203 = smul.addr %s202, 2
        %s204 = scalar_lea.vmem %s2, %s203
      $region16: #{gat_forward.7} parent=11 // pred_fallthru
        _
      // Predicated region
      $region17: #{gat_forward.7} parent=11 // pred_check
        %p205 = pneg %p136
      $region18: #{gat_forward.7} parent=11 // pred_check_branch
        %207 = sbr.rel (%p205) target = $region20
      $region19: #{gat_forward.7} parent=11 // pred_region
        %s208 = smul.u32 16, %s28
        %p209 = scmp.lt.s32.totalorder %s208, 15
        %s210 = scalar_select %p209, %s208, 15
        %s211 = smul.addr %s210, 4
        %s212 = scalar_lea.vmem %s4, %s211
        %s213 = smul.u32 16, %s28
      $region20: #{gat_forward.7} parent=11 // pred_fallthru
        _
      // Predicated region
      $region21: #{gat_forward.7} parent=11 // pred_check
        %p214 = pneg %p157
      $region22: #{gat_forward.7} parent=11 // pred_check_branch
        %216 = sbr.rel (%p214) target = $region24
      $region23: #{gat_forward.7} parent=11 // pred_region
        _
      $region24: #{gat_forward.7} parent=11 // pred_fallthru
        _
    $region12: #{gat_forward.7} parent=5 // pred_fallthru
      _
    %p217 = scmp.lt.s32.totalorder %s18, 2
    // Predicated region
    $region25: #{gat_forward.7} parent=5 // pred_check
      %p218 = pneg %p217
    $region26: #{gat_forward.7} parent=5 // pred_check_branch
      %220 = sbr.rel (%p218) target = $region28
    $region27: #{gat_forward.7} parent=5 // pred_region
      // Predicated region
      $region29: #{gat_forward.7} parent=27 // pred_check
        %p221 = pneg %p50
      $region30: #{gat_forward.7} parent=27 // pred_check_branch
        %223 = sbr.rel (%p221) target = $region32
      $region31: #{gat_forward.7} parent=27 // pred_region
        %s224 = smul.u32 8, %s25
        %p225 = scmp.lt.s32.totalorder %s224, 15
        %s226 = scalar_select %p225, %s224, 15
        %s227 = smul.addr %s226, 8
        %s228 = scalar_lea.vmem %s1, %s227
        %s229 = smul.u32 8, %s25
      $region32: #{gat_forward.7} parent=27 // pred_fallthru
        _
      // Predicated region
      $region33: #{gat_forward.7} parent=27 // pred_check
        %p230 = pneg %p104
      $region34: #{gat_forward.7} parent=27 // pred_check_branch
        %232 = sbr.rel (%p230) target = $region36
      $region35: #{gat_forward.7} parent=27 // pred_region
        %s233 = smul.u32 2, %s25
        %p234 = scmp.lt.s32.totalorder %s233, 3
        %s235 = scalar_select %p234, %s233, 3
        %p236 = scmp.lt.s32.totalorder %s26, 0
        %s237 = scalar_select %p236, %s26, 0
        %s238 = sadd.s32 %s237, %s235
        %s239 = smul.addr %s238, 8
        %s240 = scalar_lea.vmem %s3, %s239
        %s241 = smul.u32 2, %s25
      $region36: #{gat_forward.7} parent=27 // pred_fallthru
        _
    $region28: #{gat_forward.7} parent=5 // pred_fallthru
      _
    %p242 = scmp.le.s32.totalorder 1, %s18
    %p243 = scmp.lt.s32.totalorder %s18, 3
    %p244 = pnand %p242, %p243
    %p245 = pneg %p244
    // Predicated region
    $region37: #{gat_forward.7} parent=5 // pred_check
      _
    $region38: #{gat_forward.7} parent=5 // pred_check_branch
      %247 = sbr.rel (%p244) target = $region40
    $region39: #{gat_forward.7} parent=5 // pred_region
      %s248 = ssub.s32 %s18, 1
      %s249 = smul.u32 8, %s27
      %p250 = scmp.lt.s32.totalorder %s249, 15
      %s251 = scalar_select %p250, %s249, 15
      %s252 = smul.addr %s251, 8
      %s253 = scalar_lea.vmem %s1, %s252
      %p254 = pneg %p56
      %p255 = pneg %p53
      %p256 = scmp.lt.s32.totalorder %s28, 0
      %s257 = scalar_select %p256, %s28, 0
      %s258 = smul.addr %s257, 2
      %s259 = scalar_lea.vmem %s2, %s258
      %p260 = pneg %p82
      %p261 = pneg %p79
      %s262 = smul.u32 2, %s27
      %p263 = scmp.lt.s32.totalorder %s262, 3
      %s264 = scalar_select %p263, %s262, 3
      %p265 = scmp.lt.s32.totalorder %s28, 0
      %s266 = scalar_select %p265, %s28, 0
      %s267 = sadd.s32 %s266, %s264
      %s268 = smul.addr %s267, 8
      %s269 = scalar_lea.vmem %s3, %s268
      %p270 = pneg %p110
      %p271 = pneg %p107
      %s272 = smul.u32 16, %s28
      %p273 = scmp.lt.s32.totalorder %s272, 15
      %s274 = scalar_select %p273, %s272, 15
      %s275 = smul.addr %s274, 4
      %s276 = scalar_lea.vmem %s4, %s275
      %p277 = pneg %p136
      %p278 = pneg %p133
      %p279 = pneg %p157
      %p280 = pneg %p154
      %p281 = pneg %p183
      %p282 = pneg %p180
      %s283 = smul.u32 8, %s27
      %p284 = scmp.lt.s32.totalorder %s283, 15
      %s285 = scalar_select %p284, %s283, 15
      %s286 = smul.addr %s285, 4
      %s287 = scalar_lea.vmem %s6, %s286
      %s288 = smul.u32 8, %s27
      %p289 = scmp.lt.s32.totalorder %s288, 15
      %s290 = scalar_select %p289, %s288, 15
      %s291 = smul.addr %s290, 8
      %s292 = scalar_lea.vmem %s1, %s291
      %s293 = smul.u32 8, %s27
      %p294 = scmp.lt.s32.totalorder %s28, 0
      %s295 = scalar_select %p294, %s28, 0
      %s296 = smul.addr %s295, 2
      %s297 = scalar_lea.vmem %s2, %s296
      %s298 = smul.u32 2, %s27
      %p299 = scmp.lt.s32.totalorder %s298, 3
      %s300 = scalar_select %p299, %s298, 3
      %p301 = scmp.lt.s32.totalorder %s28, 0
      %s302 = scalar_select %p301, %s28, 0
      %s303 = sadd.s32 %s302, %s300
      %s304 = smul.addr %s303, 8
      %s305 = scalar_lea.vmem %s3, %s304
      %s306 = smul.u32 2, %s27
      %s307 = smul.u32 16, %s28
      %p308 = scmp.lt.s32.totalorder %s307, 15
      %s309 = scalar_select %p308, %s307, 15
      %s310 = smul.addr %s309, 4
      %s311 = scalar_lea.vmem %s4, %s310
      %s312 = smul.u32 16, %s28
      %s313 = smul.u32 8, %s27
      %p314 = scmp.lt.s32.totalorder %s313, 15
      %s315 = scalar_select %p314, %s313, 15
      %s316 = smul.addr %s315, 4
      %s317 = scalar_lea.vmem %s6, %s316
      %s318 = smul.u32 8, %s27
      %p322 = scmp.eq.s32.totalorder %s28, 0
      // Predicated region
      $region41: #{gat_forward.7} parent=39 // pred_check
        %p323 = pneg %p322
      $region42: #{gat_forward.7} parent=39 // pred_check_branch
        %325 = sbr.rel (%p323) target = $region44
      $region43: #{gat_forward.7} parent=39 // pred_region
        %vm326 = vcmask 15360
        %327 = vst.msk [vmem:[#allocation2] sm:$0xff] %vm326, -1e+30
        %328 = vst.msk [vmem:[#allocation2 + $0x8] sm:$0xff] %vm326, -1e+30
        %329 = vst.msk [vmem:[#allocation2 + $0x10] sm:$0xff] %vm326, -1e+30
        %330 = vst.msk [vmem:[#allocation2 + $0x18] sm:$0xff] %vm326, -1e+30
        %331 = vst.msk [vmem:[#allocation2 + $0x20] sm:$0xff] %vm326, -1e+30
        %332 = vst.msk [vmem:[#allocation2 + $0x28] sm:$0xff] %vm326, -1e+30
        %333 = vst.msk [vmem:[#allocation2 + $0x30] sm:$0xff] %vm326, -1e+30
        %334 = vst.msk [vmem:[#allocation2 + $0x38] sm:$0xff] %vm326, -1e+30
        %335 = vst.msk [vmem:[#allocation3] sm:$0xff] %vm326, 0.0
        %336 = vst.msk [vmem:[#allocation3 + $0x8] sm:$0xff] %vm326, 0.0
        %337 = vst.msk [vmem:[#allocation3 + $0x10] sm:$0xff] %vm326, 0.0
        %338 = vst.msk [vmem:[#allocation3 + $0x18] sm:$0xff] %vm326, 0.0
        %339 = vst.msk [vmem:[#allocation3 + $0x20] sm:$0xff] %vm326, 0.0
        %340 = vst.msk [vmem:[#allocation3 + $0x28] sm:$0xff] %vm326, 0.0
        %341 = vst.msk [vmem:[#allocation3 + $0x30] sm:$0xff] %vm326, 0.0
        %342 = vst.msk [vmem:[#allocation3 + $0x38] sm:$0xff] %vm326, 0.0
        %vm343 = vcmask 130048
        %344 = vst.msk [vmem:[#allocation4] sm:$0xff] %vm343, 0.0
        %345 = vst.msk [vmem:[#allocation4 + $0x8] sm:$0xff] %vm343, 0.0
        %346 = vst.msk [vmem:[#allocation4 + $0x10] sm:$0xff] %vm343, 0.0
        %347 = vst.msk [vmem:[#allocation4 + $0x18] sm:$0xff] %vm343, 0.0
        %348 = vst.msk [vmem:[#allocation4 + $0x20] sm:$0xff] %vm343, 0.0
        %349 = vst.msk [vmem:[#allocation4 + $0x28] sm:$0xff] %vm343, 0.0
        %350 = vst.msk [vmem:[#allocation4 + $0x30] sm:$0xff] %vm343, 0.0
        %351 = vst.msk [vmem:[#allocation4 + $0x38] sm:$0xff] %vm343, 0.0
      $region44: #{gat_forward.7} parent=39 // pred_fallthru
        _
      %s352 = sshra.s32 %s28, 7
      %s353 = sand.u32 %s28, 127
      %s354 = sadd.s32 %s352, %s27
      %s355 = smul.u32 %s354, 128
      %s356 = sshra.s32 %s28, 7
      %s357 = sand.u32 %s28, 127
      %s358 = sadd.s32 %s355, %s357
      %s359 = sld [smem:[#allocation6 + %s358]]
      %p360 = scmp.gt.s32.totalorder %s359, 0
      // Predicated region
      $region45: #{gat_forward.7} parent=39 // pred_check
        %p361 = pneg %p360
      $region46: #{gat_forward.7} parent=39 // pred_check_branch
        %363 = sbr.rel (%p361) target = $region48
      $region47: #{gat_forward.7} parent=39 // pred_region
        %v364 = vld [vmem:[%s305] sm:$0xff]
        %v365 = vld [vmem:[%s305 + $0x8] sm:$0xff]
        %vm366 = vnez %v364
        %vm367 = vnez %v365
        %v368 = vsel %vm366, 16843009, 0
        %v369 = vsel %vm367, 16843009, 0
        %v370 = vunpack.c.0.s8 %v368
        %v371 = vunpack.c.1.s8 %v368
        %v372 = vunpack.c.2.s8 %v368
        %v373 = vunpack.c.3.s8 %v368
        %v374 = vunpack.c.0.s8 %v369
        %v375 = vunpack.c.1.s8 %v369
        %v376 = vunpack.c.2.s8 %v369
        %v377 = vunpack.c.3.s8 %v369
        %v378 = vpack.c.b16 %v370, %v370
        %v379 = vpack.c.b8 %v378, %v378
        %v380 = vpack.c.b16 %v371, %v371
        %v381 = vpack.c.b8 %v380, %v380
        %v382 = vpack.c.b16 %v372, %v372
        %v383 = vpack.c.b8 %v382, %v382
        %v384 = vpack.c.b16 %v373, %v373
        %v385 = vpack.c.b8 %v384, %v384
        %v386 = vpack.c.b16 %v374, %v374
        %v387 = vpack.c.b8 %v386, %v386
        %v388 = vpack.c.b16 %v375, %v375
        %v389 = vpack.c.b8 %v388, %v388
        %v390 = vpack.c.b16 %v376, %v376
        %v391 = vpack.c.b8 %v390, %v390
        %v392 = vpack.c.b16 %v377, %v377
        %v393 = vpack.c.b8 %v392, %v392
        %vm394 = vnez %v379
        %vm395 = vnez %v381
        %vm396 = vnez %v383
        %vm397 = vnez %v385
        %vm398 = vnez %v387
        %vm399 = vnez %v389
        %vm400 = vnez %v391
        %vm401 = vnez %v393
        %v402 = vsel %vm394, 16843009, 0
        %v403 = vsel %vm395, 16843009, 0
        %v404 = vsel %vm396, 16843009, 0
        %v405 = vsel %vm397, 16843009, 0
        %v406 = vsel %vm398, 16843009, 0
        %v407 = vsel %vm399, 16843009, 0
        %v408 = vsel %vm400, 16843009, 0
        %v409 = vsel %vm401, 16843009, 0
        %v410 = vunpack.c.0.s8 %v402
        %v411 = vunpack.c.0.s8 %v403
        %v412 = vunpack.c.0.s8 %v404
        %v413 = vunpack.c.0.s8 %v405
        %v414 = vunpack.c.0.s8 %v406
        %v415 = vunpack.c.0.s8 %v407
        %v416 = vunpack.c.0.s8 %v408
        %v417 = vunpack.c.0.s8 %v409
        %vm418 = vcmp.ne.s32.totalorder %v410, 0
        %vm419 = vcmp.ne.s32.totalorder %v411, 0
        %vm420 = vcmp.ne.s32.totalorder %v412, 0
        %vm421 = vcmp.ne.s32.totalorder %v413, 0
        %vm422 = vcmp.ne.s32.totalorder %v414, 0
        %vm423 = vcmp.ne.s32.totalorder %v415, 0
        %vm424 = vcmp.ne.s32.totalorder %v416, 0
        %vm425 = vcmp.ne.s32.totalorder %v417, 0
        %v426 = vsel %vm418, 1, 0
        %v427 = vsel %vm419, 1, 0
        %v428 = vsel %vm420, 1, 0
        %v429 = vsel %vm421, 1, 0
        %v430 = vsel %vm422, 1, 0
        %v431 = vsel %vm423, 1, 0
        %v432 = vsel %vm424, 1, 0
        %v433 = vsel %vm425, 1, 0
        %v434 = vcvt.s32.f32 %v426
        %v435 = vcvt.s32.f32 %v427
        %v436 = vcvt.s32.f32 %v428
        %v437 = vcvt.s32.f32 %v429
        %v438 = vcvt.s32.f32 %v430
        %v439 = vcvt.s32.f32 %v431
        %v440 = vcvt.s32.f32 %v432
        %v441 = vcvt.s32.f32 %v433
        %v442 = vsub.f32 %v434, 1.0
        %v443 = vsub.f32 %v435, 1.0
        %v444 = vsub.f32 %v436, 1.0
        %v445 = vsub.f32 %v437, 1.0
        %v446 = vsub.f32 %v438, 1.0
        %v447 = vsub.f32 %v439, 1.0
        %v448 = vsub.f32 %v440, 1.0
        %v449 = vsub.f32 %v441, 1.0
        %v450 = vmul.f32 %v442, 1e+30
        %v451 = vmul.f32 %v443, 1e+30
        %v452 = vmul.f32 %v444, 1e+30
        %v453 = vmul.f32 %v445, 1e+30
        %v454 = vmul.f32 %v446, 1e+30
        %v455 = vmul.f32 %v447, 1e+30
        %v456 = vmul.f32 %v448, 1e+30
        %v457 = vmul.f32 %v449, 1e+30
        %v458 = vld [vmem:[%s311] sm:$0xf]
        %v459 = vld [vmem:[%s311 + $0x4] sm:$0xf]
        %v460 = vld [vmem:[%s311 + $0x8] sm:$0xf]
        %v461 = vld [vmem:[%s311 + $0xc] sm:$0xf]
        %v462 = vld [vmem:[%s311 + $0x10] sm:$0xf]
        %v463 = vld [vmem:[%s311 + $0x14] sm:$0xf]
        %v464 = vld [vmem:[%s311 + $0x18] sm:$0xf]
        %v465 = vld [vmem:[%s311 + $0x1c] sm:$0xf]
        %v466 = vld [vmem:[%s311 + $0x20] sm:$0xf]
        %v467 = vld [vmem:[%s311 + $0x24] sm:$0xf]
        %v468 = vld [vmem:[%s311 + $0x28] sm:$0xf]
        %v469 = vld [vmem:[%s311 + $0x2c] sm:$0xf]
        %v470 = vld [vmem:[%s311 + $0x30] sm:$0xf]
        %v471 = vld [vmem:[%s311 + $0x34] sm:$0xf]
        %v472 = vld [vmem:[%s311 + $0x38] sm:$0xf]
        %v473 = vld [vmem:[%s311 + $0x3c] sm:$0xf]
        %v474 = vld [vmem:[%s292] sm:$0xff]
        %v475 = vld [vmem:[%s292 + $0x8] sm:$0xff]
        %v476 = vld [vmem:[%s292 + $0x10] sm:$0xff]
        %v477 = vld [vmem:[%s292 + $0x18] sm:$0xff]
        %v478 = vld [vmem:[%s292 + $0x20] sm:$0xff]
        %v479 = vld [vmem:[%s292 + $0x28] sm:$0xff]
        %v480 = vld [vmem:[%s292 + $0x30] sm:$0xff]
        %v481 = vld [vmem:[%s292 + $0x38] sm:$0xff]
        %v482 = vld [vmem:[%s297] sm:$0x3]
        %484 = vset.pattern.permute.xlu0 0
        %485 = vperm.xlu0 %484, %v474
        %v486 = vpop.permute.xlu0 %485
        %489 = vset.pattern.permute.xlu0 0
        %490 = vperm.xlu0 %489, %v475
        %v491 = vpop.permute.xlu0 %490
        %494 = vset.pattern.permute.xlu0 0
        %495 = vperm.xlu0 %494, %v476
        %v496 = vpop.permute.xlu0 %495
        %499 = vset.pattern.permute.xlu0 0
        %500 = vperm.xlu0 %499, %v477
        %v501 = vpop.permute.xlu0 %500
        %504 = vset.pattern.permute.xlu0 0
        %505 = vperm.xlu0 %504, %v478
        %v506 = vpop.permute.xlu0 %505
        %509 = vset.pattern.permute.xlu0 0
        %510 = vperm.xlu0 %509, %v479
        %v511 = vpop.permute.xlu0 %510
        %514 = vset.pattern.permute.xlu0 0
        %515 = vperm.xlu0 %514, %v480
        %v516 = vpop.permute.xlu0 %515
        %519 = vset.pattern.permute.xlu0 0
        %520 = vperm.xlu0 %519, %v481
        %v521 = vpop.permute.xlu0 %520
        %v523 = vlaneseq
        %v524 = vshrl.u32 %v523, 7
        %v525 = vsub.s32 0, %v524
        %v526 = vrot.slane %v482, %v525
        %v527 = vadd.f32 %v486, %v526
        %v528 = vadd.f32 %v491, %v526
        %v529 = vadd.f32 %v496, %v526
        %v530 = vadd.f32 %v501, %v526
        %v531 = vadd.f32 %v506, %v526
        %v532 = vadd.f32 %v511, %v526
        %v533 = vadd.f32 %v516, %v526
        %v534 = vadd.f32 %v521, %v526
        %v535 = vmul.f32 %v527, 0.2
        %v536 = vmul.f32 %v528, 0.2
        %v537 = vmul.f32 %v529, 0.2
        %v538 = vmul.f32 %v530, 0.2
        %v539 = vmul.f32 %v531, 0.2
        %v540 = vmul.f32 %v532, 0.2
        %v541 = vmul.f32 %v533, 0.2
        %v542 = vmul.f32 %v534, 0.2
        %v543 = vmax.f32 %v527, %v535
        %v544 = vmax.f32 %v528, %v536
        %v545 = vmax.f32 %v529, %v537
        %v546 = vmax.f32 %v530, %v538
        %v547 = vmax.f32 %v531, %v539
        %v548 = vmax.f32 %v532, %v540
        %v549 = vmax.f32 %v533, %v541
        %v550 = vmax.f32 %v534, %v542
        %v551 = vadd.f32 %v543, %v450
        %v552 = vadd.f32 %v544, %v451
        %v553 = vadd.f32 %v545, %v452
        %v554 = vadd.f32 %v546, %v453
        %v555 = vadd.f32 %v547, %v454
        %v556 = vadd.f32 %v548, %v455
        %v557 = vadd.f32 %v549, %v456
        %v558 = vadd.f32 %v550, %v457
        %v559 = vld [vmem:[#allocation2] sm:$0xff]
        %v560 = vld [vmem:[#allocation2 + $0x8] sm:$0xff]
        %v561 = vld [vmem:[#allocation2 + $0x10] sm:$0xff]
        %v562 = vld [vmem:[#allocation2 + $0x18] sm:$0xff]
        %v563 = vld [vmem:[#allocation2 + $0x20] sm:$0xff]
        %v564 = vld [vmem:[#allocation2 + $0x28] sm:$0xff]
        %v565 = vld [vmem:[#allocation2 + $0x30] sm:$0xff]
        %v566 = vld [vmem:[#allocation2 + $0x38] sm:$0xff]
        %567 = vmax.xlane.f32.xlu0 %v551
        %v568 = vpop.xlane.xlu0 %567
        %569 = vmax.xlane.f32.xlu0 %v552
        %v570 = vpop.xlane.xlu0 %569
        %571 = vmax.xlane.f32.xlu0 %v553
        %v572 = vpop.xlane.xlu0 %571
        %573 = vmax.xlane.f32.xlu0 %v554
        %v574 = vpop.xlane.xlu0 %573
        %575 = vmax.xlane.f32.xlu0 %v555
        %v576 = vpop.xlane.xlu0 %575
        %577 = vmax.xlane.f32.xlu0 %v556
        %v578 = vpop.xlane.xlu0 %577
        %579 = vmax.xlane.f32.xlu0 %v557
        %v580 = vpop.xlane.xlu0 %579
        %581 = vmax.xlane.f32.xlu0 %v558
        %v582 = vpop.xlane.xlu0 %581
        %v583 = vmax.f32 %v559, %v568
        %v584 = vmax.f32 %v560, %v570
        %v585 = vmax.f32 %v561, %v572
        %v586 = vmax.f32 %v562, %v574
        %v587 = vmax.f32 %v563, %v576
        %v588 = vmax.f32 %v564, %v578
        %v589 = vmax.f32 %v565, %v580
        %v590 = vmax.f32 %v566, %v582
        %592 = vset.pattern.permute.xlu0 0
        %593 = vperm.xlu0 %592, %v583
        %v594 = vpop.permute.xlu0 %593
        %597 = vset.pattern.permute.xlu0 0
        %598 = vperm.xlu0 %597, %v584
        %v599 = vpop.permute.xlu0 %598
        %602 = vset.pattern.permute.xlu0 0
        %603 = vperm.xlu0 %602, %v585
        %v604 = vpop.permute.xlu0 %603
        %607 = vset.pattern.permute.xlu0 0
        %608 = vperm.xlu0 %607, %v586
        %v609 = vpop.permute.xlu0 %608
        %612 = vset.pattern.permute.xlu0 0
        %613 = vperm.xlu0 %612, %v587
        %v614 = vpop.permute.xlu0 %613
        %617 = vset.pattern.permute.xlu0 0
        %618 = vperm.xlu0 %617, %v588
        %v619 = vpop.permute.xlu0 %618
        %622 = vset.pattern.permute.xlu0 0
        %623 = vperm.xlu0 %622, %v589
        %v624 = vpop.permute.xlu0 %623
        %627 = vset.pattern.permute.xlu0 0
        %628 = vperm.xlu0 %627, %v590
        %v629 = vpop.permute.xlu0 %628
        %v631 = vsub.f32 %v551, %v594
        %v632 = vsub.f32 %v552, %v599
        %v633 = vsub.f32 %v553, %v604
        %v634 = vsub.f32 %v554, %v609
        %v635 = vsub.f32 %v555, %v614
        %v636 = vsub.f32 %v556, %v619
        %v637 = vsub.f32 %v557, %v624
        %v638 = vsub.f32 %v558, %v629
        %v639 = vmul.f32 %v631, 1.442695
        %v640 = vpow.pop %v639
        %v641 = vmul.f32 %v632, 1.442695
        %v642 = vpow.pop %v641
        %v643 = vmul.f32 %v633, 1.442695
        %v644 = vpow.pop %v643
        %v645 = vmul.f32 %v634, 1.442695
        %v646 = vpow.pop %v645
        %v647 = vmul.f32 %v635, 1.442695
        %v648 = vpow.pop %v647
        %v649 = vmul.f32 %v636, 1.442695
        %v650 = vpow.pop %v649
        %v651 = vmul.f32 %v637, 1.442695
        %v652 = vpow.pop %v651
        %v653 = vmul.f32 %v638, 1.442695
        %v654 = vpow.pop %v653
        %v655 = vmul.f32 %v640, %v434
        %v656 = vmul.f32 %v642, %v435
        %v657 = vmul.f32 %v644, %v436
        %v658 = vmul.f32 %v646, %v437
        %v659 = vmul.f32 %v648, %v438
        %v660 = vmul.f32 %v650, %v439
        %v661 = vmul.f32 %v652, %v440
        %v662 = vmul.f32 %v654, %v441
        %v663 = vsub.f32 %v559, %v583
        %v664 = vsub.f32 %v560, %v584
        %v665 = vsub.f32 %v561, %v585
        %v666 = vsub.f32 %v562, %v586
        %v667 = vsub.f32 %v563, %v587
        %v668 = vsub.f32 %v564, %v588
        %v669 = vsub.f32 %v565, %v589
        %v670 = vsub.f32 %v566, %v590
        %v671 = vmul.f32 %v663, 1.442695
        %v672 = vpow.pop %v671
        %v673 = vmul.f32 %v664, 1.442695
        %v674 = vpow.pop %v673
        %v675 = vmul.f32 %v665, 1.442695
        %v676 = vpow.pop %v675
        %v677 = vmul.f32 %v666, 1.442695
        %v678 = vpow.pop %v677
        %v679 = vmul.f32 %v667, 1.442695
        %v680 = vpow.pop %v679
        %v681 = vmul.f32 %v668, 1.442695
        %v682 = vpow.pop %v681
        %v683 = vmul.f32 %v669, 1.442695
        %v684 = vpow.pop %v683
        %v685 = vmul.f32 %v670, 1.442695
        %v686 = vpow.pop %v685
        %v687 = vld [vmem:[#allocation3] sm:$0xff]
        %v688 = vld [vmem:[#allocation3 + $0x8] sm:$0xff]
        %v689 = vld [vmem:[#allocation3 + $0x10] sm:$0xff]
        %v690 = vld [vmem:[#allocation3 + $0x18] sm:$0xff]
        %v691 = vld [vmem:[#allocation3 + $0x20] sm:$0xff]
        %v692 = vld [vmem:[#allocation3 + $0x28] sm:$0xff]
        %v693 = vld [vmem:[#allocation3 + $0x30] sm:$0xff]
        %v694 = vld [vmem:[#allocation3 + $0x38] sm:$0xff]
        %v695 = vmul.f32 %v672, %v687
        %v696 = vmul.f32 %v674, %v688
        %v697 = vmul.f32 %v676, %v689
        %v698 = vmul.f32 %v678, %v690
        %v699 = vmul.f32 %v680, %v691
        %v700 = vmul.f32 %v682, %v692
        %v701 = vmul.f32 %v684, %v693
        %v702 = vmul.f32 %v686, %v694
        %703 = vadd.xlane.f32.xlu0 %v655
        %v704 = vpop.xlane.xlu0 %703
        %705 = vadd.xlane.f32.xlu0 %v656
        %v706 = vpop.xlane.xlu0 %705
        %707 = vadd.xlane.f32.xlu0 %v657
        %v708 = vpop.xlane.xlu0 %707
        %709 = vadd.xlane.f32.xlu0 %v658
        %v710 = vpop.xlane.xlu0 %709
        %711 = vadd.xlane.f32.xlu0 %v659
        %v712 = vpop.xlane.xlu0 %711
        %713 = vadd.xlane.f32.xlu0 %v660
        %v714 = vpop.xlane.xlu0 %713
        %715 = vadd.xlane.f32.xlu0 %v661
        %v716 = vpop.xlane.xlu0 %715
        %717 = vadd.xlane.f32.xlu0 %v662
        %v718 = vpop.xlane.xlu0 %717
        %v719 = vadd.f32 %v695, %v704
        %v720 = vadd.f32 %v696, %v706
        %v721 = vadd.f32 %v697, %v708
        %v722 = vadd.f32 %v698, %v710
        %v723 = vadd.f32 %v699, %v712
        %v724 = vadd.f32 %v700, %v714
        %v725 = vadd.f32 %v701, %v716
        %v726 = vadd.f32 %v702, %v718
        %vm727 = vcmask 7168
        %728 = vst.msk [vmem:[#allocation3] sm:$0xff] %vm727, %v719
        %729 = vst.msk [vmem:[#allocation3 + $0x8] sm:$0xff] %vm727, %v720
        %730 = vst.msk [vmem:[#allocation3 + $0x10] sm:$0xff] %vm727, %v721
        %731 = vst.msk [vmem:[#allocation3 + $0x18] sm:$0xff] %vm727, %v722
        %732 = vst.msk [vmem:[#allocation3 + $0x20] sm:$0xff] %vm727, %v723
        %733 = vst.msk [vmem:[#allocation3 + $0x28] sm:$0xff] %vm727, %v724
        %734 = vst.msk [vmem:[#allocation3 + $0x30] sm:$0xff] %vm727, %v725
        %735 = vst.msk [vmem:[#allocation3 + $0x38] sm:$0xff] %vm727, %v726
        %v736 = vld [vmem:[#allocation4] sm:$0xff]
        %v737 = vld [vmem:[#allocation4 + $0x8] sm:$0xff]
        %v738 = vld [vmem:[#allocation4 + $0x10] sm:$0xff]
        %v739 = vld [vmem:[#allocation4 + $0x18] sm:$0xff]
        %v740 = vld [vmem:[#allocation4 + $0x20] sm:$0xff]
        %v741 = vld [vmem:[#allocation4 + $0x28] sm:$0xff]
        %v742 = vld [vmem:[#allocation4 + $0x30] sm:$0xff]
        %v743 = vld [vmem:[#allocation4 + $0x38] sm:$0xff]
        %745 = vset.pattern.permute.xlu0 0
        %746 = vperm.xlu0 %745, %v672
        %v747 = vpop.permute.xlu0 %746
        %750 = vset.pattern.permute.xlu0 0
        %751 = vperm.xlu0 %750, %v674
        %v752 = vpop.permute.xlu0 %751
        %755 = vset.pattern.permute.xlu0 0
        %756 = vperm.xlu0 %755, %v676
        %v757 = vpop.permute.xlu0 %756
        %760 = vset.pattern.permute.xlu0 0
        %761 = vperm.xlu0 %760, %v678
        %v762 = vpop.permute.xlu0 %761
        %765 = vset.pattern.permute.xlu0 0
        %766 = vperm.xlu0 %765, %v680
        %v767 = vpop.permute.xlu0 %766
        %770 = vset.pattern.permute.xlu0 0
        %771 = vperm.xlu0 %770, %v682
        %v772 = vpop.permute.xlu0 %771
        %775 = vset.pattern.permute.xlu0 0
        %776 = vperm.xlu0 %775, %v684
        %v777 = vpop.permute.xlu0 %776
        %780 = vset.pattern.permute.xlu0 0
        %781 = vperm.xlu0 %780, %v686
        %v782 = vpop.permute.xlu0 %781
        %v784 = vmul.f32 %v747, %v736
        %v785 = vmul.f32 %v752, %v737
        %v786 = vmul.f32 %v757, %v738
        %v787 = vmul.f32 %v762, %v739
        %v788 = vmul.f32 %v767, %v740
        %v789 = vmul.f32 %v772, %v741
        %v790 = vmul.f32 %v777, %v742
        %v791 = vmul.f32 %v782, %v743
        %v792 = vpack.c.bf16 %v656, %v655
        %v793 = vpack.c.bf16 %v658, %v657
        %v794 = vpack.c.bf16 %v660, %v659
        %v795 = vpack.c.bf16 %v662, %v661
        %v812 = vunpack.c.l.b16 %v458
        %v813 = vunpack.c.l.b16 %v459
        %v814 = vunpack.c.l.b16 %v460
        %v815 = vunpack.c.l.b16 %v461
        %v816 = vunpack.c.l.b16 %v462
        %v817 = vunpack.c.l.b16 %v463
        %v818 = vunpack.c.l.b16 %v464
        %v819 = vunpack.c.l.b16 %v465
        %v820 = vunpack.c.l.b16 %v466
        %v821 = vunpack.c.l.b16 %v467
        %v822 = vunpack.c.l.b16 %v468
        %v823 = vunpack.c.l.b16 %v469
        %v824 = vunpack.c.l.b16 %v470
        %v825 = vunpack.c.l.b16 %v471
        %v826 = vunpack.c.l.b16 %v472
        %v827 = vunpack.c.l.b16 %v473
        %v828 = vpack.c.b16 %v813, %v812
        %v829 = vpack.c.b16 %v815, %v814
        %v830 = vpack.c.b16 %v817, %v816
        %v831 = vpack.c.b16 %v819, %v818
        %v832 = vpack.c.b16 %v821, %v820
        %v833 = vpack.c.b16 %v823, %v822
        %v834 = vpack.c.b16 %v825, %v824
        %v835 = vpack.c.b16 %v827, %v826
        %844 = vmatprep.subr.bf16.mxu0 0
        %845 = vmatpush1.bf16.msra.mxu0 %v828
        %846 = vmatprep.subr.bf16.mxu0 0
        %847 = vmatpush1.bf16.msra.mxu0 %v829
        %848 = vmatprep.subr.bf16.mxu0 0
        %849 = vmatpush1.bf16.msra.mxu0 %v830
        %850 = vmatprep.subr.bf16.mxu0 0
        %851 = vmatpush1.bf16.msra.mxu0 %v831
        %852 = vmatprep.subr.bf16.mxu0 0
        %853 = vmatpush1.bf16.msra.mxu0 %v832
        %854 = vmatprep.subr.bf16.mxu0 0
        %855 = vmatpush1.bf16.msra.mxu0 %v833
        %856 = vmatprep.subr.bf16.mxu0 0
        %857 = vmatpush1.bf16.msra.mxu0 %v834
        %858 = vmatprep.subr.bf16.mxu0 0
        %859 = vmatpush1.bf16.msra.mxu0 %v835
        %860 = vmatprep.subr.bf16.mxu0 0
        %861 = vmatpush1.bf16.msra.mxu0 0
        %862 = vmatprep.subr.bf16.mxu0 0
        %863 = vmatpush1.bf16.msra.mxu0 0
        %864 = vmatprep.subr.bf16.mxu0 0
        %865 = vmatpush1.bf16.msra.mxu0 0
        %866 = vmatprep.subr.bf16.mxu0 0
        %867 = vmatpush1.bf16.msra.mxu0 0
        %868 = vmatprep.subr.bf16.mxu0 0
        %869 = vmatpush1.bf16.msra.mxu0 0
        %870 = vmatprep.subr.bf16.mxu0 0
        %871 = vmatpush1.bf16.msra.mxu0 0
        %872 = vmatprep.subr.bf16.mxu0 0
        %873 = vmatpush1.bf16.msra.mxu0 0
        %874 = vmatprep.subr.bf16.mxu0 0
        %875 = vmatpush1.bf16.msra.mxu0 0
        %876 = vmatprep.mubr.bf16.mxu0 0
        %877 = vmatmul.mubr.bf16.gmra.mrb[0].mxu0 %v792
        %v878 = vpop.f32.mrb[0].mxu0
        %v879 = vadd.f32 0.0, %v878
        %v880 = vpop.f32.mrb[0].mxu0
        %v881 = vpop.f32.mrb[0].mxu0
        %v882 = vadd.f32 0.0, %v881
        %v883 = vpop.f32.mrb[0].mxu0
        %884 = vmatprep.mubr.bf16.mxu0 0
        %885 = vmatmul.mubr.bf16.gmra.mrb[0].mxu0 %v793
        %v886 = vpop.f32.mrb[0].mxu0
        %v887 = vadd.f32 0.0, %v886
        %v888 = vpop.f32.mrb[0].mxu0
        %v889 = vpop.f32.mrb[0].mxu0
        %v890 = vadd.f32 0.0, %v889
        %v891 = vpop.f32.mrb[0].mxu0
        %892 = vmatprep.mubr.bf16.mxu0 0
        %893 = vmatmul.mubr.bf16.gmra.mrb[0].mxu0 %v794
        %v894 = vpop.f32.mrb[0].mxu0
        %v895 = vadd.f32 0.0, %v894
        %v896 = vpop.f32.mrb[0].mxu0
        %v897 = vpop.f32.mrb[0].mxu0
        %v898 = vadd.f32 0.0, %v897
        %v899 = vpop.f32.mrb[0].mxu0
        %900 = vmatprep.mubr.bf16.mxu0 0
        %901 = vmatmul.mubr.bf16.gmra.mrb[0].mxu0 %v795
        %v902 = vpop.f32.mrb[0].mxu0
        %v903 = vadd.f32 0.0, %v902
        %v904 = vpop.f32.mrb[0].mxu0
        %v905 = vpop.f32.mrb[0].mxu0
        %v906 = vadd.f32 0.0, %v905
        %v907 = vpop.f32.mrb[0].mxu0
        %908 = vdwg.mxu0
        %v909 = vadd.f32 %v784, %v879
        %v910 = vadd.f32 %v785, %v882
        %v911 = vadd.f32 %v786, %v887
        %v912 = vadd.f32 %v787, %v890
        %v913 = vadd.f32 %v788, %v895
        %v914 = vadd.f32 %v789, %v898
        %v915 = vadd.f32 %v790, %v903
        %v916 = vadd.f32 %v791, %v906
        %vm917 = vcmask 64512
        %918 = vst.msk [vmem:[#allocation4] sm:$0xff] %vm917, %v909
        %919 = vst.msk [vmem:[#allocation4 + $0x8] sm:$0xff] %vm917, %v910
        %920 = vst.msk [vmem:[#allocation4 + $0x10] sm:$0xff] %vm917, %v911
        %921 = vst.msk [vmem:[#allocation4 + $0x18] sm:$0xff] %vm917, %v912
        %922 = vst.msk [vmem:[#allocation4 + $0x20] sm:$0xff] %vm917, %v913
        %923 = vst.msk [vmem:[#allocation4 + $0x28] sm:$0xff] %vm917, %v914
        %924 = vst.msk [vmem:[#allocation4 + $0x30] sm:$0xff] %vm917, %v915
        %925 = vst.msk [vmem:[#allocation4 + $0x38] sm:$0xff] %vm917, %v916
        %926 = vst.msk [vmem:[#allocation2] sm:$0xff] %vm727, %v583
        %927 = vst.msk [vmem:[#allocation2 + $0x8] sm:$0xff] %vm727, %v584
        %928 = vst.msk [vmem:[#allocation2 + $0x10] sm:$0xff] %vm727, %v585
        %929 = vst.msk [vmem:[#allocation2 + $0x18] sm:$0xff] %vm727, %v586
        %930 = vst.msk [vmem:[#allocation2 + $0x20] sm:$0xff] %vm727, %v587
        %931 = vst.msk [vmem:[#allocation2 + $0x28] sm:$0xff] %vm727, %v588
        %932 = vst.msk [vmem:[#allocation2 + $0x30] sm:$0xff] %vm727, %v589
        %933 = vst.msk [vmem:[#allocation2 + $0x38] sm:$0xff] %vm727, %v590
        %934 = vset.pattern.permute.xlu0 1
        %935 = vperm.xlu0 %934, %v474
        %v936 = vpop.permute.xlu0 %935
        %938 = vset.pattern.permute.xlu0 1
        %939 = vperm.xlu0 %938, %v475
        %v940 = vpop.permute.xlu0 %939
        %942 = vset.pattern.permute.xlu0 1
        %943 = vperm.xlu0 %942, %v476
        %v944 = vpop.permute.xlu0 %943
        %946 = vset.pattern.permute.xlu0 1
        %947 = vperm.xlu0 %946, %v477
        %v948 = vpop.permute.xlu0 %947
        %950 = vset.pattern.permute.xlu0 1
        %951 = vperm.xlu0 %950, %v478
        %v952 = vpop.permute.xlu0 %951
        %954 = vset.pattern.permute.xlu0 1
        %955 = vperm.xlu0 %954, %v479
        %v956 = vpop.permute.xlu0 %955
        %958 = vset.pattern.permute.xlu0 1
        %959 = vperm.xlu0 %958, %v480
        %v960 = vpop.permute.xlu0 %959
        %962 = vset.pattern.permute.xlu0 1
        %963 = vperm.xlu0 %962, %v481
        %v964 = vpop.permute.xlu0 %963
        %v966 = vlaneseq
        %v967 = vshrl.u32 %v966, 7
        %v968 = vsub.s32 1, %v967
        %v969 = vrot.slane %v482, %v968
        %v970 = vadd.f32 %v936, %v969
        %v971 = vadd.f32 %v940, %v969
        %v972 = vadd.f32 %v944, %v969
        %v973 = vadd.f32 %v948, %v969
        %v974 = vadd.f32 %v952, %v969
        %v975 = vadd.f32 %v956, %v969
        %v976 = vadd.f32 %v960, %v969
        %v977 = vadd.f32 %v964, %v969
        %v978 = vmul.f32 %v970, 0.2
        %v979 = vmul.f32 %v971, 0.2
        %v980 = vmul.f32 %v972, 0.2
        %v981 = vmul.f32 %v973, 0.2
        %v982 = vmul.f32 %v974, 0.2
        %v983 = vmul.f32 %v975, 0.2
        %v984 = vmul.f32 %v976, 0.2
        %v985 = vmul.f32 %v977, 0.2
        %v986 = vmax.f32 %v970, %v978
        %v987 = vmax.f32 %v971, %v979
        %v988 = vmax.f32 %v972, %v980
        %v989 = vmax.f32 %v973, %v981
        %v990 = vmax.f32 %v974, %v982
        %v991 = vmax.f32 %v975, %v983
        %v992 = vmax.f32 %v976, %v984
        %v993 = vmax.f32 %v977, %v985
        %v994 = vadd.f32 %v986, %v450
        %v995 = vadd.f32 %v987, %v451
        %v996 = vadd.f32 %v988, %v452
        %v997 = vadd.f32 %v989, %v453
        %v998 = vadd.f32 %v990, %v454
        %v999 = vadd.f32 %v991, %v455
        %v1000 = vadd.f32 %v992, %v456
        %v1001 = vadd.f32 %v993, %v457
        %v1002 = vld [vmem:[#allocation2] sm:$0xff]
        %v1003 = vld [vmem:[#allocation2 + $0x8] sm:$0xff]
        %v1004 = vld [vmem:[#allocation2 + $0x10] sm:$0xff]
        %v1005 = vld [vmem:[#allocation2 + $0x18] sm:$0xff]
        %v1006 = vld [vmem:[#allocation2 + $0x20] sm:$0xff]
        %v1007 = vld [vmem:[#allocation2 + $0x28] sm:$0xff]
        %v1008 = vld [vmem:[#allocation2 + $0x30] sm:$0xff]
        %v1009 = vld [vmem:[#allocation2 + $0x38] sm:$0xff]
        %1010 = vmax.xlane.f32.xlu0 %v994
        %v1011 = vpop.xlane.xlu0 %1010
        %1012 = vmax.xlane.f32.xlu0 %v995
        %v1013 = vpop.xlane.xlu0 %1012
        %1014 = vmax.xlane.f32.xlu0 %v996
        %v1015 = vpop.xlane.xlu0 %1014
        %1016 = vmax.xlane.f32.xlu0 %v997
        %v1017 = vpop.xlane.xlu0 %1016
        %1018 = vmax.xlane.f32.xlu0 %v998
        %v1019 = vpop.xlane.xlu0 %1018
        %1020 = vmax.xlane.f32.xlu0 %v999
        %v1021 = vpop.xlane.xlu0 %1020
        %1022 = vmax.xlane.f32.xlu0 %v1000
        %v1023 = vpop.xlane.xlu0 %1022
        %1024 = vmax.xlane.f32.xlu0 %v1001
        %v1025 = vpop.xlane.xlu0 %1024
        %v1026 = vmax.f32 %v1002, %v1011
        %v1027 = vmax.f32 %v1003, %v1013
        %v1028 = vmax.f32 %v1004, %v1015
        %v1029 = vmax.f32 %v1005, %v1017
        %v1030 = vmax.f32 %v1006, %v1019
        %v1031 = vmax.f32 %v1007, %v1021
        %v1032 = vmax.f32 %v1008, %v1023
        %v1033 = vmax.f32 %v1009, %v1025
        %1035 = vset.pattern.permute.xlu0 1
        %1036 = vperm.xlu0 %1035, %v1026
        %v1037 = vpop.permute.xlu0 %1036
        %1040 = vset.pattern.permute.xlu0 1
        %1041 = vperm.xlu0 %1040, %v1027
        %v1042 = vpop.permute.xlu0 %1041
        %1045 = vset.pattern.permute.xlu0 1
        %1046 = vperm.xlu0 %1045, %v1028
        %v1047 = vpop.permute.xlu0 %1046
        %1050 = vset.pattern.permute.xlu0 1
        %1051 = vperm.xlu0 %1050, %v1029
        %v1052 = vpop.permute.xlu0 %1051
        %1055 = vset.pattern.permute.xlu0 1
        %1056 = vperm.xlu0 %1055, %v1030
        %v1057 = vpop.permute.xlu0 %1056
        %1060 = vset.pattern.permute.xlu0 1
        %1061 = vperm.xlu0 %1060, %v1031
        %v1062 = vpop.permute.xlu0 %1061
        %1065 = vset.pattern.permute.xlu0 1
        %1066 = vperm.xlu0 %1065, %v1032
        %v1067 = vpop.permute.xlu0 %1066
        %1070 = vset.pattern.permute.xlu0 1
        %1071 = vperm.xlu0 %1070, %v1033
        %v1072 = vpop.permute.xlu0 %1071
        %v1074 = vsub.f32 %v994, %v1037
        %v1075 = vsub.f32 %v995, %v1042
        %v1076 = vsub.f32 %v996, %v1047
        %v1077 = vsub.f32 %v997, %v1052
        %v1078 = vsub.f32 %v998, %v1057
        %v1079 = vsub.f32 %v999, %v1062
        %v1080 = vsub.f32 %v1000, %v1067
        %v1081 = vsub.f32 %v1001, %v1072
        %v1082 = vmul.f32 %v1074, 1.442695
        %v1083 = vpow.pop %v1082
        %v1084 = vmul.f32 %v1075, 1.442695
        %v1085 = vpow.pop %v1084
        %v1086 = vmul.f32 %v1076, 1.442695
        %v1087 = vpow.pop %v1086
        %v1088 = vmul.f32 %v1077, 1.442695
        %v1089 = vpow.pop %v1088
        %v1090 = vmul.f32 %v1078, 1.442695
        %v1091 = vpow.pop %v1090
        %v1092 = vmul.f32 %v1079, 1.442695
        %v1093 = vpow.pop %v1092
        %v1094 = vmul.f32 %v1080, 1.442695
        %v1095 = vpow.pop %v1094
        %v1096 = vmul.f32 %v1081, 1.442695
        %v1097 = vpow.pop %v1096
        %v1098 = vmul.f32 %v1083, %v434
        %v1099 = vmul.f32 %v1085, %v435
        %v1100 = vmul.f32 %v1087, %v436
        %v1101 = vmul.f32 %v1089, %v437
        %v1102 = vmul.f32 %v1091, %v438
        %v1103 = vmul.f32 %v1093, %v439
        %v1104 = vmul.f32 %v1095, %v440
        %v1105 = vmul.f32 %v1097, %v441
        %v1106 = vsub.f32 %v1002, %v1026
        %v1107 = vsub.f32 %v1003, %v1027
        %v1108 = vsub.f32 %v1004, %v1028
        %v1109 = vsub.f32 %v1005, %v1029
        %v1110 = vsub.f32 %v1006, %v1030
        %v1111 = vsub.f32 %v1007, %v1031
        %v1112 = vsub.f32 %v1008, %v1032
        %v1113 = vsub.f32 %v1009, %v1033
        %v1114 = vmul.f32 %v1106, 1.442695
        %v1115 = vpow.pop %v1114
        %v1116 = vmul.f32 %v1107, 1.442695
        %v1117 = vpow.pop %v1116
        %v1118 = vmul.f32 %v1108, 1.442695
        %v1119 = vpow.pop %v1118
        %v1120 = vmul.f32 %v1109, 1.442695
        %v1121 = vpow.pop %v1120
        %v1122 = vmul.f32 %v1110, 1.442695
        %v1123 = vpow.pop %v1122
        %v1124 = vmul.f32 %v1111, 1.442695
        %v1125 = vpow.pop %v1124
        %v1126 = vmul.f32 %v1112, 1.442695
        %v1127 = vpow.pop %v1126
        %v1128 = vmul.f32 %v1113, 1.442695
        %v1129 = vpow.pop %v1128
        %v1130 = vld [vmem:[#allocation3] sm:$0xff]
        %v1131 = vld [vmem:[#allocation3 + $0x8] sm:$0xff]
        %v1132 = vld [vmem:[#allocation3 + $0x10] sm:$0xff]
        %v1133 = vld [vmem:[#allocation3 + $0x18] sm:$0xff]
        %v1134 = vld [vmem:[#allocation3 + $0x20] sm:$0xff]
        %v1135 = vld [vmem:[#allocation3 + $0x28] sm:$0xff]
        %v1136 = vld [vmem:[#allocation3 + $0x30] sm:$0xff]
        %v1137 = vld [vmem:[#allocation3 + $0x38] sm:$0xff]
        %v1138 = vmul.f32 %v1115, %v1130
        %v1139 = vmul.f32 %v1117, %v1131
        %v1140 = vmul.f32 %v1119, %v1132
        %v1141 = vmul.f32 %v1121, %v1133
        %v1142 = vmul.f32 %v1123, %v1134
        %v1143 = vmul.f32 %v1125, %v1135
        %v1144 = vmul.f32 %v1127, %v1136
        %v1145 = vmul.f32 %v1129, %v1137
        %1146 = vadd.xlane.f32.xlu0 %v1098
        %v1147 = vpop.xlane.xlu0 %1146
        %1148 = vadd.xlane.f32.xlu0 %v1099
        %v1149 = vpop.xlane.xlu0 %1148
        %1150 = vadd.xlane.f32.xlu0 %v1100
        %v1151 = vpop.xlane.xlu0 %1150
        %1152 = vadd.xlane.f32.xlu0 %v1101
        %v1153 = vpop.xlane.xlu0 %1152
        %1154 = vadd.xlane.f32.xlu0 %v1102
        %v1155 = vpop.xlane.xlu0 %1154
        %1156 = vadd.xlane.f32.xlu0 %v1103
        %v1157 = vpop.xlane.xlu0 %1156
        %1158 = vadd.xlane.f32.xlu0 %v1104
        %v1159 = vpop.xlane.xlu0 %1158
        %1160 = vadd.xlane.f32.xlu0 %v1105
        %v1161 = vpop.xlane.xlu0 %1160
        %v1162 = vadd.f32 %v1138, %v1147
        %v1163 = vadd.f32 %v1139, %v1149
        %v1164 = vadd.f32 %v1140, %v1151
        %v1165 = vadd.f32 %v1141, %v1153
        %v1166 = vadd.f32 %v1142, %v1155
        %v1167 = vadd.f32 %v1143, %v1157
        %v1168 = vadd.f32 %v1144, %v1159
        %v1169 = vadd.f32 %v1145, %v1161
        %vm1170 = vcmask 15368
        %1171 = vst.msk [vmem:[#allocation3] sm:$0xff] %vm1170, %v1162
        %1172 = vst.msk [vmem:[#allocation3 + $0x8] sm:$0xff] %vm1170, %v1163
        %1173 = vst.msk [vmem:[#allocation3 + $0x10] sm:$0xff] %vm1170, %v1164
        %1174 = vst.msk [vmem:[#allocation3 + $0x18] sm:$0xff] %vm1170, %v1165
        %1175 = vst.msk [vmem:[#allocation3 + $0x20] sm:$0xff] %vm1170, %v1166
        %1176 = vst.msk [vmem:[#allocation3 + $0x28] sm:$0xff] %vm1170, %v1167
        %1177 = vst.msk [vmem:[#allocation3 + $0x30] sm:$0xff] %vm1170, %v1168
        %1178 = vst.msk [vmem:[#allocation3 + $0x38] sm:$0xff] %vm1170, %v1169
        %v1179 = vld [vmem:[#allocation4] sm:$0xff]
        %v1180 = vld [vmem:[#allocation4 + $0x8] sm:$0xff]
        %v1181 = vld [vmem:[#allocation4 + $0x10] sm:$0xff]
        %v1182 = vld [vmem:[#allocation4 + $0x18] sm:$0xff]
        %v1183 = vld [vmem:[#allocation4 + $0x20] sm:$0xff]
        %v1184 = vld [vmem:[#allocation4 + $0x28] sm:$0xff]
        %v1185 = vld [vmem:[#allocation4 + $0x30] sm:$0xff]
        %v1186 = vld [vmem:[#allocation4 + $0x38] sm:$0xff]
        %1188 = vset.pattern.permute.xlu0 1
        %1189 = vperm.xlu0 %1188, %v1115
        %v1190 = vpop.permute.xlu0 %1189
        %1193 = vset.pattern.permute.xlu0 1
        %1194 = vperm.xlu0 %1193, %v1117
        %v1195 = vpop.permute.xlu0 %1194
        %1198 = vset.pattern.permute.xlu0 1
        %1199 = vperm.xlu0 %1198, %v1119
        %v1200 = vpop.permute.xlu0 %1199
        %1203 = vset.pattern.permute.xlu0 1
        %1204 = vperm.xlu0 %1203, %v1121
        %v1205 = vpop.permute.xlu0 %1204
        %1208 = vset.pattern.permute.xlu0 1
        %1209 = vperm.xlu0 %1208, %v1123
        %v1210 = vpop.permute.xlu0 %1209
        %1213 = vset.pattern.permute.xlu0 1
        %1214 = vperm.xlu0 %1213, %v1125
        %v1215 = vpop.permute.xlu0 %1214
        %1218 = vset.pattern.permute.xlu0 1
        %1219 = vperm.xlu0 %1218, %v1127
        %v1220 = vpop.permute.xlu0 %1219
        %1223 = vset.pattern.permute.xlu0 1
        %1224 = vperm.xlu0 %1223, %v1129
        %v1225 = vpop.permute.xlu0 %1224
        %v1227 = vmul.f32 %v1190, %v1179
        %v1228 = vmul.f32 %v1195, %v1180
        %v1229 = vmul.f32 %v1200, %v1181
        %v1230 = vmul.f32 %v1205, %v1182
        %v1231 = vmul.f32 %v1210, %v1183
        %v1232 = vmul.f32 %v1215, %v1184
        %v1233 = vmul.f32 %v1220, %v1185
        %v1234 = vmul.f32 %v1225, %v1186
        %v1235 = vpack.c.bf16 %v1099, %v1098
        %v1236 = vpack.c.bf16 %v1101, %v1100
        %v1237 = vpack.c.bf16 %v1103, %v1102
        %v1238 = vpack.c.bf16 %v1105, %v1104
        %1239 = vrot.lane.b32.xlu0 %v828, 120
        %v1240 = vpop.permute.xlu0 %1239
        %1241 = vrot.lane.b32.xlu0 %v829, 120
        %v1242 = vpop.permute.xlu0 %1241
        %1243 = vrot.lane.b32.xlu0 %v830, 120
        %v1244 = vpop.permute.xlu0 %1243
        %1245 = vrot.lane.b32.xlu0 %v831, 120
        %v1246 = vpop.permute.xlu0 %1245
        %1247 = vrot.lane.b32.xlu0 %v832, 120
        %v1248 = vpop.permute.xlu0 %1247
        %1249 = vrot.lane.b32.xlu0 %v833, 120
        %v1250 = vpop.permute.xlu0 %1249
        %1251 = vrot.lane.b32.xlu0 %v834, 120
        %v1252 = vpop.permute.xlu0 %1251
        %1253 = vrot.lane.b32.xlu0 %v835, 120
        %v1254 = vpop.permute.xlu0 %1253
        %1263 = vmatprep.subr.bf16.mxu0 0
        %1264 = vmatpush1.bf16.msra.mxu0 %v1240
        %1265 = vmatprep.subr.bf16.mxu0 0
        %1266 = vmatpush1.bf16.msra.mxu0 %v1242
        %1267 = vmatprep.subr.bf16.mxu0 0
        %1268 = vmatpush1.bf16.msra.mxu0 %v1244
        %1269 = vmatprep.subr.bf16.mxu0 0
        %1270 = vmatpush1.bf16.msra.mxu0 %v1246
        %1271 = vmatprep.subr.bf16.mxu0 0
        %1272 = vmatpush1.bf16.msra.mxu0 %v1248
        %1273 = vmatprep.subr.bf16.mxu0 0
        %1274 = vmatpush1.bf16.msra.mxu0 %v1250
        %1275 = vmatprep.subr.bf16.mxu0 0
        %1276 = vmatpush1.bf16.msra.mxu0 %v1252
        %1277 = vmatprep.subr.bf16.mxu0 0
        %1278 = vmatpush1.bf16.msra.mxu0 %v1254
        %1279 = vmatprep.subr.bf16.mxu0 0
        %1280 = vmatpush1.bf16.msra.mxu0 0
        %1281 = vmatprep.subr.bf16.mxu0 0
        %1282 = vmatpush1.bf16.msra.mxu0 0
        %1283 = vmatprep.subr.bf16.mxu0 0
        %1284 = vmatpush1.bf16.msra.mxu0 0
        %1285 = vmatprep.subr.bf16.mxu0 0
        %1286 = vmatpush1.bf16.msra.mxu0 0
        %1287 = vmatprep.subr.bf16.mxu0 0
        %1288 = vmatpush1.bf16.msra.mxu0 0
        %1289 = vmatprep.subr.bf16.mxu0 0
        %1290 = vmatpush1.bf16.msra.mxu0 0
        %1291 = vmatprep.subr.bf16.mxu0 0
        %1292 = vmatpush1.bf16.msra.mxu0 0
        %1293 = vmatprep.subr.bf16.mxu0 0
        %1294 = vmatpush1.bf16.msra.mxu0 0
        %1295 = vmatprep.mubr.bf16.mxu0 0
        %1296 = vmatmul.mubr.bf16.gmra.mrb[0].mxu0 %v1235
        %v1297 = vpop.f32.mrb[0].mxu0
        %v1298 = vadd.f32 0.0, %v1297
        %v1299 = vpop.f32.mrb[0].mxu0
        %v1300 = vpop.f32.mrb[0].mxu0
        %v1301 = vadd.f32 0.0, %v1300
        %v1302 = vpop.f32.mrb[0].mxu0
        %1303 = vmatprep.mubr.bf16.mxu0 0
        %1304 = vmatmul.mubr.bf16.gmra.mrb[0].mxu0 %v1236
        %v1305 = vpop.f32.mrb[0].mxu0
        %v1306 = vadd.f32 0.0, %v1305
        %v1307 = vpop.f32.mrb[0].mxu0
        %v1308 = vpop.f32.mrb[0].mxu0
        %v1309 = vadd.f32 0.0, %v1308
        %v1310 = vpop.f32.mrb[0].mxu0
        %1311 = vmatprep.mubr.bf16.mxu0 0
        %1312 = vmatmul.mubr.bf16.gmra.mrb[0].mxu0 %v1237
        %v1313 = vpop.f32.mrb[0].mxu0
        %v1314 = vadd.f32 0.0, %v1313
        %v1315 = vpop.f32.mrb[0].mxu0
        %v1316 = vpop.f32.mrb[0].mxu0
        %v1317 = vadd.f32 0.0, %v1316
        %v1318 = vpop.f32.mrb[0].mxu0
        %1319 = vmatprep.mubr.bf16.mxu0 0
        %1320 = vmatmul.mubr.bf16.gmra.mrb[0].mxu0 %v1238
        %v1321 = vpop.f32.mrb[0].mxu0
        %v1322 = vadd.f32 0.0, %v1321
        %v1323 = vpop.f32.mrb[0].mxu0
        %v1324 = vpop.f32.mrb[0].mxu0
        %v1325 = vadd.f32 0.0, %v1324
        %v1326 = vpop.f32.mrb[0].mxu0
        %1327 = vdwg.mxu0
        %1336 = vrot.lane.b32.xlu0 %v1298, 8
        %v1337 = vpop.permute.xlu0 %1336
        %1338 = vrot.lane.b32.xlu0 %v1301, 8
        %v1339 = vpop.permute.xlu0 %1338
        %1340 = vrot.lane.b32.xlu0 %v1306, 8
        %v1341 = vpop.permute.xlu0 %1340
        %1342 = vrot.lane.b32.xlu0 %v1309, 8
        %v1343 = vpop.permute.xlu0 %1342
        %1344 = vrot.lane.b32.xlu0 %v1314, 8
        %v1345 = vpop.permute.xlu0 %1344
        %1346 = vrot.lane.b32.xlu0 %v1317, 8
        %v1347 = vpop.permute.xlu0 %1346
        %1348 = vrot.lane.b32.xlu0 %v1322, 8
        %v1349 = vpop.permute.xlu0 %1348
        %1350 = vrot.lane.b32.xlu0 %v1325, 8
        %v1351 = vpop.permute.xlu0 %1350
        %v1360 = vadd.f32 %v1227, %v1337
        %v1361 = vadd.f32 %v1228, %v1339
        %v1362 = vadd.f32 %v1229, %v1341
        %v1363 = vadd.f32 %v1230, %v1343
        %v1364 = vadd.f32 %v1231, %v1345
        %v1365 = vadd.f32 %v1232, %v1347
        %v1366 = vadd.f32 %v1233, %v1349
        %v1367 = vadd.f32 %v1234, %v1351
        %vm1368 = vcmask 130112
        %1369 = vst.msk [vmem:[#allocation4] sm:$0xff] %vm1368, %v1360
        %1370 = vst.msk [vmem:[#allocation4 + $0x8] sm:$0xff] %vm1368, %v1361
        %1371 = vst.msk [vmem:[#allocation4 + $0x10] sm:$0xff] %vm1368, %v1362
        %1372 = vst.msk [vmem:[#allocation4 + $0x18] sm:$0xff] %vm1368, %v1363
        %1373 = vst.msk [vmem:[#allocation4 + $0x20] sm:$0xff] %vm1368, %v1364
        %1374 = vst.msk [vmem:[#allocation4 + $0x28] sm:$0xff] %vm1368, %v1365
        %1375 = vst.msk [vmem:[#allocation4 + $0x30] sm:$0xff] %vm1368, %v1366
        %1376 = vst.msk [vmem:[#allocation4 + $0x38] sm:$0xff] %vm1368, %v1367
        %1377 = vst.msk [vmem:[#allocation2] sm:$0xff] %vm1170, %v1026
        %1378 = vst.msk [vmem:[#allocation2 + $0x8] sm:$0xff] %vm1170, %v1027
        %1379 = vst.msk [vmem:[#allocation2 + $0x10] sm:$0xff] %vm1170, %v1028
        %1380 = vst.msk [vmem:[#allocation2 + $0x18] sm:$0xff] %vm1170, %v1029
        %1381 = vst.msk [vmem:[#allocation2 + $0x20] sm:$0xff] %vm1170, %v1030
        %1382 = vst.msk [vmem:[#allocation2 + $0x28] sm:$0xff] %vm1170, %v1031
        %1383 = vst.msk [vmem:[#allocation2 + $0x30] sm:$0xff] %vm1170, %v1032
        %1384 = vst.msk [vmem:[#allocation2 + $0x38] sm:$0xff] %vm1170, %v1033
      $region48: #{gat_forward.7} parent=39 // pred_fallthru
        _
      // Predicated region
      $region49: #{gat_forward.7} parent=39 // pred_check
        %p1385 = pneg %p322
      $region50: #{gat_forward.7} parent=39 // pred_check_branch
        %1387 = sbr.rel (%p1385) target = $region52
      $region51: #{gat_forward.7} parent=39 // pred_region
        %v1388 = vld [vmem:[%s5] sm:$0x1]
        %v1389 = vld [vmem:[#allocation3] sm:$0xff]
        %v1390 = vld [vmem:[#allocation3 + $0x8] sm:$0xff]
        %v1391 = vld [vmem:[#allocation3 + $0x10] sm:$0xff]
        %v1392 = vld [vmem:[#allocation3 + $0x18] sm:$0xff]
        %v1393 = vld [vmem:[#allocation3 + $0x20] sm:$0xff]
        %v1394 = vld [vmem:[#allocation3 + $0x28] sm:$0xff]
        %v1395 = vld [vmem:[#allocation3 + $0x30] sm:$0xff]
        %v1396 = vld [vmem:[#allocation3 + $0x38] sm:$0xff]
        %v1397 = vmax.f32 %v1389, 1e-20
        %v1398 = vmax.f32 %v1390, 1e-20
        %v1399 = vmax.f32 %v1391, 1e-20
        %v1400 = vmax.f32 %v1392, 1e-20
        %v1401 = vmax.f32 %v1393, 1e-20
        %v1402 = vmax.f32 %v1394, 1e-20
        %v1403 = vmax.f32 %v1395, 1e-20
        %v1404 = vmax.f32 %v1396, 1e-20
        %v1405 = vrcp.pop %v1397
        %v1406 = vmul.f32 1.0, %v1405
        %v1407 = vrcp.pop %v1398
        %v1408 = vmul.f32 1.0, %v1407
        %v1409 = vrcp.pop %v1399
        %v1410 = vmul.f32 1.0, %v1409
        %v1411 = vrcp.pop %v1400
        %v1412 = vmul.f32 1.0, %v1411
        %v1413 = vrcp.pop %v1401
        %v1414 = vmul.f32 1.0, %v1413
        %v1415 = vrcp.pop %v1402
        %v1416 = vmul.f32 1.0, %v1415
        %v1417 = vrcp.pop %v1403
        %v1418 = vmul.f32 1.0, %v1417
        %v1419 = vrcp.pop %v1404
        %v1420 = vmul.f32 1.0, %v1419
        %v1421 = vld [vmem:[#allocation4] sm:$0xff]
        %v1422 = vld [vmem:[#allocation4 + $0x8] sm:$0xff]
        %v1423 = vld [vmem:[#allocation4 + $0x10] sm:$0xff]
        %v1424 = vld [vmem:[#allocation4 + $0x18] sm:$0xff]
        %v1425 = vld [vmem:[#allocation4 + $0x20] sm:$0xff]
        %v1426 = vld [vmem:[#allocation4 + $0x28] sm:$0xff]
        %v1427 = vld [vmem:[#allocation4 + $0x30] sm:$0xff]
        %v1428 = vld [vmem:[#allocation4 + $0x38] sm:$0xff]
        %1430 = vset.pattern.permute.xlu0 0
        %1431 = vperm.xlu0 %1430, %v1406
        %v1432 = vpop.permute.xlu0 %1431
        %1435 = vset.pattern.permute.xlu0 0
        %1436 = vperm.xlu0 %1435, %v1408
        %v1437 = vpop.permute.xlu0 %1436
        %1440 = vset.pattern.permute.xlu0 0
        %1441 = vperm.xlu0 %1440, %v1410
        %v1442 = vpop.permute.xlu0 %1441
        %1445 = vset.pattern.permute.xlu0 0
        %1446 = vperm.xlu0 %1445, %v1412
        %v1447 = vpop.permute.xlu0 %1446
        %1450 = vset.pattern.permute.xlu0 0
        %1451 = vperm.xlu0 %1450, %v1414
        %v1452 = vpop.permute.xlu0 %1451
        %1455 = vset.pattern.permute.xlu0 0
        %1456 = vperm.xlu0 %1455, %v1416
        %v1457 = vpop.permute.xlu0 %1456
        %1460 = vset.pattern.permute.xlu0 0
        %1461 = vperm.xlu0 %1460, %v1418
        %v1462 = vpop.permute.xlu0 %1461
        %1465 = vset.pattern.permute.xlu0 0
        %1466 = vperm.xlu0 %1465, %v1420
        %v1467 = vpop.permute.xlu0 %1466
        %v1469 = vmul.f32 %v1421, %v1432
        %v1470 = vmul.f32 %v1422, %v1437
        %v1471 = vmul.f32 %v1423, %v1442
        %v1472 = vmul.f32 %v1424, %v1447
        %v1473 = vmul.f32 %v1425, %v1452
        %v1474 = vmul.f32 %v1426, %v1457
        %v1475 = vmul.f32 %v1427, %v1462
        %v1476 = vmul.f32 %v1428, %v1467
        %v1478 = vlaneseq
        %v1479 = vshrl.u32 %v1478, 7
        %v1480 = vsub.s32 0, %v1479
        %v1481 = vrot.slane %v1388, %v1480
        %v1483 = vadd.f32 %v1469, %v1481
        %v1484 = vadd.f32 %v1470, %v1481
        %v1485 = vadd.f32 %v1471, %v1481
        %v1486 = vadd.f32 %v1472, %v1481
        %v1487 = vadd.f32 %v1473, %v1481
        %v1488 = vadd.f32 %v1474, %v1481
        %v1489 = vadd.f32 %v1475, %v1481
        %v1490 = vadd.f32 %v1476, %v1481
        %1491 = vset.pattern.permute.xlu0 1
        %1492 = vperm.xlu0 %1491, %v1406
        %v1493 = vpop.permute.xlu0 %1492
        %1495 = vset.pattern.permute.xlu0 1
        %1496 = vperm.xlu0 %1495, %v1408
        %v1497 = vpop.permute.xlu0 %1496
        %1499 = vset.pattern.permute.xlu0 1
        %1500 = vperm.xlu0 %1499, %v1410
        %v1501 = vpop.permute.xlu0 %1500
        %1503 = vset.pattern.permute.xlu0 1
        %1504 = vperm.xlu0 %1503, %v1412
        %v1505 = vpop.permute.xlu0 %1504
        %1507 = vset.pattern.permute.xlu0 1
        %1508 = vperm.xlu0 %1507, %v1414
        %v1509 = vpop.permute.xlu0 %1508
        %1511 = vset.pattern.permute.xlu0 1
        %1512 = vperm.xlu0 %1511, %v1416
        %v1513 = vpop.permute.xlu0 %1512
        %1515 = vset.pattern.permute.xlu0 1
        %1516 = vperm.xlu0 %1515, %v1418
        %v1517 = vpop.permute.xlu0 %1516
        %1519 = vset.pattern.permute.xlu0 1
        %1520 = vperm.xlu0 %1519, %v1420
        %v1521 = vpop.permute.xlu0 %1520
        %v1523 = vmul.f32 %v1421, %v1493
        %v1524 = vmul.f32 %v1422, %v1497
        %v1525 = vmul.f32 %v1423, %v1501
        %v1526 = vmul.f32 %v1424, %v1505
        %v1527 = vmul.f32 %v1425, %v1509
        %v1528 = vmul.f32 %v1426, %v1513
        %v1529 = vmul.f32 %v1427, %v1517
        %v1530 = vmul.f32 %v1428, %v1521
        %v1531 = vadd.f32 %v1523, %v1481
        %v1532 = vadd.f32 %v1524, %v1481
        %v1533 = vadd.f32 %v1525, %v1481
        %v1534 = vadd.f32 %v1526, %v1481
        %v1535 = vadd.f32 %v1527, %v1481
        %v1536 = vadd.f32 %v1528, %v1481
        %v1537 = vadd.f32 %v1529, %v1481
        %v1538 = vadd.f32 %v1530, %v1481
        %vm1539 = vcmask 64512
        %v1540 = vsel %vm1539, %v1483, %v1531
        %v1541 = vsel %vm1539, %v1484, %v1532
        %v1542 = vsel %vm1539, %v1485, %v1533
        %v1543 = vsel %vm1539, %v1486, %v1534
        %v1544 = vsel %vm1539, %v1487, %v1535
        %v1545 = vsel %vm1539, %v1488, %v1536
        %v1546 = vsel %vm1539, %v1489, %v1537
        %v1547 = vsel %vm1539, %v1490, %v1538
        %v1548 = vmax.f32 %v1540, 0.0
        %v1549 = vmax.f32 %v1541, 0.0
        %v1550 = vmax.f32 %v1542, 0.0
        %v1551 = vmax.f32 %v1543, 0.0
        %v1552 = vmax.f32 %v1544, 0.0
        %v1553 = vmax.f32 %v1545, 0.0
        %v1554 = vmax.f32 %v1546, 0.0
        %v1555 = vmax.f32 %v1547, 0.0
        %v1556 = vpack.c.bf16 %v1549, %v1548
        %v1557 = vpack.c.bf16 %v1551, %v1550
        %v1558 = vpack.c.bf16 %v1553, %v1552
        %v1559 = vpack.c.bf16 %v1555, %v1554
        %v1564 = vunpack.c.l.b16 %v1556
        %v1565 = vunpack.c.h.b16 %v1556
        %v1566 = vunpack.c.l.b16 %v1557
        %v1567 = vunpack.c.h.b16 %v1557
        %v1568 = vunpack.c.l.b16 %v1558
        %v1569 = vunpack.c.h.b16 %v1558
        %v1570 = vunpack.c.l.b16 %v1559
        %v1571 = vunpack.c.h.b16 %v1559
        %v1572 = vpack.c.b16 %v1564, %v1564
        %v1573 = vpack.c.b16 %v1565, %v1565
        %v1574 = vpack.c.b16 %v1566, %v1566
        %v1575 = vpack.c.b16 %v1567, %v1567
        %v1576 = vpack.c.b16 %v1568, %v1568
        %v1577 = vpack.c.b16 %v1569, %v1569
        %v1578 = vpack.c.b16 %v1570, %v1570
        %v1579 = vpack.c.b16 %v1571, %v1571
        %vm1588 = vcmask 125952
        %1589 = vst.msk [vmem:[%s317] sm:$0xf] %vm1588, %v1572
        %1590 = vst.msk [vmem:[%s317 + $0x4] sm:$0xf] %vm1588, %v1573
        %1591 = vst.msk [vmem:[%s317 + $0x8] sm:$0xf] %vm1588, %v1574
        %1592 = vst.msk [vmem:[%s317 + $0xc] sm:$0xf] %vm1588, %v1575
        %1593 = vst.msk [vmem:[%s317 + $0x10] sm:$0xf] %vm1588, %v1576
        %1594 = vst.msk [vmem:[%s317 + $0x14] sm:$0xf] %vm1588, %v1577
        %1595 = vst.msk [vmem:[%s317 + $0x18] sm:$0xf] %vm1588, %v1578
        %1596 = vst.msk [vmem:[%s317 + $0x1c] sm:$0xf] %vm1588, %v1579
      $region52: #{gat_forward.7} parent=39 // pred_fallthru
        _
      %s1597 = smul.u32 8, %s27
      %p1598 = scmp.lt.s32.totalorder %s1597, 15
      %s1599 = scalar_select %p1598, %s1597, 15
      %s1600 = smul.addr %s1599, 4
      %s1601 = scalar_lea.vmem %s6, %s1600
      // Predicated region
      $region53: #{gat_forward.7} parent=39 // pred_check
        %p1602 = pneg %p180
      $region54: #{gat_forward.7} parent=39 // pred_check_branch
        %1604 = sbr.rel (%p1602) target = $region56
      $region55: #{gat_forward.7} parent=39 // pred_region
        %s1605 = smul.u32 8, %s27
      $region56: #{gat_forward.7} parent=39 // pred_fallthru
        _
    $region40: #{gat_forward.7} parent=5 // pred_fallthru
      _
    %p1606 = scmp.le.s32.totalorder 2, %s18
    // Predicated region
    $region57: #{gat_forward.7} parent=5 // pred_check
      %p1607 = pneg %p1606
    $region58: #{gat_forward.7} parent=5 // pred_check_branch
      %1609 = sbr.rel (%p1607) target = $region60
    $region59: #{gat_forward.7} parent=5 // pred_region
      %s1610 = ssub.s32 %s18, 2
      // Predicated region
      $region61: #{gat_forward.7} parent=59 // pred_check
        %p1611 = pneg %p186
      $region62: #{gat_forward.7} parent=59 // pred_check_branch
        %1613 = sbr.rel (%p1611) target = $region64
      $region63: #{gat_forward.7} parent=59 // pred_region
        %s1614 = smul.u32 8, %s29
        %p1615 = scmp.lt.s32.totalorder %s1614, 15
        %s1616 = scalar_select %p1615, %s1614, 15
        %s1617 = smul.addr %s1616, 4
        %s1618 = scalar_lea.vmem %s6, %s1617
      $region64: #{gat_forward.7} parent=59 // pred_fallthru
        _
    $region60: #{gat_forward.7} parent=5 // pred_fallthru
      _
  $region6: #{gat_forward.7} parent=0 // loop_footer
    %s22 = sadd.s32 1, %s18
  $region7: #{gat_forward.7} parent=0 // loop_footer_branch
    %17 = sbr.rel target = $region3
  $region8: #{gat_forward.7} parent=0 // loop_exit
    _

// kernel: gat_forward.11
$region0: #{gat_forward.11}
  #allocation0 [shape = 'u32[]', space=smem, size = 0x4, offset = 0x4, fixed_abs, tag = 'smem constant byte address 0x4 - core index']
  #allocation1 [shape = 'u32[144,128]{1,0:T(1,128)}', space=vmem, size = 0x12000, scoped, tag = 'internal scratch']
  #allocation2 [shape = 'f32[64,1]{1,0:T(8,128)}', space=vmem, size = 0x8000, scoped, tag = 'scratch operand']
  #allocation3 [shape = 'f32[64,1]{1,0:T(8,128)}', space=vmem, size = 0x8000, scoped, tag = 'scratch operand']
  #allocation4 [shape = 'f32[64,4]{1,0:T(8,128)}', space=vmem, size = 0x8000, scoped, tag = 'scratch operand']
  #allocation5 [shape = 's32[1]{0}', space=sflag, size = 0x4, scoped, tag = 'scoped memory for gat_forward.11']
  #allocation6 [shape = 'u8[1024]{0}', space=smem, size = 0x400, scoped, tag = 'prefetched SMEM operand 0']
  %s0 = inlined_call_operand.vmem [shape: s32[2,1], index: 0, kind: input, shape index: {}]
  %s1 = inlined_call_operand.vmem [shape: f32[128,1], index: 1, kind: input, shape index: {}]
  %s2 = inlined_call_operand.vmem [shape: f32[1,128], index: 2, kind: input, shape index: {}]
  %s3 = inlined_call_operand.vmem [shape: s8[128,128], index: 3, kind: input, shape index: {}]
  %s4 = inlined_call_operand.vmem [shape: bf16[128,4], index: 4, kind: input, shape index: {}]
  %s5 = inlined_call_operand.vmem [shape: f32[1,4], index: 5, kind: input, shape index: {}]
  %s6 = inlined_call_operand.vmem [shape: f32[128,4], index: 6, kind: output, shape index: {}]
  %s7 = sld [smem:[#allocation0]]
  $region65: #{gat_forward.11} parent=0
    _
  %s9 = ssub.s32 1, %s7
  %s10 = scalar_select 0, %s9, %s7
  %s11 = sshll.u32 %s0, 4
  %s12 = int_to_ptr.vmem [resolvable:$true] %s11
  %14 = dma.vmem_to_smem %s12, 32, [#allocation6], [#allocation5]
  %15 = dma.done [#allocation5], 32
  %16 = sfence
  loop: start=0, step=1, limit=4
  $region2: #{gat_forward.11} parent=0 // loop_pre_header
    _
  $region3: #{gat_forward.11} parent=0 // loop_header
    %s18 = sphi 0, %s22
    %p19 = scmp.ge.s32.totalorder %s18, 4
    %s25 = sphi 0, %s37
    %s26 = sphi 0, %s33
    %s27 = sphi 0, %s25
    %s28 = sphi 0, %s26
    %s29 = sphi 0, %s27
    %s30 = sphi 0, %s28
    %s40 = sphi 0, %s42
    %s43 = sphi 0, %s40
    %s44 = sphi 0, %s43
    %s60 = sphi 0, %s44
    %s66 = sphi 0, %s68
    %s69 = sphi 0, %s66
    %s70 = sphi 0, %s69
    %s86 = sphi 0, %s70
    %s94 = sphi 0, %s96
    %s97 = sphi 0, %s94
    %s98 = sphi 0, %s97
    %s114 = sphi 0, %s98
    %s120 = sphi 0, %s122
    %s123 = sphi 0, %s120
    %s124 = sphi 0, %s123
    %s140 = sphi 0, %s124
    %s144 = sphi 0, %s144
    %s146 = sphi 0, %s144
    %s147 = sphi 0, %s146
    %s161 = sphi 0, %s147
    %s167 = sphi 0, %s169
    %s170 = sphi 0, %s167
    %s171 = sphi 0, %s170
    %s187 = sphi 0, %s171
  $region4: #{gat_forward.11} parent=0 // loop_header_branch
    %21 = sbr.rel (%p19) target = $region8
  $region5: #{gat_forward.11} parent=0 // loop_body
    %s23 = ssub.s32 %s18, 1
    %s24 = ssub.s32 %s18, 2
    %s31 = sadd.s32 1, %s26
    %p32 = scmp.ge.s32.totalorder %s31, 1
    %s33 = scalar_select %p32, 0, %s31
    %s34 = sadd.s32 1, %s25
    %s35 = scalar_select %p32, %s34, %s25
    %p36 = scmp.ge.s32.totalorder %s35, 2
    %s37 = scalar_select %p36, 0, %s35
    %s38 = ssub.s32 %s25, %s37
    %p39 = scmp.eq.s32.totalorder %s38, 0
    %s41 = sadd.s32 %s40, 1
    %s42 = scalar_select %p39, %s40, %s41
    %p45 = pneg %p39
    %p46 = scmp.eq.s32.totalorder %s18, 1
    %p47 = por %p45, %p46
    %p48 = scmp.ne.s32.totalorder %s40, %s43
    %p49 = scmp.eq.s32.totalorder %s18, 0
    %p50 = por %p48, %p49
    %p51 = scmp.ne.s32.totalorder %s40, %s43
    %p52 = scmp.eq.s32.totalorder %s23, 1
    %p53 = por %p51, %p52
    %p54 = scmp.ne.s32.totalorder %s43, %s44
    %p55 = scmp.eq.s32.totalorder %s23, 0
    %p56 = por %p54, %p55
    %p57 = scmp.ne.s32.totalorder %s43, %s44
    %p58 = scmp.eq.s32.totalorder %s24, 1
    %p59 = por %p57, %p58
    %p61 = scmp.ne.s32.totalorder %s44, %s60
    %p62 = scmp.eq.s32.totalorder %s24, 0
    %p63 = por %p61, %p62
    %s64 = ssub.s32 %s26, %s33
    %p65 = scmp.eq.s32.totalorder %s64, 0
    %s67 = sadd.s32 %s66, 1
    %s68 = scalar_select %p65, %s66, %s67
    %p71 = pneg %p65
    %p72 = scmp.eq.s32.totalorder %s18, 1
    %p73 = por %p71, %p72
    %p74 = scmp.ne.s32.totalorder %s66, %s69
    %p75 = scmp.eq.s32.totalorder %s18, 0
    %p76 = por %p74, %p75
    %p77 = scmp.ne.s32.totalorder %s66, %s69
    %p78 = scmp.eq.s32.totalorder %s23, 1
    %p79 = por %p77, %p78
    %p80 = scmp.ne.s32.totalorder %s69, %s70
    %p81 = scmp.eq.s32.totalorder %s23, 0
    %p82 = por %p80, %p81
    %p83 = scmp.ne.s32.totalorder %s69, %s70
    %p84 = scmp.eq.s32.totalorder %s24, 1
    %p85 = por %p83, %p84
    %p87 = scmp.ne.s32.totalorder %s70, %s86
    %p88 = scmp.eq.s32.totalorder %s24, 0
    %p89 = por %p87, %p88
    %s90 = ssub.s32 %s25, %s37
    %s91 = ssub.s32 %s26, %s33
    %s92 = sor.u32 %s90, %s91
    %p93 = scmp.eq.s32.totalorder %s92, 0
    %s95 = sadd.s32 %s94, 1
    %s96 = scalar_select %p93, %s94, %s95
    %p99 = pneg %p93
    %p100 = scmp.eq.s32.totalorder %s18, 1
    %p101 = por %p99, %p100
    %p102 = scmp.ne.s32.totalorder %s94, %s97
    %p103 = scmp.eq.s32.totalorder %s18, 0
    %p104 = por %p102, %p103
    %p105 = scmp.ne.s32.totalorder %s94, %s97
    %p106 = scmp.eq.s32.totalorder %s23, 1
    %p107 = por %p105, %p106
    %p108 = scmp.ne.s32.totalorder %s97, %s98
    %p109 = scmp.eq.s32.totalorder %s23, 0
    %p110 = por %p108, %p109
    %p111 = scmp.ne.s32.totalorder %s97, %s98
    %p112 = scmp.eq.s32.totalorder %s24, 1
    %p113 = por %p111, %p112
    %p115 = scmp.ne.s32.totalorder %s98, %s114
    %p116 = scmp.eq.s32.totalorder %s24, 0
    %p117 = por %p115, %p116
    %s118 = ssub.s32 %s26, %s33
    %p119 = scmp.eq.s32.totalorder %s118, 0
    %s121 = sadd.s32 %s120, 1
    %s122 = scalar_select %p119, %s120, %s121
    %p125 = pneg %p119
    %p126 = scmp.eq.s32.totalorder %s18, 1
    %p127 = por %p125, %p126
    %p128 = scmp.ne.s32.totalorder %s120, %s123
    %p129 = scmp.eq.s32.totalorder %s18, 0
    %p130 = por %p128, %p129
    %p131 = scmp.ne.s32.totalorder %s120, %s123
    %p132 = scmp.eq.s32.totalorder %s23, 1
    %p133 = por %p131, %p132
    %p134 = scmp.ne.s32.totalorder %s123, %s124
    %p135 = scmp.eq.s32.totalorder %s23, 0
    %p136 = por %p134, %p135
    %p137 = scmp.ne.s32.totalorder %s123, %s124
    %p138 = scmp.eq.s32.totalorder %s24, 1
    %p139 = por %p137, %p138
    %p141 = scmp.ne.s32.totalorder %s124, %s140
    %p142 = scmp.eq.s32.totalorder %s24, 0
    %p143 = por %p141, %p142
    %s145 = sadd.s32 %s144, 1
    %p148 = scmp.eq.s32.totalorder %s18, 1
    %p149 = scmp.ne.s32.totalorder %s144, %s146
    %p150 = scmp.eq.s32.totalorder %s18, 0
    %p151 = por %p149, %p150
    %p152 = scmp.ne.s32.totalorder %s144, %s146
    %p153 = scmp.eq.s32.totalorder %s23, 1
    %p154 = por %p152, %p153
    %p155 = scmp.ne.s32.totalorder %s146, %s147
    %p156 = scmp.eq.s32.totalorder %s23, 0
    %p157 = por %p155, %p156
    %p158 = scmp.ne.s32.totalorder %s146, %s147
    %p159 = scmp.eq.s32.totalorder %s24, 1
    %p160 = por %p158, %p159
    %p162 = scmp.ne.s32.totalorder %s147, %s161
    %p163 = scmp.eq.s32.totalorder %s24, 0
    %p164 = por %p162, %p163
    %s165 = ssub.s32 %s25, %s37
    %p166 = scmp.eq.s32.totalorder %s165, 0
    %s168 = sadd.s32 %s167, 1
    %s169 = scalar_select %p166, %s167, %s168
    %p172 = pneg %p166
    %p173 = scmp.eq.s32.totalorder %s18, 1
    %p174 = por %p172, %p173
    %p175 = scmp.ne.s32.totalorder %s167, %s170
    %p176 = scmp.eq.s32.totalorder %s18, 0
    %p177 = por %p175, %p176
    %p178 = scmp.ne.s32.totalorder %s167, %s170
    %p179 = scmp.eq.s32.totalorder %s23, 1
    %p180 = por %p178, %p179
    %p181 = scmp.ne.s32.totalorder %s170, %s171
    %p182 = scmp.eq.s32.totalorder %s23, 0
    %p183 = por %p181, %p182
    %p184 = scmp.ne.s32.totalorder %s170, %s171
    %p185 = scmp.eq.s32.totalorder %s24, 1
    %p186 = por %p184, %p185
    %p188 = scmp.ne.s32.totalorder %s171, %s187
    %p189 = scmp.eq.s32.totalorder %s24, 0
    %p190 = por %p188, %p189
    %p191 = scmp.le.s32.totalorder 1, %s18
    %p192 = scmp.lt.s32.totalorder %s18, 3
    %p193 = pnand %p191, %p192
    %p194 = pneg %p193
    // Predicated region
    $region9: #{gat_forward.11} parent=5 // pred_check
      _
    $region10: #{gat_forward.11} parent=5 // pred_check_branch
      %196 = sbr.rel (%p193) target = $region12
    $region11: #{gat_forward.11} parent=5 // pred_region
      %s197 = ssub.s32 %s18, 1
      // Predicated region
      $region13: #{gat_forward.11} parent=11 // pred_check
        %p198 = pneg %p82
      $region14: #{gat_forward.11} parent=11 // pred_check_branch
        %200 = sbr.rel (%p198) target = $region16
      $region15: #{gat_forward.11} parent=11 // pred_region
        %p201 = scmp.lt.s32.totalorder %s28, 0
        %s202 = scalar_select %p201, %s28, 0
        %s203 = scalar_lea.vmem %s2, %s202
      $region16: #{gat_forward.11} parent=11 // pred_fallthru
        _
      // Predicated region
      $region17: #{gat_forward.11} parent=11 // pred_check
        %p204 = pneg %p136
      $region18: #{gat_forward.11} parent=11 // pred_check_branch
        %206 = sbr.rel (%p204) target = $region20
      $region19: #{gat_forward.11} parent=11 // pred_region
        %s207 = smul.u32 16, %s28
        %p208 = scmp.lt.s32.totalorder %s207, 15
        %s209 = scalar_select %p208, %s207, 15
        %s210 = smul.addr %s209, 4
        %s211 = scalar_lea.vmem %s4, %s210
        %s212 = smul.u32 16, %s28
      $region20: #{gat_forward.11} parent=11 // pred_fallthru
        _
      // Predicated region
      $region21: #{gat_forward.11} parent=11 // pred_check
        %p213 = pneg %p157
      $region22: #{gat_forward.11} parent=11 // pred_check_branch
        %215 = sbr.rel (%p213) target = $region24
      $region23: #{gat_forward.11} parent=11 // pred_region
        _
      $region24: #{gat_forward.11} parent=11 // pred_fallthru
        _
    $region12: #{gat_forward.11} parent=5 // pred_fallthru
      _
    %p216 = scmp.lt.s32.totalorder %s18, 2
    // Predicated region
    $region25: #{gat_forward.11} parent=5 // pred_check
      %p217 = pneg %p216
    $region26: #{gat_forward.11} parent=5 // pred_check_branch
      %219 = sbr.rel (%p217) target = $region28
    $region27: #{gat_forward.11} parent=5 // pred_region
      // Predicated region
      $region29: #{gat_forward.11} parent=27 // pred_check
        %p220 = pneg %p50
      $region30: #{gat_forward.11} parent=27 // pred_check_branch
        %222 = sbr.rel (%p220) target = $region32
      $region31: #{gat_forward.11} parent=27 // pred_region
        %s223 = smul.u32 8, %s25
        %p224 = scmp.lt.s32.totalorder %s223, 15
        %s225 = scalar_select %p224, %s223, 15
        %s226 = smul.addr %s225, 8
        %s227 = scalar_lea.vmem %s1, %s226
        %s228 = smul.u32 8, %s25
      $region32: #{gat_forward.11} parent=27 // pred_fallthru
        _
      // Predicated region
      $region33: #{gat_forward.11} parent=27 // pred_check
        %p229 = pneg %p104
      $region34: #{gat_forward.11} parent=27 // pred_check_branch
        %231 = sbr.rel (%p229) target = $region36
      $region35: #{gat_forward.11} parent=27 // pred_region
        %s232 = smul.u32 2, %s25
        %p233 = scmp.lt.s32.totalorder %s232, 3
        %s234 = scalar_select %p233, %s232, 3
        %p235 = scmp.lt.s32.totalorder %s26, 0
        %s236 = scalar_select %p235, %s26, 0
        %s237 = sadd.s32 %s236, %s234
        %s238 = smul.addr %s237, 8
        %s239 = scalar_lea.vmem %s3, %s238
        %s240 = smul.u32 2, %s25
      $region36: #{gat_forward.11} parent=27 // pred_fallthru
        _
    $region28: #{gat_forward.11} parent=5 // pred_fallthru
      _
    %p241 = scmp.le.s32.totalorder 1, %s18
    %p242 = scmp.lt.s32.totalorder %s18, 3
    %p243 = pnand %p241, %p242
    %p244 = pneg %p243
    // Predicated region
    $region37: #{gat_forward.11} parent=5 // pred_check
      _
    $region38: #{gat_forward.11} parent=5 // pred_check_branch
      %246 = sbr.rel (%p243) target = $region40
    $region39: #{gat_forward.11} parent=5 // pred_region
      %s247 = ssub.s32 %s18, 1
      %s248 = smul.u32 8, %s27
      %p249 = scmp.lt.s32.totalorder %s248, 15
      %s250 = scalar_select %p249, %s248, 15
      %s251 = smul.addr %s250, 8
      %s252 = scalar_lea.vmem %s1, %s251
      %p253 = pneg %p56
      %p254 = pneg %p53
      %p255 = scmp.lt.s32.totalorder %s28, 0
      %s256 = scalar_select %p255, %s28, 0
      %s257 = scalar_lea.vmem %s2, %s256
      %p258 = pneg %p82
      %p259 = pneg %p79
      %s260 = smul.u32 2, %s27
      %p261 = scmp.lt.s32.totalorder %s260, 3
      %s262 = scalar_select %p261, %s260, 3
      %p263 = scmp.lt.s32.totalorder %s28, 0
      %s264 = scalar_select %p263, %s28, 0
      %s265 = sadd.s32 %s264, %s262
      %s266 = smul.addr %s265, 8
      %s267 = scalar_lea.vmem %s3, %s266
      %p268 = pneg %p110
      %p269 = pneg %p107
      %s270 = smul.u32 16, %s28
      %p271 = scmp.lt.s32.totalorder %s270, 15
      %s272 = scalar_select %p271, %s270, 15
      %s273 = smul.addr %s272, 4
      %s274 = scalar_lea.vmem %s4, %s273
      %p275 = pneg %p136
      %p276 = pneg %p133
      %p277 = pneg %p157
      %p278 = pneg %p154
      %p279 = pneg %p183
      %p280 = pneg %p180
      %s281 = smul.u32 8, %s27
      %p282 = scmp.lt.s32.totalorder %s281, 15
      %s283 = scalar_select %p282, %s281, 15
      %s284 = smul.addr %s283, 8
      %s285 = scalar_lea.vmem %s6, %s284
      %s286 = smul.u32 8, %s27
      %p287 = scmp.lt.s32.totalorder %s286, 15
      %s288 = scalar_select %p287, %s286, 15
      %s289 = smul.addr %s288, 8
      %s290 = scalar_lea.vmem %s1, %s289
      %s291 = smul.u32 8, %s27
      %p292 = scmp.lt.s32.totalorder %s28, 0
      %s293 = scalar_select %p292, %s28, 0
      %s294 = scalar_lea.vmem %s2, %s293
      %s295 = smul.u32 2, %s27
      %p296 = scmp.lt.s32.totalorder %s295, 3
      %s297 = scalar_select %p296, %s295, 3
      %p298 = scmp.lt.s32.totalorder %s28, 0
      %s299 = scalar_select %p298, %s28, 0
      %s300 = sadd.s32 %s299, %s297
      %s301 = smul.addr %s300, 8
      %s302 = scalar_lea.vmem %s3, %s301
      %s303 = smul.u32 2, %s27
      %s304 = smul.u32 16, %s28
      %p305 = scmp.lt.s32.totalorder %s304, 15
      %s306 = scalar_select %p305, %s304, 15
      %s307 = smul.addr %s306, 4
      %s308 = scalar_lea.vmem %s4, %s307
      %s309 = smul.u32 16, %s28
      %s310 = smul.u32 8, %s27
      %p311 = scmp.lt.s32.totalorder %s310, 15
      %s312 = scalar_select %p311, %s310, 15
      %s313 = smul.addr %s312, 8
      %s314 = scalar_lea.vmem %s6, %s313
      %s315 = smul.u32 8, %s27
      %p319 = scmp.eq.s32.totalorder %s28, 0
      // Predicated region
      $region41: #{gat_forward.11} parent=39 // pred_check
        %p320 = pneg %p319
      $region42: #{gat_forward.11} parent=39 // pred_check_branch
        %322 = sbr.rel (%p320) target = $region44
      $region43: #{gat_forward.11} parent=39 // pred_region
        %vm323 = vcmask 7168
        %324 = vst.msk [vmem:[#allocation2] sm:$0xff] %vm323, -1e+30
        %325 = vst.msk [vmem:[#allocation2 + $0x8] sm:$0xff] %vm323, -1e+30
        %326 = vst.msk [vmem:[#allocation2 + $0x10] sm:$0xff] %vm323, -1e+30
        %327 = vst.msk [vmem:[#allocation2 + $0x18] sm:$0xff] %vm323, -1e+30
        %328 = vst.msk [vmem:[#allocation2 + $0x20] sm:$0xff] %vm323, -1e+30
        %329 = vst.msk [vmem:[#allocation2 + $0x28] sm:$0xff] %vm323, -1e+30
        %330 = vst.msk [vmem:[#allocation2 + $0x30] sm:$0xff] %vm323, -1e+30
        %331 = vst.msk [vmem:[#allocation2 + $0x38] sm:$0xff] %vm323, -1e+30
        %332 = vst.msk [vmem:[#allocation3] sm:$0xff] %vm323, 0.0
        %333 = vst.msk [vmem:[#allocation3 + $0x8] sm:$0xff] %vm323, 0.0
        %334 = vst.msk [vmem:[#allocation3 + $0x10] sm:$0xff] %vm323, 0.0
        %335 = vst.msk [vmem:[#allocation3 + $0x18] sm:$0xff] %vm323, 0.0
        %336 = vst.msk [vmem:[#allocation3 + $0x20] sm:$0xff] %vm323, 0.0
        %337 = vst.msk [vmem:[#allocation3 + $0x28] sm:$0xff] %vm323, 0.0
        %338 = vst.msk [vmem:[#allocation3 + $0x30] sm:$0xff] %vm323, 0.0
        %339 = vst.msk [vmem:[#allocation3 + $0x38] sm:$0xff] %vm323, 0.0
        %vm340 = vcmask 31744
        %341 = vst.msk [vmem:[#allocation4] sm:$0xff] %vm340, 0.0
        %342 = vst.msk [vmem:[#allocation4 + $0x8] sm:$0xff] %vm340, 0.0
        %343 = vst.msk [vmem:[#allocation4 + $0x10] sm:$0xff] %vm340, 0.0
        %344 = vst.msk [vmem:[#allocation4 + $0x18] sm:$0xff] %vm340, 0.0
        %345 = vst.msk [vmem:[#allocation4 + $0x20] sm:$0xff] %vm340, 0.0
        %346 = vst.msk [vmem:[#allocation4 + $0x28] sm:$0xff] %vm340, 0.0
        %347 = vst.msk [vmem:[#allocation4 + $0x30] sm:$0xff] %vm340, 0.0
        %348 = vst.msk [vmem:[#allocation4 + $0x38] sm:$0xff] %vm340, 0.0
      $region44: #{gat_forward.11} parent=39 // pred_fallthru
        _
      %s349 = sshra.s32 %s28, 7
      %s350 = sand.u32 %s28, 127
      %s351 = sadd.s32 %s349, %s27
      %s352 = smul.u32 %s351, 128
      %s353 = sshra.s32 %s28, 7
      %s354 = sand.u32 %s28, 127
      %s355 = sadd.s32 %s352, %s354
      %s356 = sld [smem:[#allocation6 + %s355]]
      %p357 = scmp.gt.s32.totalorder %s356, 0
      // Predicated region
      $region45: #{gat_forward.11} parent=39 // pred_check
        %p358 = pneg %p357
      $region46: #{gat_forward.11} parent=39 // pred_check_branch
        %360 = sbr.rel (%p358) target = $region48
      $region47: #{gat_forward.11} parent=39 // pred_region
        %v361 = vld [vmem:[%s302] sm:$0xff]
        %v362 = vld [vmem:[%s302 + $0x8] sm:$0xff]
        %vm363 = vnez %v361
        %vm364 = vnez %v362
        %v365 = vsel %vm363, 16843009, 0
        %v366 = vsel %vm364, 16843009, 0
        %v367 = vunpack.c.0.s8 %v365
        %v368 = vunpack.c.1.s8 %v365
        %v369 = vunpack.c.2.s8 %v365
        %v370 = vunpack.c.3.s8 %v365
        %v371 = vunpack.c.0.s8 %v366
        %v372 = vunpack.c.1.s8 %v366
        %v373 = vunpack.c.2.s8 %v366
        %v374 = vunpack.c.3.s8 %v366
        %v375 = vpack.c.b16 %v367, %v367
        %v376 = vpack.c.b8 %v375, %v375
        %v377 = vpack.c.b16 %v368, %v368
        %v378 = vpack.c.b8 %v377, %v377
        %v379 = vpack.c.b16 %v369, %v369
        %v380 = vpack.c.b8 %v379, %v379
        %v381 = vpack.c.b16 %v370, %v370
        %v382 = vpack.c.b8 %v381, %v381
        %v383 = vpack.c.b16 %v371, %v371
        %v384 = vpack.c.b8 %v383, %v383
        %v385 = vpack.c.b16 %v372, %v372
        %v386 = vpack.c.b8 %v385, %v385
        %v387 = vpack.c.b16 %v373, %v373
        %v388 = vpack.c.b8 %v387, %v387
        %v389 = vpack.c.b16 %v374, %v374
        %v390 = vpack.c.b8 %v389, %v389
        %vm391 = vnez %v376
        %vm392 = vnez %v378
        %vm393 = vnez %v380
        %vm394 = vnez %v382
        %vm395 = vnez %v384
        %vm396 = vnez %v386
        %vm397 = vnez %v388
        %vm398 = vnez %v390
        %v399 = vsel %vm391, 16843009, 0
        %v400 = vsel %vm392, 16843009, 0
        %v401 = vsel %vm393, 16843009, 0
        %v402 = vsel %vm394, 16843009, 0
        %v403 = vsel %vm395, 16843009, 0
        %v404 = vsel %vm396, 16843009, 0
        %v405 = vsel %vm397, 16843009, 0
        %v406 = vsel %vm398, 16843009, 0
        %v407 = vunpack.c.0.s8 %v399
        %v408 = vunpack.c.0.s8 %v400
        %v409 = vunpack.c.0.s8 %v401
        %v410 = vunpack.c.0.s8 %v402
        %v411 = vunpack.c.0.s8 %v403
        %v412 = vunpack.c.0.s8 %v404
        %v413 = vunpack.c.0.s8 %v405
        %v414 = vunpack.c.0.s8 %v406
        %vm415 = vcmp.ne.s32.totalorder %v407, 0
        %vm416 = vcmp.ne.s32.totalorder %v408, 0
        %vm417 = vcmp.ne.s32.totalorder %v409, 0
        %vm418 = vcmp.ne.s32.totalorder %v410, 0
        %vm419 = vcmp.ne.s32.totalorder %v411, 0
        %vm420 = vcmp.ne.s32.totalorder %v412, 0
        %vm421 = vcmp.ne.s32.totalorder %v413, 0
        %vm422 = vcmp.ne.s32.totalorder %v414, 0
        %v423 = vsel %vm415, 1, 0
        %v424 = vsel %vm416, 1, 0
        %v425 = vsel %vm417, 1, 0
        %v426 = vsel %vm418, 1, 0
        %v427 = vsel %vm419, 1, 0
        %v428 = vsel %vm420, 1, 0
        %v429 = vsel %vm421, 1, 0
        %v430 = vsel %vm422, 1, 0
        %v431 = vcvt.s32.f32 %v423
        %v432 = vcvt.s32.f32 %v424
        %v433 = vcvt.s32.f32 %v425
        %v434 = vcvt.s32.f32 %v426
        %v435 = vcvt.s32.f32 %v427
        %v436 = vcvt.s32.f32 %v428
        %v437 = vcvt.s32.f32 %v429
        %v438 = vcvt.s32.f32 %v430
        %v439 = vsub.f32 %v431, 1.0
        %v440 = vsub.f32 %v432, 1.0
        %v441 = vsub.f32 %v433, 1.0
        %v442 = vsub.f32 %v434, 1.0
        %v443 = vsub.f32 %v435, 1.0
        %v444 = vsub.f32 %v436, 1.0
        %v445 = vsub.f32 %v437, 1.0
        %v446 = vsub.f32 %v438, 1.0
        %v447 = vmul.f32 %v439, 1e+30
        %v448 = vmul.f32 %v440, 1e+30
        %v449 = vmul.f32 %v441, 1e+30
        %v450 = vmul.f32 %v442, 1e+30
        %v451 = vmul.f32 %v443, 1e+30
        %v452 = vmul.f32 %v444, 1e+30
        %v453 = vmul.f32 %v445, 1e+30
        %v454 = vmul.f32 %v446, 1e+30
        %v455 = vld [vmem:[%s308] sm:$0xf]
        %v456 = vld [vmem:[%s308 + $0x4] sm:$0xf]
        %v457 = vld [vmem:[%s308 + $0x8] sm:$0xf]
        %v458 = vld [vmem:[%s308 + $0xc] sm:$0xf]
        %v459 = vld [vmem:[%s308 + $0x10] sm:$0xf]
        %v460 = vld [vmem:[%s308 + $0x14] sm:$0xf]
        %v461 = vld [vmem:[%s308 + $0x18] sm:$0xf]
        %v462 = vld [vmem:[%s308 + $0x1c] sm:$0xf]
        %v463 = vld [vmem:[%s308 + $0x20] sm:$0xf]
        %v464 = vld [vmem:[%s308 + $0x24] sm:$0xf]
        %v465 = vld [vmem:[%s308 + $0x28] sm:$0xf]
        %v466 = vld [vmem:[%s308 + $0x2c] sm:$0xf]
        %v467 = vld [vmem:[%s308 + $0x30] sm:$0xf]
        %v468 = vld [vmem:[%s308 + $0x34] sm:$0xf]
        %v469 = vld [vmem:[%s308 + $0x38] sm:$0xf]
        %v470 = vld [vmem:[%s308 + $0x3c] sm:$0xf]
        %v471 = vld [vmem:[%s290] sm:$0xff]
        %v472 = vld [vmem:[%s290 + $0x8] sm:$0xff]
        %v473 = vld [vmem:[%s290 + $0x10] sm:$0xff]
        %v474 = vld [vmem:[%s290 + $0x18] sm:$0xff]
        %v475 = vld [vmem:[%s290 + $0x20] sm:$0xff]
        %v476 = vld [vmem:[%s290 + $0x28] sm:$0xff]
        %v477 = vld [vmem:[%s290 + $0x30] sm:$0xff]
        %v478 = vld [vmem:[%s290 + $0x38] sm:$0xff]
        %v479 = vld [vmem:[%s294] sm:$0x1]
        %481 = vset.pattern.permute.xlu0 0
        %482 = vperm.xlu0 %481, %v471
        %v483 = vpop.permute.xlu0 %482
        %486 = vset.pattern.permute.xlu0 0
        %487 = vperm.xlu0 %486, %v472
        %v488 = vpop.permute.xlu0 %487
        %491 = vset.pattern.permute.xlu0 0
        %492 = vperm.xlu0 %491, %v473
        %v493 = vpop.permute.xlu0 %492
        %496 = vset.pattern.permute.xlu0 0
        %497 = vperm.xlu0 %496, %v474
        %v498 = vpop.permute.xlu0 %497
        %501 = vset.pattern.permute.xlu0 0
        %502 = vperm.xlu0 %501, %v475
        %v503 = vpop.permute.xlu0 %502
        %506 = vset.pattern.permute.xlu0 0
        %507 = vperm.xlu0 %506, %v476
        %v508 = vpop.permute.xlu0 %507
        %511 = vset.pattern.permute.xlu0 0
        %512 = vperm.xlu0 %511, %v477
        %v513 = vpop.permute.xlu0 %512
        %516 = vset.pattern.permute.xlu0 0
        %517 = vperm.xlu0 %516, %v478
        %v518 = vpop.permute.xlu0 %517
        %v521 = vlaneseq
        %v522 = vshrl.u32 %v521, 7
        %v523 = vsub.s32 0, %v522
        %v524 = vrot.slane %v479, %v523
        %v526 = vadd.f32 %v483, %v524
        %v527 = vadd.f32 %v488, %v524
        %v528 = vadd.f32 %v493, %v524
        %v529 = vadd.f32 %v498, %v524
        %v530 = vadd.f32 %v503, %v524
        %v531 = vadd.f32 %v508, %v524
        %v532 = vadd.f32 %v513, %v524
        %v533 = vadd.f32 %v518, %v524
        %v534 = vmul.f32 %v526, 0.2
        %v535 = vmul.f32 %v527, 0.2
        %v536 = vmul.f32 %v528, 0.2
        %v537 = vmul.f32 %v529, 0.2
        %v538 = vmul.f32 %v530, 0.2
        %v539 = vmul.f32 %v531, 0.2
        %v540 = vmul.f32 %v532, 0.2
        %v541 = vmul.f32 %v533, 0.2
        %v542 = vmax.f32 %v526, %v534
        %v543 = vmax.f32 %v527, %v535
        %v544 = vmax.f32 %v528, %v536
        %v545 = vmax.f32 %v529, %v537
        %v546 = vmax.f32 %v530, %v538
        %v547 = vmax.f32 %v531, %v539
        %v548 = vmax.f32 %v532, %v540
        %v549 = vmax.f32 %v533, %v541
        %v550 = vadd.f32 %v542, %v447
        %v551 = vadd.f32 %v543, %v448
        %v552 = vadd.f32 %v544, %v449
        %v553 = vadd.f32 %v545, %v450
        %v554 = vadd.f32 %v546, %v451
        %v555 = vadd.f32 %v547, %v452
        %v556 = vadd.f32 %v548, %v453
        %v557 = vadd.f32 %v549, %v454
        %v558 = vld [vmem:[#allocation2] sm:$0xff]
        %v559 = vld [vmem:[#allocation2 + $0x8] sm:$0xff]
        %v560 = vld [vmem:[#allocation2 + $0x10] sm:$0xff]
        %v561 = vld [vmem:[#allocation2 + $0x18] sm:$0xff]
        %v562 = vld [vmem:[#allocation2 + $0x20] sm:$0xff]
        %v563 = vld [vmem:[#allocation2 + $0x28] sm:$0xff]
        %v564 = vld [vmem:[#allocation2 + $0x30] sm:$0xff]
        %v565 = vld [vmem:[#allocation2 + $0x38] sm:$0xff]
        %566 = vmax.xlane.f32.xlu0 %v550
        %v567 = vpop.xlane.xlu0 %566
        %568 = vmax.xlane.f32.xlu0 %v551
        %v569 = vpop.xlane.xlu0 %568
        %570 = vmax.xlane.f32.xlu0 %v552
        %v571 = vpop.xlane.xlu0 %570
        %572 = vmax.xlane.f32.xlu0 %v553
        %v573 = vpop.xlane.xlu0 %572
        %574 = vmax.xlane.f32.xlu0 %v554
        %v575 = vpop.xlane.xlu0 %574
        %576 = vmax.xlane.f32.xlu0 %v555
        %v577 = vpop.xlane.xlu0 %576
        %578 = vmax.xlane.f32.xlu0 %v556
        %v579 = vpop.xlane.xlu0 %578
        %580 = vmax.xlane.f32.xlu0 %v557
        %v581 = vpop.xlane.xlu0 %580
        %v582 = vmax.f32 %v558, %v567
        %v583 = vmax.f32 %v559, %v569
        %v584 = vmax.f32 %v560, %v571
        %v585 = vmax.f32 %v561, %v573
        %v586 = vmax.f32 %v562, %v575
        %v587 = vmax.f32 %v563, %v577
        %v588 = vmax.f32 %v564, %v579
        %v589 = vmax.f32 %v565, %v581
        %591 = vset.pattern.permute.xlu0 0
        %592 = vperm.xlu0 %591, %v582
        %v593 = vpop.permute.xlu0 %592
        %596 = vset.pattern.permute.xlu0 0
        %597 = vperm.xlu0 %596, %v583
        %v598 = vpop.permute.xlu0 %597
        %601 = vset.pattern.permute.xlu0 0
        %602 = vperm.xlu0 %601, %v584
        %v603 = vpop.permute.xlu0 %602
        %606 = vset.pattern.permute.xlu0 0
        %607 = vperm.xlu0 %606, %v585
        %v608 = vpop.permute.xlu0 %607
        %611 = vset.pattern.permute.xlu0 0
        %612 = vperm.xlu0 %611, %v586
        %v613 = vpop.permute.xlu0 %612
        %616 = vset.pattern.permute.xlu0 0
        %617 = vperm.xlu0 %616, %v587
        %v618 = vpop.permute.xlu0 %617
        %621 = vset.pattern.permute.xlu0 0
        %622 = vperm.xlu0 %621, %v588
        %v623 = vpop.permute.xlu0 %622
        %626 = vset.pattern.permute.xlu0 0
        %627 = vperm.xlu0 %626, %v589
        %v628 = vpop.permute.xlu0 %627
        %v630 = vsub.f32 %v550, %v593
        %v631 = vsub.f32 %v551, %v598
        %v632 = vsub.f32 %v552, %v603
        %v633 = vsub.f32 %v553, %v608
        %v634 = vsub.f32 %v554, %v613
        %v635 = vsub.f32 %v555, %v618
        %v636 = vsub.f32 %v556, %v623
        %v637 = vsub.f32 %v557, %v628
        %v638 = vmul.f32 %v630, 1.442695
        %v639 = vpow.pop %v638
        %v640 = vmul.f32 %v631, 1.442695
        %v641 = vpow.pop %v640
        %v642 = vmul.f32 %v632, 1.442695
        %v643 = vpow.pop %v642
        %v644 = vmul.f32 %v633, 1.442695
        %v645 = vpow.pop %v644
        %v646 = vmul.f32 %v634, 1.442695
        %v647 = vpow.pop %v646
        %v648 = vmul.f32 %v635, 1.442695
        %v649 = vpow.pop %v648
        %v650 = vmul.f32 %v636, 1.442695
        %v651 = vpow.pop %v650
        %v652 = vmul.f32 %v637, 1.442695
        %v653 = vpow.pop %v652
        %v654 = vmul.f32 %v639, %v431
        %v655 = vmul.f32 %v641, %v432
        %v656 = vmul.f32 %v643, %v433
        %v657 = vmul.f32 %v645, %v434
        %v658 = vmul.f32 %v647, %v435
        %v659 = vmul.f32 %v649, %v436
        %v660 = vmul.f32 %v651, %v437
        %v661 = vmul.f32 %v653, %v438
        %v662 = vsub.f32 %v558, %v582
        %v663 = vsub.f32 %v559, %v583
        %v664 = vsub.f32 %v560, %v584
        %v665 = vsub.f32 %v561, %v585
        %v666 = vsub.f32 %v562, %v586
        %v667 = vsub.f32 %v563, %v587
        %v668 = vsub.f32 %v564, %v588
        %v669 = vsub.f32 %v565, %v589
        %v670 = vmul.f32 %v662, 1.442695
        %v671 = vpow.pop %v670
        %v672 = vmul.f32 %v663, 1.442695
        %v673 = vpow.pop %v672
        %v674 = vmul.f32 %v664, 1.442695
        %v675 = vpow.pop %v674
        %v676 = vmul.f32 %v665, 1.442695
        %v677 = vpow.pop %v676
        %v678 = vmul.f32 %v666, 1.442695
        %v679 = vpow.pop %v678
        %v680 = vmul.f32 %v667, 1.442695
        %v681 = vpow.pop %v680
        %v682 = vmul.f32 %v668, 1.442695
        %v683 = vpow.pop %v682
        %v684 = vmul.f32 %v669, 1.442695
        %v685 = vpow.pop %v684
        %v686 = vld [vmem:[#allocation3] sm:$0xff]
        %v687 = vld [vmem:[#allocation3 + $0x8] sm:$0xff]
        %v688 = vld [vmem:[#allocation3 + $0x10] sm:$0xff]
        %v689 = vld [vmem:[#allocation3 + $0x18] sm:$0xff]
        %v690 = vld [vmem:[#allocation3 + $0x20] sm:$0xff]
        %v691 = vld [vmem:[#allocation3 + $0x28] sm:$0xff]
        %v692 = vld [vmem:[#allocation3 + $0x30] sm:$0xff]
        %v693 = vld [vmem:[#allocation3 + $0x38] sm:$0xff]
        %v694 = vmul.f32 %v671, %v686
        %v695 = vmul.f32 %v673, %v687
        %v696 = vmul.f32 %v675, %v688
        %v697 = vmul.f32 %v677, %v689
        %v698 = vmul.f32 %v679, %v690
        %v699 = vmul.f32 %v681, %v691
        %v700 = vmul.f32 %v683, %v692
        %v701 = vmul.f32 %v685, %v693
        %702 = vadd.xlane.f32.xlu0 %v654
        %v703 = vpop.xlane.xlu0 %702
        %704 = vadd.xlane.f32.xlu0 %v655
        %v705 = vpop.xlane.xlu0 %704
        %706 = vadd.xlane.f32.xlu0 %v656
        %v707 = vpop.xlane.xlu0 %706
        %708 = vadd.xlane.f32.xlu0 %v657
        %v709 = vpop.xlane.xlu0 %708
        %710 = vadd.xlane.f32.xlu0 %v658
        %v711 = vpop.xlane.xlu0 %710
        %712 = vadd.xlane.f32.xlu0 %v659
        %v713 = vpop.xlane.xlu0 %712
        %714 = vadd.xlane.f32.xlu0 %v660
        %v715 = vpop.xlane.xlu0 %714
        %716 = vadd.xlane.f32.xlu0 %v661
        %v717 = vpop.xlane.xlu0 %716
        %v718 = vadd.f32 %v694, %v703
        %v719 = vadd.f32 %v695, %v705
        %v720 = vadd.f32 %v696, %v707
        %v721 = vadd.f32 %v697, %v709
        %v722 = vadd.f32 %v698, %v711
        %v723 = vadd.f32 %v699, %v713
        %v724 = vadd.f32 %v700, %v715
        %v725 = vadd.f32 %v701, %v717
        %vm726 = vcmask 7168
        %727 = vst.msk [vmem:[#allocation3] sm:$0xff] %vm726, %v718
        %728 = vst.msk [vmem:[#allocation3 + $0x8] sm:$0xff] %vm726, %v719
        %729 = vst.msk [vmem:[#allocation3 + $0x10] sm:$0xff] %vm726, %v720
        %730 = vst.msk [vmem:[#allocation3 + $0x18] sm:$0xff] %vm726, %v721
        %731 = vst.msk [vmem:[#allocation3 + $0x20] sm:$0xff] %vm726, %v722
        %732 = vst.msk [vmem:[#allocation3 + $0x28] sm:$0xff] %vm726, %v723
        %733 = vst.msk [vmem:[#allocation3 + $0x30] sm:$0xff] %vm726, %v724
        %734 = vst.msk [vmem:[#allocation3 + $0x38] sm:$0xff] %vm726, %v725
        %v735 = vld [vmem:[#allocation4] sm:$0xff]
        %v736 = vld [vmem:[#allocation4 + $0x8] sm:$0xff]
        %v737 = vld [vmem:[#allocation4 + $0x10] sm:$0xff]
        %v738 = vld [vmem:[#allocation4 + $0x18] sm:$0xff]
        %v739 = vld [vmem:[#allocation4 + $0x20] sm:$0xff]
        %v740 = vld [vmem:[#allocation4 + $0x28] sm:$0xff]
        %v741 = vld [vmem:[#allocation4 + $0x30] sm:$0xff]
        %v742 = vld [vmem:[#allocation4 + $0x38] sm:$0xff]
        %744 = vset.pattern.permute.xlu0 0
        %745 = vperm.xlu0 %744, %v671
        %v746 = vpop.permute.xlu0 %745
        %749 = vset.pattern.permute.xlu0 0
        %750 = vperm.xlu0 %749, %v673
        %v751 = vpop.permute.xlu0 %750
        %754 = vset.pattern.permute.xlu0 0
        %755 = vperm.xlu0 %754, %v675
        %v756 = vpop.permute.xlu0 %755
        %759 = vset.pattern.permute.xlu0 0
        %760 = vperm.xlu0 %759, %v677
        %v761 = vpop.permute.xlu0 %760
        %764 = vset.pattern.permute.xlu0 0
        %765 = vperm.xlu0 %764, %v679
        %v766 = vpop.permute.xlu0 %765
        %769 = vset.pattern.permute.xlu0 0
        %770 = vperm.xlu0 %769, %v681
        %v771 = vpop.permute.xlu0 %770
        %774 = vset.pattern.permute.xlu0 0
        %775 = vperm.xlu0 %774, %v683
        %v776 = vpop.permute.xlu0 %775
        %779 = vset.pattern.permute.xlu0 0
        %780 = vperm.xlu0 %779, %v685
        %v781 = vpop.permute.xlu0 %780
        %v783 = vmul.f32 %v746, %v735
        %v784 = vmul.f32 %v751, %v736
        %v785 = vmul.f32 %v756, %v737
        %v786 = vmul.f32 %v761, %v738
        %v787 = vmul.f32 %v766, %v739
        %v788 = vmul.f32 %v771, %v740
        %v789 = vmul.f32 %v776, %v741
        %v790 = vmul.f32 %v781, %v742
        %v791 = vpack.c.bf16 %v655, %v654
        %v792 = vpack.c.bf16 %v657, %v656
        %v793 = vpack.c.bf16 %v659, %v658
        %v794 = vpack.c.bf16 %v661, %v660
        %v811 = vunpack.c.l.b16 %v455
        %v812 = vunpack.c.l.b16 %v456
        %v813 = vunpack.c.l.b16 %v457
        %v814 = vunpack.c.l.b16 %v458
        %v815 = vunpack.c.l.b16 %v459
        %v816 = vunpack.c.l.b16 %v460
        %v817 = vunpack.c.l.b16 %v461
        %v818 = vunpack.c.l.b16 %v462
        %v819 = vunpack.c.l.b16 %v463
        %v820 = vunpack.c.l.b16 %v464
        %v821 = vunpack.c.l.b16 %v465
        %v822 = vunpack.c.l.b16 %v466
        %v823 = vunpack.c.l.b16 %v467
        %v824 = vunpack.c.l.b16 %v468
        %v825 = vunpack.c.l.b16 %v469
        %v826 = vunpack.c.l.b16 %v470
        %v827 = vpack.c.b16 %v812, %v811
        %v828 = vpack.c.b16 %v814, %v813
        %v829 = vpack.c.b16 %v816, %v815
        %v830 = vpack.c.b16 %v818, %v817
        %v831 = vpack.c.b16 %v820, %v819
        %v832 = vpack.c.b16 %v822, %v821
        %v833 = vpack.c.b16 %v824, %v823
        %v834 = vpack.c.b16 %v826, %v825
        %843 = vmatprep.subr.bf16.mxu0 0
        %844 = vmatpush1.bf16.msra.mxu0 %v827
        %845 = vmatprep.subr.bf16.mxu0 0
        %846 = vmatpush1.bf16.msra.mxu0 %v828
        %847 = vmatprep.subr.bf16.mxu0 0
        %848 = vmatpush1.bf16.msra.mxu0 %v829
        %849 = vmatprep.subr.bf16.mxu0 0
        %850 = vmatpush1.bf16.msra.mxu0 %v830
        %851 = vmatprep.subr.bf16.mxu0 0
        %852 = vmatpush1.bf16.msra.mxu0 %v831
        %853 = vmatprep.subr.bf16.mxu0 0
        %854 = vmatpush1.bf16.msra.mxu0 %v832
        %855 = vmatprep.subr.bf16.mxu0 0
        %856 = vmatpush1.bf16.msra.mxu0 %v833
        %857 = vmatprep.subr.bf16.mxu0 0
        %858 = vmatpush1.bf16.msra.mxu0 %v834
        %859 = vmatprep.subr.bf16.mxu0 0
        %860 = vmatpush1.bf16.msra.mxu0 0
        %861 = vmatprep.subr.bf16.mxu0 0
        %862 = vmatpush1.bf16.msra.mxu0 0
        %863 = vmatprep.subr.bf16.mxu0 0
        %864 = vmatpush1.bf16.msra.mxu0 0
        %865 = vmatprep.subr.bf16.mxu0 0
        %866 = vmatpush1.bf16.msra.mxu0 0
        %867 = vmatprep.subr.bf16.mxu0 0
        %868 = vmatpush1.bf16.msra.mxu0 0
        %869 = vmatprep.subr.bf16.mxu0 0
        %870 = vmatpush1.bf16.msra.mxu0 0
        %871 = vmatprep.subr.bf16.mxu0 0
        %872 = vmatpush1.bf16.msra.mxu0 0
        %873 = vmatprep.subr.bf16.mxu0 0
        %874 = vmatpush1.bf16.msra.mxu0 0
        %875 = vmatprep.mubr.bf16.mxu0 0
        %876 = vmatmul.mubr.bf16.gmra.mrb[0].mxu0 %v791
        %v877 = vpop.f32.mrb[0].mxu0
        %v878 = vadd.f32 0.0, %v877
        %v879 = vpop.f32.mrb[0].mxu0
        %v880 = vpop.f32.mrb[0].mxu0
        %v881 = vadd.f32 0.0, %v880
        %v882 = vpop.f32.mrb[0].mxu0
        %883 = vmatprep.mubr.bf16.mxu0 0
        %884 = vmatmul.mubr.bf16.gmra.mrb[0].mxu0 %v792
        %v885 = vpop.f32.mrb[0].mxu0
        %v886 = vadd.f32 0.0, %v885
        %v887 = vpop.f32.mrb[0].mxu0
        %v888 = vpop.f32.mrb[0].mxu0
        %v889 = vadd.f32 0.0, %v888
        %v890 = vpop.f32.mrb[0].mxu0
        %891 = vmatprep.mubr.bf16.mxu0 0
        %892 = vmatmul.mubr.bf16.gmra.mrb[0].mxu0 %v793
        %v893 = vpop.f32.mrb[0].mxu0
        %v894 = vadd.f32 0.0, %v893
        %v895 = vpop.f32.mrb[0].mxu0
        %v896 = vpop.f32.mrb[0].mxu0
        %v897 = vadd.f32 0.0, %v896
        %v898 = vpop.f32.mrb[0].mxu0
        %899 = vmatprep.mubr.bf16.mxu0 0
        %900 = vmatmul.mubr.bf16.gmra.mrb[0].mxu0 %v794
        %v901 = vpop.f32.mrb[0].mxu0
        %v902 = vadd.f32 0.0, %v901
        %v903 = vpop.f32.mrb[0].mxu0
        %v904 = vpop.f32.mrb[0].mxu0
        %v905 = vadd.f32 0.0, %v904
        %v906 = vpop.f32.mrb[0].mxu0
        %907 = vdwg.mxu0
        %v908 = vadd.f32 %v783, %v878
        %v909 = vadd.f32 %v784, %v881
        %v910 = vadd.f32 %v785, %v886
        %v911 = vadd.f32 %v786, %v889
        %v912 = vadd.f32 %v787, %v894
        %v913 = vadd.f32 %v788, %v897
        %v914 = vadd.f32 %v789, %v902
        %v915 = vadd.f32 %v790, %v905
        %vm916 = vcmask 31744
        %917 = vst.msk [vmem:[#allocation4] sm:$0xff] %vm916, %v908
        %918 = vst.msk [vmem:[#allocation4 + $0x8] sm:$0xff] %vm916, %v909
        %919 = vst.msk [vmem:[#allocation4 + $0x10] sm:$0xff] %vm916, %v910
        %920 = vst.msk [vmem:[#allocation4 + $0x18] sm:$0xff] %vm916, %v911
        %921 = vst.msk [vmem:[#allocation4 + $0x20] sm:$0xff] %vm916, %v912
        %922 = vst.msk [vmem:[#allocation4 + $0x28] sm:$0xff] %vm916, %v913
        %923 = vst.msk [vmem:[#allocation4 + $0x30] sm:$0xff] %vm916, %v914
        %924 = vst.msk [vmem:[#allocation4 + $0x38] sm:$0xff] %vm916, %v915
        %925 = vst.msk [vmem:[#allocation2] sm:$0xff] %vm726, %v582
        %926 = vst.msk [vmem:[#allocation2 + $0x8] sm:$0xff] %vm726, %v583
        %927 = vst.msk [vmem:[#allocation2 + $0x10] sm:$0xff] %vm726, %v584
        %928 = vst.msk [vmem:[#allocation2 + $0x18] sm:$0xff] %vm726, %v585
        %929 = vst.msk [vmem:[#allocation2 + $0x20] sm:$0xff] %vm726, %v586
        %930 = vst.msk [vmem:[#allocation2 + $0x28] sm:$0xff] %vm726, %v587
        %931 = vst.msk [vmem:[#allocation2 + $0x30] sm:$0xff] %vm726, %v588
        %932 = vst.msk [vmem:[#allocation2 + $0x38] sm:$0xff] %vm726, %v589
      $region48: #{gat_forward.11} parent=39 // pred_fallthru
        _
      // Predicated region
      $region49: #{gat_forward.11} parent=39 // pred_check
        %p933 = pneg %p319
      $region50: #{gat_forward.11} parent=39 // pred_check_branch
        %935 = sbr.rel (%p933) target = $region52
      $region51: #{gat_forward.11} parent=39 // pred_region
        %v936 = vld [vmem:[%s5] sm:$0x1]
        %v937 = vld [vmem:[#allocation3] sm:$0xff]
        %v938 = vld [vmem:[#allocation3 + $0x8] sm:$0xff]
        %v939 = vld [vmem:[#allocation3 + $0x10] sm:$0xff]
        %v940 = vld [vmem:[#allocation3 + $0x18] sm:$0xff]
        %v941 = vld [vmem:[#allocation3 + $0x20] sm:$0xff]
        %v942 = vld [vmem:[#allocation3 + $0x28] sm:$0xff]
        %v943 = vld [vmem:[#allocation3 + $0x30] sm:$0xff]
        %v944 = vld [vmem:[#allocation3 + $0x38] sm:$0xff]
        %v945 = vmax.f32 %v937, 1e-20
        %v946 = vmax.f32 %v938, 1e-20
        %v947 = vmax.f32 %v939, 1e-20
        %v948 = vmax.f32 %v940, 1e-20
        %v949 = vmax.f32 %v941, 1e-20
        %v950 = vmax.f32 %v942, 1e-20
        %v951 = vmax.f32 %v943, 1e-20
        %v952 = vmax.f32 %v944, 1e-20
        %v953 = vrcp.pop %v945
        %v954 = vmul.f32 1.0, %v953
        %v955 = vrcp.pop %v946
        %v956 = vmul.f32 1.0, %v955
        %v957 = vrcp.pop %v947
        %v958 = vmul.f32 1.0, %v957
        %v959 = vrcp.pop %v948
        %v960 = vmul.f32 1.0, %v959
        %v961 = vrcp.pop %v949
        %v962 = vmul.f32 1.0, %v961
        %v963 = vrcp.pop %v950
        %v964 = vmul.f32 1.0, %v963
        %v965 = vrcp.pop %v951
        %v966 = vmul.f32 1.0, %v965
        %v967 = vrcp.pop %v952
        %v968 = vmul.f32 1.0, %v967
        %v969 = vld [vmem:[#allocation4] sm:$0xff]
        %v970 = vld [vmem:[#allocation4 + $0x8] sm:$0xff]
        %v971 = vld [vmem:[#allocation4 + $0x10] sm:$0xff]
        %v972 = vld [vmem:[#allocation4 + $0x18] sm:$0xff]
        %v973 = vld [vmem:[#allocation4 + $0x20] sm:$0xff]
        %v974 = vld [vmem:[#allocation4 + $0x28] sm:$0xff]
        %v975 = vld [vmem:[#allocation4 + $0x30] sm:$0xff]
        %v976 = vld [vmem:[#allocation4 + $0x38] sm:$0xff]
        %978 = vset.pattern.permute.xlu0 0
        %979 = vperm.xlu0 %978, %v954
        %v980 = vpop.permute.xlu0 %979
        %983 = vset.pattern.permute.xlu0 0
        %984 = vperm.xlu0 %983, %v956
        %v985 = vpop.permute.xlu0 %984
        %988 = vset.pattern.permute.xlu0 0
        %989 = vperm.xlu0 %988, %v958
        %v990 = vpop.permute.xlu0 %989
        %993 = vset.pattern.permute.xlu0 0
        %994 = vperm.xlu0 %993, %v960
        %v995 = vpop.permute.xlu0 %994
        %998 = vset.pattern.permute.xlu0 0
        %999 = vperm.xlu0 %998, %v962
        %v1000 = vpop.permute.xlu0 %999
        %1003 = vset.pattern.permute.xlu0 0
        %1004 = vperm.xlu0 %1003, %v964
        %v1005 = vpop.permute.xlu0 %1004
        %1008 = vset.pattern.permute.xlu0 0
        %1009 = vperm.xlu0 %1008, %v966
        %v1010 = vpop.permute.xlu0 %1009
        %1013 = vset.pattern.permute.xlu0 0
        %1014 = vperm.xlu0 %1013, %v968
        %v1015 = vpop.permute.xlu0 %1014
        %v1017 = vmul.f32 %v969, %v980
        %v1018 = vmul.f32 %v970, %v985
        %v1019 = vmul.f32 %v971, %v990
        %v1020 = vmul.f32 %v972, %v995
        %v1021 = vmul.f32 %v973, %v1000
        %v1022 = vmul.f32 %v974, %v1005
        %v1023 = vmul.f32 %v975, %v1010
        %v1024 = vmul.f32 %v976, %v1015
        %v1026 = vlaneseq
        %v1027 = vshrl.u32 %v1026, 7
        %v1028 = vsub.s32 0, %v1027
        %v1029 = vrot.slane %v936, %v1028
        %v1031 = vadd.f32 %v1017, %v1029
        %v1032 = vadd.f32 %v1018, %v1029
        %v1033 = vadd.f32 %v1019, %v1029
        %v1034 = vadd.f32 %v1020, %v1029
        %v1035 = vadd.f32 %v1021, %v1029
        %v1036 = vadd.f32 %v1022, %v1029
        %v1037 = vadd.f32 %v1023, %v1029
        %v1038 = vadd.f32 %v1024, %v1029
        %vm1039 = vcmask 31744
        %v1040 = vsel %vm1039, %v1031, -inf
        %1041 = vmax.xlane.f32.xlu0 %v1040
        %v1042 = vpop.xlane.xlu0 %1041
        %v1043 = vsel %vm1039, %v1032, -inf
        %1044 = vmax.xlane.f32.xlu0 %v1043
        %v1045 = vpop.xlane.xlu0 %1044
        %v1046 = vsel %vm1039, %v1033, -inf
        %1047 = vmax.xlane.f32.xlu0 %v1046
        %v1048 = vpop.xlane.xlu0 %1047
        %v1049 = vsel %vm1039, %v1034, -inf
        %1050 = vmax.xlane.f32.xlu0 %v1049
        %v1051 = vpop.xlane.xlu0 %1050
        %v1052 = vsel %vm1039, %v1035, -inf
        %1053 = vmax.xlane.f32.xlu0 %v1052
        %v1054 = vpop.xlane.xlu0 %1053
        %v1055 = vsel %vm1039, %v1036, -inf
        %1056 = vmax.xlane.f32.xlu0 %v1055
        %v1057 = vpop.xlane.xlu0 %1056
        %v1058 = vsel %vm1039, %v1037, -inf
        %1059 = vmax.xlane.f32.xlu0 %v1058
        %v1060 = vpop.xlane.xlu0 %1059
        %v1061 = vsel %vm1039, %v1038, -inf
        %1062 = vmax.xlane.f32.xlu0 %v1061
        %v1063 = vpop.xlane.xlu0 %1062
        %v1064 = vsub.f32 %v1031, %v1042
        %v1065 = vsub.f32 %v1032, %v1045
        %v1066 = vsub.f32 %v1033, %v1048
        %v1067 = vsub.f32 %v1034, %v1051
        %v1068 = vsub.f32 %v1035, %v1054
        %v1069 = vsub.f32 %v1036, %v1057
        %v1070 = vsub.f32 %v1037, %v1060
        %v1071 = vsub.f32 %v1038, %v1063
        %v1072 = vmul.f32 %v1064, 1.442695
        %v1073 = vpow.pop %v1072
        %v1074 = vmul.f32 %v1065, 1.442695
        %v1075 = vpow.pop %v1074
        %v1076 = vmul.f32 %v1066, 1.442695
        %v1077 = vpow.pop %v1076
        %v1078 = vmul.f32 %v1067, 1.442695
        %v1079 = vpow.pop %v1078
        %v1080 = vmul.f32 %v1068, 1.442695
        %v1081 = vpow.pop %v1080
        %v1082 = vmul.f32 %v1069, 1.442695
        %v1083 = vpow.pop %v1082
        %v1084 = vmul.f32 %v1070, 1.442695
        %v1085 = vpow.pop %v1084
        %v1086 = vmul.f32 %v1071, 1.442695
        %v1087 = vpow.pop %v1086
        %v1088 = vsel %vm1039, %v1073, 0.0
        %1089 = vadd.xlane.f32.xlu0 %v1088
        %v1090 = vpop.xlane.xlu0 %1089
        %v1091 = vsel %vm1039, %v1075, 0.0
        %1092 = vadd.xlane.f32.xlu0 %v1091
        %v1093 = vpop.xlane.xlu0 %1092
        %v1094 = vsel %vm1039, %v1077, 0.0
        %1095 = vadd.xlane.f32.xlu0 %v1094
        %v1096 = vpop.xlane.xlu0 %1095
        %v1097 = vsel %vm1039, %v1079, 0.0
        %1098 = vadd.xlane.f32.xlu0 %v1097
        %v1099 = vpop.xlane.xlu0 %1098
        %v1100 = vsel %vm1039, %v1081, 0.0
        %1101 = vadd.xlane.f32.xlu0 %v1100
        %v1102 = vpop.xlane.xlu0 %1101
        %v1103 = vsel %vm1039, %v1083, 0.0
        %1104 = vadd.xlane.f32.xlu0 %v1103
        %v1105 = vpop.xlane.xlu0 %1104
        %v1106 = vsel %vm1039, %v1085, 0.0
        %1107 = vadd.xlane.f32.xlu0 %v1106
        %v1108 = vpop.xlane.xlu0 %1107
        %v1109 = vsel %vm1039, %v1087, 0.0
        %1110 = vadd.xlane.f32.xlu0 %v1109
        %v1111 = vpop.xlane.xlu0 %1110
        %v1112 = vlog2.pop %v1090
        %v1113 = vmul.f32 %v1112, 0.6931472
        %v1114 = vlog2.pop %v1093
        %v1115 = vmul.f32 %v1114, 0.6931472
        %v1116 = vlog2.pop %v1096
        %v1117 = vmul.f32 %v1116, 0.6931472
        %v1118 = vlog2.pop %v1099
        %v1119 = vmul.f32 %v1118, 0.6931472
        %v1120 = vlog2.pop %v1102
        %v1121 = vmul.f32 %v1120, 0.6931472
        %v1122 = vlog2.pop %v1105
        %v1123 = vmul.f32 %v1122, 0.6931472
        %v1124 = vlog2.pop %v1108
        %v1125 = vmul.f32 %v1124, 0.6931472
        %v1126 = vlog2.pop %v1111
        %v1127 = vmul.f32 %v1126, 0.6931472
        %v1128 = vsub.f32 %v1064, %v1113
        %v1129 = vsub.f32 %v1065, %v1115
        %v1130 = vsub.f32 %v1066, %v1117
        %v1131 = vsub.f32 %v1067, %v1119
        %v1132 = vsub.f32 %v1068, %v1121
        %v1133 = vsub.f32 %v1069, %v1123
        %v1134 = vsub.f32 %v1070, %v1125
        %v1135 = vsub.f32 %v1071, %v1127
        %1136 = vst.msk [vmem:[%s314] sm:$0xff] %vm1039, %v1128
        %1137 = vst.msk [vmem:[%s314 + $0x8] sm:$0xff] %vm1039, %v1129
        %1138 = vst.msk [vmem:[%s314 + $0x10] sm:$0xff] %vm1039, %v1130
        %1139 = vst.msk [vmem:[%s314 + $0x18] sm:$0xff] %vm1039, %v1131
        %1140 = vst.msk [vmem:[%s314 + $0x20] sm:$0xff] %vm1039, %v1132
        %1141 = vst.msk [vmem:[%s314 + $0x28] sm:$0xff] %vm1039, %v1133
        %1142 = vst.msk [vmem:[%s314 + $0x30] sm:$0xff] %vm1039, %v1134
        %1143 = vst.msk [vmem:[%s314 + $0x38] sm:$0xff] %vm1039, %v1135
      $region52: #{gat_forward.11} parent=39 // pred_fallthru
        _
      %s1144 = smul.u32 8, %s27
      %p1145 = scmp.lt.s32.totalorder %s1144, 15
      %s1146 = scalar_select %p1145, %s1144, 15
      %s1147 = smul.addr %s1146, 8
      %s1148 = scalar_lea.vmem %s6, %s1147
      // Predicated region
      $region53: #{gat_forward.11} parent=39 // pred_check
        %p1149 = pneg %p180
      $region54: #{gat_forward.11} parent=39 // pred_check_branch
        %1151 = sbr.rel (%p1149) target = $region56
      $region55: #{gat_forward.11} parent=39 // pred_region
        %s1152 = smul.u32 8, %s27
      $region56: #{gat_forward.11} parent=39 // pred_fallthru
        _
    $region40: #{gat_forward.11} parent=5 // pred_fallthru
      _
    %p1153 = scmp.le.s32.totalorder 2, %s18
    // Predicated region
    $region57: #{gat_forward.11} parent=5 // pred_check
      %p1154 = pneg %p1153
    $region58: #{gat_forward.11} parent=5 // pred_check_branch
      %1156 = sbr.rel (%p1154) target = $region60
    $region59: #{gat_forward.11} parent=5 // pred_region
      %s1157 = ssub.s32 %s18, 2
      // Predicated region
      $region61: #{gat_forward.11} parent=59 // pred_check
        %p1158 = pneg %p186
      $region62: #{gat_forward.11} parent=59 // pred_check_branch
        %1160 = sbr.rel (%p1158) target = $region64
      $region63: #{gat_forward.11} parent=59 // pred_region
        %s1161 = smul.u32 8, %s29
        %p1162 = scmp.lt.s32.totalorder %s1161, 15
        %s1163 = scalar_select %p1162, %s1161, 15
        %s1164 = smul.addr %s1163, 8
        %s1165 = scalar_lea.vmem %s6, %s1164
      $region64: #{gat_forward.11} parent=59 // pred_fallthru
        _
    $region60: #{gat_forward.11} parent=5 // pred_fallthru
      _
  $region6: #{gat_forward.11} parent=0 // loop_footer
    %s22 = sadd.s32 1, %s18
  $region7: #{gat_forward.11} parent=0 // loop_footer_branch
    %17 = sbr.rel target = $region3
  $region8: #{gat_forward.11} parent=0 // loop_exit
    _

</llo_original>
